<compile_context>
chip_gen: v5e
topology: v5e:2x2
jax: 0.10.0
libtpu: 0.0.40
codegen_flags: <defaults>
</compile_context>

<pallas_src>
import jax
import jax.numpy as jnp
from jax.experimental import pallas as pl
from jax.experimental.pallas import tpu as pltpu

# -------- configuration (ReconstructionModel(window_size, in_dim, hid_dim, out_dim, n_layers, dropout)) --------
WINDOW   = 8      # window_size
IN_DIM   = 32     # in_dim  (latent width fed to the decoder)
HID_DIM  = 128    # hid_dim (multiple of 128 -> lane-aligned gate slices)
OUT_DIM  = 32     # out_dim
N_LAYERS = 1      # n_layers (module forces dropout=0.0 in this case)
BATCH    = 64


def make_recon_kernel(n_layers, window, hid, out_dim):
    """GRU decoder (+ fused FC head) over one (tile, ...) block."""
    G3 = 3 * hid

    def kernel(*refs):
        n_scr = 2 if n_layers == 1 else 4
        scr = refs[-n_scr:]
        refs = refs[:-n_scr]
        gi_ref, hcat_ref = scr[0], scr[1]                 # (tile, W*3H), (tile, W*H)
        hseq_tm_ref = scr[2] if n_layers > 1 else None    # (W*tile, H)   time-major, layers >= 1 input
        gi_tm_ref = scr[3] if n_layers > 1 else None      # (W*tile, 3H)

        x_ref = refs[0]
        o_ref = refs[-1]
        w = refs[1:-1]
        weff0_ref, gbias0_ref, bhhn0_ref, whh0_ref = w[0:4]   # layer 0 (repeat_interleave + biases folded)
        wfc_ref, bfc_ref = w[-2], w[-1]                        # block-diag FC head
        layer_w = w[4:-2]                                      # 4 refs per layer for layers >= 1

        x = x_ref[...]                                         # (tile, in_dim) f32
        B = x.shape[0]

        def sigmoid(v):
            # 0.5*tanh(0.5*v)+0.5 : one EUP pass instead of exp + reciprocal (two EUP passes).
            return 0.5 * jnp.tanh(0.5 * v) + 0.5

        def store_last(t, h):                                  # lane-aligned 128-wide stores
            hcat_ref[:, t * hid:(t + 1) * hid] = h

        def store_mid(t, h):                                   # time-major rows for the next layer
            hseq_tm_ref[t * B:(t + 1) * B, :] = h

        def run_layer(gi_of_t, whh_ref, bhhn_ref, store_h):
            """Serial GRU recurrence. gi_of_t(t) -> (B, 3H) f32 with bih (+ bhh_r/z) pre-folded."""
            whh = whh_ref[...]                                             # (H, 3H) bf16
            bhhn = jnp.broadcast_to(bhhn_ref[...], (B, hid))               # hoisted broadcast
            h = jnp.zeros((B, hid), jnp.float32)
            for t in range(window):                                        # static unroll: true recurrence
                gi = gi_of_t(t)
                gh = jnp.dot(h.astype(jnp.bfloat16), whh,
                             preferred_element_type=jnp.float32)           # (B, 3H) f32 acc
                r = sigmoid(gi[:, 0 * hid:1 * hid] + gh[:, 0 * hid:1 * hid])
                z = sigmoid(gi[:, 1 * hid:2 * hid] + gh[:, 1 * hid:2 * hid])
                n = jnp.tanh(gi[:, 2 * hid:3 * hid] + r * (gh[:, 2 * hid:3 * hid] + bhhn))
                h = (1.0 - z) * n + z * h
                store_h(t, h)

        # ---------------- layer 0: hoisted input projection (repeat_interleave folded in) ------------
        gi_ref[...] = (jnp.dot(x, weff0_ref[...], preferred_element_type=jnp.float32)
                       + gbias0_ref[...])                                  # one (B,in)x(in,W*3H) matmul
        run_layer(lambda t: gi_ref[:, t * G3:(t + 1) * G3],
                  whh0_ref, bhhn0_ref,
                  store_last if n_layers == 1 else store_mid)

        # ---------------- layers 1 .. L-1 -------------------------------------------------------------
        for l in range(1, n_layers):
            wih_ref, gbias_ref, bhhn_ref, whh_ref = layer_w[4 * (l - 1):4 * l]
            # hoisted input projection for this layer: one (W*tile, H) x (H, 3H) matmul
            gi_tm_ref[...] = (jnp.dot(hseq_tm_ref[...], wih_ref[...],
                                      preferred_element_type=jnp.float32)
                              + gbias_ref[...])
            run_layer(lambda t: gi_tm_ref[t * B:(t + 1) * B, :],
                      whh_ref, bhhn_ref,
                      store_last if l == n_layers - 1 else store_mid)

        # ---------------- FC head (hoisted): one block-diag matmul + one lane-dense store -------------
        hcat = hcat_ref[...].astype(jnp.bfloat16)                          # (B, W*H)
        out = jnp.dot(hcat, wfc_ref[...], preferred_element_type=jnp.float32) + bfc_ref[...]
        o_ref[...] = out.astype(o_ref.dtype)                               # (B, W*OUT): unmasked stores

    return kernel


def reconstruction_model_pallas(x, packed, *, window, n_layers, hid_dim, out_dim):
    """x: (B, in_dim) latent -> (B, window, out_dim). Single fused pallas_call."""
    B, in_dim = x.shape
    # Recurrence-latency bound: one grid step / one core on all generations (see perf review).
    tile = B
    grid = (B // tile,)

    weight_args = [packed['weff0'], packed['gbias0'], packed['bhhn0'], packed['whh0']]
    for l in range(1, n_layers):
        weight_args += [packed[f'wih{l}'], packed[f'gbias{l}'],
                        packed[f'bhhn{l}'], packed[f'whh{l}']]
    weight_args += [packed['wfc_blk'], packed['bfc_all']]

    def const_spec(a):
        nd = a.ndim
        return pl.BlockSpec(a.shape, lambda i, _nd=nd: (0,) * _nd)

    in_specs = [pl.BlockSpec((tile, in_dim), lambda i: (i, 0))] + [const_spec(a) for a in weight_args]
    out_specs = pl.BlockSpec((tile, window * out_dim), lambda i: (i, 0))   # lane-dense output

    scratch_shapes = [pltpu.VMEM((tile, window * 3 * hid_dim), jnp.float32),   # hoisted gi (layer 0)
                      pltpu.VMEM((tile, window * hid_dim), jnp.float32)]       # last-layer h sequence
    if n_layers > 1:
        scratch_shapes += [pltpu.VMEM((window * tile, hid_dim), jnp.float32),      # inter-layer h (time-major)
                           pltpu.VMEM((window * tile, 3 * hid_dim), jnp.float32)]  # hoisted gi (layers >= 1)

    out_flat = pl.pallas_call(
        make_recon_kernel(n_layers, window, hid_dim, out_dim),
        out_shape=jax.ShapeDtypeStruct((B, window * out_dim), jnp.float32),
        grid_spec=pltpu.PrefetchScalarGridSpec(
            num_scalar_prefetch=0,
            grid=grid,
            in_specs=in_specs,
            out_specs=out_specs,
            scratch_shapes=scratch_shapes),
        compiler_params=pltpu.CompilerParams(dimension_semantics=("arbitrary",)),
    )(x, *weight_args)
    # Row-major reshape (free): out_flat[b, t*out_dim + o] == out[b, t, o]
    return out_flat.reshape(B, window, out_dim)


# ---------------- parameter construction (torch layouts) and packing ----------------

def init_raw_params(key, in_dim, hid_dim, out_dim, n_layers):
    """Random parameters in PyTorch's native layouts (gate order r|z|n)."""
    raw = {}
    keys = jax.random.split(key, 4 * n_layers + 2)
    ki = 0
    for l in range(n_layers):
        isz = in_dim if l == 0 else hid_dim
        raw[f'weight_ih_l{l}'] = jax.random.normal(keys[ki], (3 * hid_dim, isz), jnp.float32) * 0.1; ki += 1
        raw[f'weight_hh_l{l}'] = jax.random.normal(keys[ki], (3 * hid_dim, hid_dim), jnp.float32) * 0.1; ki += 1
        raw[f'bias_ih_l{l}'] = jax.random.normal(keys[ki], (3 * hid_dim,), jnp.float32) * 0.1; ki += 1
        raw[f'bias_hh_l{l}'] = jax.random.normal(keys[ki], (3 * hid_dim,), jnp.float32) * 0.1; ki += 1
    raw['fc_weight'] = jax.random.normal(keys[ki], (out_dim, hid_dim), jnp.float32) * 0.1; ki += 1
    raw['fc_bias'] = jax.random.normal(keys[ki], (out_dim,), jnp.float32) * 0.1
    return raw


def pack_params(raw, window, in_dim, hid_dim, out_dim, n_layers):
    """Host-side repack: fold repeat_interleave into the layer-0 input projection (as one
    (in, W*3H) weight), pre-fold biases, pre-transpose, block-diagonalize the FC head, bf16 casts."""
    H = hid_dim
    packed = {}

    # repeat_interleave(window, dim=1).view(B, window, -1): rep[b, t, j] = x[b, (t*in_dim + j) // window]
    idx = (jnp.arange(window)[:, None] * in_dim + jnp.arange(in_dim)[None, :]) // window       # (W, j)
    sel = (idx[:, :, None] == jnp.arange(in_dim)[None, None, :]).astype(jnp.float32)            # (W, j, i)
    wih0_t = raw['weight_ih_l0'].T                                                              # (in, 3H)
    # W_all[i, t*3H + g] = sum_{j : map(t,j)==i} W_ih[g, j]
    packed['weff0'] = jnp.einsum('tji,jg->itg', sel, wih0_t).reshape(in_dim, window * 3 * H)    # (in, W*3H)

    def gate_bias(bih, bhh):
        # Fold bhh_r, bhh_z into the hoisted gi bias; bhh_n must stay inside r*(...) -> kept separate.
        gb = jnp.concatenate([bih[:H] + bhh[:H],
                              bih[H:2 * H] + bhh[H:2 * H],
                              bih[2 * H:]], axis=0)                                             # (3H,)
        return gb, bhh[2 * H:].reshape(1, H)

    gb0, bhhn0 = gate_bias(raw['bias_ih_l0'], raw['bias_hh_l0'])
    packed['gbias0'] = jnp.tile(gb0.reshape(1, 3 * H), (1, window))                             # (1, W*3H)
    packed['bhhn0'] = bhhn0                                                                     # (1, H)
    packed['whh0'] = raw['weight_hh_l0'].T.astype(jnp.bfloat16)                                 # (H, 3H) bf16

    for l in range(1, n_layers):
        packed[f'wih{l}'] = raw[f'weight_ih_l{l}'].T                                            # (H, 3H)
        gb, bhhn = gate_bias(raw[f'bias_ih_l{l}'], raw[f'bias_hh_l{l}'])
        packed[f'gbias{l}'] = gb.reshape(1, 3 * H)
        packed[f'bhhn{l}'] = bhhn
        packed[f'whh{l}'] = raw[f'weight_hh_l{l}'].T.astype(jnp.bfloat16)

    # Block-diagonal FC head -> lane-dense (B, W*OUT) output with a single matmul + single store.
    packed['wfc_blk'] = jnp.kron(jnp.eye(window, dtype=jnp.float32),
                                 raw['fc_weight'].T).astype(jnp.bfloat16)                       # (W*H, W*OUT)
    packed['bfc_all'] = jnp.tile(raw['fc_bias'].reshape(1, -1), (1, window))                    # (1, W*OUT)
    return packed


# ---------------- pure-JAX reference (mirrors the torch forward exactly, full f32) ----------------

def reference_forward(x, raw, window, hid_dim, n_layers):
    B, in_dim = x.shape
    inp = jnp.repeat(x, window, axis=1).reshape(B, window, in_dim)    # repeat_interleave + view
    for l in range(n_layers):
        wih, whh = raw[f'weight_ih_l{l}'], raw[f'weight_hh_l{l}']
        bih, bhh = raw[f'bias_ih_l{l}'], raw[f'bias_hh_l{l}']
        h = jnp.zeros((B, hid_dim), jnp.float32)
        outs = []
        for t in range(window):
            gi = inp[:, t, :] @ wih.T + bih
            gh = h @ whh.T + bhh
            r = jax.nn.sigmoid(gi[:, :hid_dim] + gh[:, :hid_dim])
            z = jax.nn.sigmoid(gi[:, hid_dim:2 * hid_dim] + gh[:, hid_dim:2 * hid_dim])
            n = jnp.tanh(gi[:, 2 * hid_dim:] + r * gh[:, 2 * hid_dim:])
            h = (1.0 - z) * n + z * h
            outs.append(h)
        inp = jnp.stack(outs, axis=1)
    return inp @ raw['fc_weight'].T + raw['fc_bias']


if __name__ == "__main__":
    key = jax.random.PRNGKey(0)
    kp, kx = jax.random.split(key)

    raw = init_raw_params(kp, IN_DIM, HID_DIM, OUT_DIM, N_LAYERS)
    packed = pack_params(raw, WINDOW, IN_DIM, HID_DIM, OUT_DIM, N_LAYERS)

    # x is the latent h_end fed to ReconstructionModel.forward: shape (batch, in_dim)
    x = jax.random.normal(kx, (BATCH, IN_DIM), jnp.float32)

    out = reconstruction_model_pallas(x, packed, window=WINDOW, n_layers=N_LAYERS,
                                      hid_dim=HID_DIM, out_dim=OUT_DIM)
    out = jax.block_until_ready(out)

    ref = jax.block_until_ready(reference_forward(x, raw, WINDOW, HID_DIM, N_LAYERS))
    assert out.shape == (BATCH, WINDOW, OUT_DIM)
    # Tolerance loosened slightly vs pure-f32 (recurrent/FC matmul operands are bf16 per perf review).
    assert jnp.allclose(out, ref, atol=2e-2, rtol=2e-2), "Pallas output mismatch vs JAX reference"

    print("KERNEL_OK")
</pallas_src>

<mosaic_0001>
module attributes {stable_mosaic.version = 11 : i64} {
  func.func @kernel(%arg0: i32, %arg1: memref<64x32xf32, #tpu.memory_space<vmem>>, %arg2: memref<32x3072xf32, #tpu.memory_space<vmem>>, %arg3: memref<1x3072xf32, #tpu.memory_space<vmem>>, %arg4: memref<1x128xf32, #tpu.memory_space<vmem>>, %arg5: memref<128x384xbf16, #tpu.memory_space<vmem>>, %arg6: memref<1024x256xbf16, #tpu.memory_space<vmem>>, %arg7: memref<1x256xf32, #tpu.memory_space<vmem>>, %arg8: memref<64x256xf32, #tpu.memory_space<vmem>>, %arg9: memref<64x3072xf32, #tpu.memory_space<vmem>>, %arg10: memref<64x1024xf32, #tpu.memory_space<vmem>>) attributes {dimension_semantics = [#tpu.dimension_semantics<arbitrary>], iteration_bounds = array<i64: 1>, scalar_prefetch = 0 : i64, scratch_operands = 2 : i64, tpu.core_type = #tpu.core_type<tc>, window_params = [{transform_indices = @transform_0, window_bounds = array<i64: 64, 32>}, {pipeline_mode = #tpu.pipeline_mode<synchronous>, transform_indices = @transform_1, window_bounds = array<i64: 32, 3072>}, {pipeline_mode = #tpu.pipeline_mode<synchronous>, transform_indices = @transform_2, window_bounds = array<i64: 1, 3072>}, {pipeline_mode = #tpu.pipeline_mode<synchronous>, transform_indices = @transform_3, window_bounds = array<i64: 1, 128>}, {pipeline_mode = #tpu.pipeline_mode<synchronous>, transform_indices = @transform_4, window_bounds = array<i64: 128, 384>}, {pipeline_mode = #tpu.pipeline_mode<synchronous>, transform_indices = @transform_5, window_bounds = array<i64: 1024, 256>}, {pipeline_mode = #tpu.pipeline_mode<synchronous>, transform_indices = @transform_6, window_bounds = array<i64: 1, 256>}, {transform_indices = @transform_7, window_bounds = array<i64: 64, 256>}]} {
    %c0 = arith.constant 0 : index
    %c0_0 = arith.constant 0 : index
    %0 = vector.load %arg1[%c0, %c0_0] : memref<64x32xf32, #tpu.memory_space<vmem>>, vector<64x32xf32>
    %c0_1 = arith.constant 0 : index
    %c0_2 = arith.constant 0 : index
    %1 = vector.load %arg2[%c0_1, %c0_2] : memref<32x3072xf32, #tpu.memory_space<vmem>>, vector<32x3072xf32>
    %cst = arith.constant dense<0.000000e+00> : vector<64x3072xf32>
    %2 = tpu.matmul %0, %1, %cst {dimension_numbers = #tpu.dot_dimension_numbers<[1], [0], [0], [1], [0, 0, 1, 1], [], []>} : vector<64x32xf32>, vector<32x3072xf32>, vector<64x3072xf32> -> vector<64x3072xf32>
    %c0_3 = arith.constant 0 : index
    %c0_4 = arith.constant 0 : index
    %3 = vector.load %arg3[%c0_3, %c0_4] : memref<1x3072xf32, #tpu.memory_space<vmem>>, vector<1x3072xf32>
    %4 = vector.broadcast %3 : vector<1x3072xf32> to vector<64x3072xf32>
    %5 = arith.addf %2, %4 : vector<64x3072xf32>
    %c0_5 = arith.constant 0 : index
    %c0_6 = arith.constant 0 : index
    %6 = vector.load %arg9[%c0_5, %c0_6] : memref<64x3072xf32, #tpu.memory_space<vmem>>, vector<64x3072xf32>
    tpu.vector_store %arg9[%c0_5, %c0_6], %5 {strides = array<i32>} : memref<64x3072xf32, #tpu.memory_space<vmem>>, vector<64x3072xf32>,
    %c0_7 = arith.constant 0 : index
    %c0_8 = arith.constant 0 : index
    %7 = vector.load %arg5[%c0_7, %c0_8] : memref<128x384xbf16, #tpu.memory_space<vmem>>, vector<128x384xbf16>
    %c0_9 = arith.constant 0 : index
    %c0_10 = arith.constant 0 : index
    %8 = vector.load %arg4[%c0_9, %c0_10] : memref<1x128xf32, #tpu.memory_space<vmem>>, vector<1x128xf32>
    %9 = vector.shape_cast %8 : vector<1x128xf32> to vector<1x128xf32>
    %10 = vector.broadcast %9 : vector<1x128xf32> to vector<64x128xf32>
    %cst_11 = arith.constant 0.000000e+00 : f32
    %11 = vector.broadcast %cst_11 : f32 to vector<64x128xf32>
    %c0_12 = arith.constant 0 : index
    %c0_13 = arith.constant 0 : index
    %12 = vector.load %arg9[%c0_12, %c0_13] : memref<64x3072xf32, #tpu.memory_space<vmem>>, vector<64x384xf32>
    %13 = arith.truncf %11 : vector<64x128xf32> to vector<64x128xbf16>
    %cst_14 = arith.constant dense<0.000000e+00> : vector<64x384xf32>
    %14 = tpu.matmul %13, %7, %cst_14 {dimension_numbers = #tpu.dot_dimension_numbers<[1], [0], [0], [1], [0, 0, 1, 1], [], []>} : vector<64x128xbf16>, vector<128x384xbf16>, vector<64x384xf32> -> vector<64x384xf32>
    %15 = vector.extract_strided_slice %12 {offsets = [0, 0], sizes = [64, 128], strides = [1, 1]} : vector<64x384xf32> to vector<64x128xf32>
    %16 = vector.extract_strided_slice %14 {offsets = [0, 0], sizes = [64, 128], strides = [1, 1]} : vector<64x384xf32> to vector<64x128xf32>
    %17 = arith.addf %15, %16 : vector<64x128xf32>
    %cst_15 = arith.constant 5.000000e-01 : f32
    %18 = vector.broadcast %cst_15 : f32 to vector<64x128xf32>
    %19 = arith.mulf %18, %17 : vector<64x128xf32>
    %20 = math.tanh %19 : vector<64x128xf32>
    %cst_16 = arith.constant 5.000000e-01 : f32
    %21 = vector.broadcast %cst_16 : f32 to vector<64x128xf32>
    %22 = arith.mulf %21, %20 : vector<64x128xf32>
    %cst_17 = arith.constant 5.000000e-01 : f32
    %23 = vector.broadcast %cst_17 : f32 to vector<64x128xf32>
    %24 = arith.addf %22, %23 : vector<64x128xf32>
    %25 = vector.extract_strided_slice %12 {offsets = [0, 128], sizes = [64, 128], strides = [1, 1]} : vector<64x384xf32> to vector<64x128xf32>
    %26 = vector.extract_strided_slice %14 {offsets = [0, 128], sizes = [64, 128], strides = [1, 1]} : vector<64x384xf32> to vector<64x128xf32>
    %27 = arith.addf %25, %26 : vector<64x128xf32>
    %cst_18 = arith.constant 5.000000e-01 : f32
    %28 = vector.broadcast %cst_18 : f32 to vector<64x128xf32>
    %29 = arith.mulf %28, %27 : vector<64x128xf32>
    %30 = math.tanh %29 : vector<64x128xf32>
    %cst_19 = arith.constant 5.000000e-01 : f32
    %31 = vector.broadcast %cst_19 : f32 to vector<64x128xf32>
    %32 = arith.mulf %31, %30 : vector<64x128xf32>
    %cst_20 = arith.constant 5.000000e-01 : f32
    %33 = vector.broadcast %cst_20 : f32 to vector<64x128xf32>
    %34 = arith.addf %32, %33 : vector<64x128xf32>
    %35 = vector.extract_strided_slice %12 {offsets = [0, 256], sizes = [64, 128], strides = [1, 1]} : vector<64x384xf32> to vector<64x128xf32>
    %36 = vector.extract_strided_slice %14 {offsets = [0, 256], sizes = [64, 128], strides = [1, 1]} : vector<64x384xf32> to vector<64x128xf32>
    %37 = arith.addf %36, %10 : vector<64x128xf32>
    %38 = arith.mulf %24, %37 : vector<64x128xf32>
    %39 = arith.addf %35, %38 : vector<64x128xf32>
    %40 = math.tanh %39 : vector<64x128xf32>
    %cst_21 = arith.constant 1.000000e+00 : f32
    %41 = vector.broadcast %cst_21 : f32 to vector<64x128xf32>
    %42 = arith.subf %41, %34 : vector<64x128xf32>
    %43 = arith.mulf %42, %40 : vector<64x128xf32>
    %44 = arith.mulf %34, %11 : vector<64x128xf32>
    %45 = arith.addf %43, %44 : vector<64x128xf32>
    %c0_22 = arith.constant 0 : index
    %c0_23 = arith.constant 0 : index
    %46 = vector.load %arg10[%c0_22, %c0_23] : memref<64x1024xf32, #tpu.memory_space<vmem>>, vector<64x128xf32>
    tpu.vector_store %arg10[%c0_22, %c0_23], %45 {strides = array<i32>} : memref<64x1024xf32, #tpu.memory_space<vmem>>, vector<64x128xf32>,
    %c0_24 = arith.constant 0 : index
    %c384 = arith.constant 384 : index
    %47 = vector.load %arg9[%c0_24, %c384] : memref<64x3072xf32, #tpu.memory_space<vmem>>, vector<64x384xf32>
    %48 = arith.truncf %45 : vector<64x128xf32> to vector<64x128xbf16>
    %cst_25 = arith.constant dense<0.000000e+00> : vector<64x384xf32>
    %49 = tpu.matmul %48, %7, %cst_25 {dimension_numbers = #tpu.dot_dimension_numbers<[1], [0], [0], [1], [0, 0, 1, 1], [], []>} : vector<64x128xbf16>, vector<128x384xbf16>, vector<64x384xf32> -> vector<64x384xf32>
    %50 = vector.extract_strided_slice %47 {offsets = [0, 0], sizes = [64, 128], strides = [1, 1]} : vector<64x384xf32> to vector<64x128xf32>
    %51 = vector.extract_strided_slice %49 {offsets = [0, 0], sizes = [64, 128], strides = [1, 1]} : vector<64x384xf32> to vector<64x128xf32>
    %52 = arith.addf %50, %51 : vector<64x128xf32>
    %cst_26 = arith.constant 5.000000e-01 : f32
    %53 = vector.broadcast %cst_26 : f32 to vector<64x128xf32>
    %54 = arith.mulf %53, %52 : vector<64x128xf32>
    %55 = math.tanh %54 : vector<64x128xf32>
    %cst_27 = arith.constant 5.000000e-01 : f32
    %56 = vector.broadcast %cst_27 : f32 to vector<64x128xf32>
    %57 = arith.mulf %56, %55 : vector<64x128xf32>
    %cst_28 = arith.constant 5.000000e-01 : f32
    %58 = vector.broadcast %cst_28 : f32 to vector<64x128xf32>
    %59 = arith.addf %57, %58 : vector<64x128xf32>
    %60 = vector.extract_strided_slice %47 {offsets = [0, 128], sizes = [64, 128], strides = [1, 1]} : vector<64x384xf32> to vector<64x128xf32>
    %61 = vector.extract_strided_slice %49 {offsets = [0, 128], sizes = [64, 128], strides = [1, 1]} : vector<64x384xf32> to vector<64x128xf32>
    %62 = arith.addf %60, %61 : vector<64x128xf32>
    %cst_29 = arith.constant 5.000000e-01 : f32
    %63 = vector.broadcast %cst_29 : f32 to vector<64x128xf32>
    %64 = arith.mulf %63, %62 : vector<64x128xf32>
    %65 = math.tanh %64 : vector<64x128xf32>
    %cst_30 = arith.constant 5.000000e-01 : f32
    %66 = vector.broadcast %cst_30 : f32 to vector<64x128xf32>
    %67 = arith.mulf %66, %65 : vector<64x128xf32>
    %cst_31 = arith.constant 5.000000e-01 : f32
    %68 = vector.broadcast %cst_31 : f32 to vector<64x128xf32>
    %69 = arith.addf %67, %68 : vector<64x128xf32>
    %70 = vector.extract_strided_slice %47 {offsets = [0, 256], sizes = [64, 128], strides = [1, 1]} : vector<64x384xf32> to vector<64x128xf32>
    %71 = vector.extract_strided_slice %49 {offsets = [0, 256], sizes = [64, 128], strides = [1, 1]} : vector<64x384xf32> to vector<64x128xf32>
    %72 = arith.addf %71, %10 : vector<64x128xf32>
    %73 = arith.mulf %59, %72 : vector<64x128xf32>
    %74 = arith.addf %70, %73 : vector<64x128xf32>
    %75 = math.tanh %74 : vector<64x128xf32>
    %cst_32 = arith.constant 1.000000e+00 : f32
    %76 = vector.broadcast %cst_32 : f32 to vector<64x128xf32>
    %77 = arith.subf %76, %69 : vector<64x128xf32>
    %78 = arith.mulf %77, %75 : vector<64x128xf32>
    %79 = arith.mulf %69, %45 : vector<64x128xf32>
    %80 = arith.addf %78, %79 : vector<64x128xf32>
    %c0_33 = arith.constant 0 : index
    %c128 = arith.constant 128 : index
    %81 = vector.load %arg10[%c0_33, %c128] : memref<64x1024xf32, #tpu.memory_space<vmem>>, vector<64x128xf32>
    tpu.vector_store %arg10[%c0_33, %c128], %80 {strides = array<i32>} : memref<64x1024xf32, #tpu.memory_space<vmem>>, vector<64x128xf32>,
    %c0_34 = arith.constant 0 : index
    %c768 = arith.constant 768 : index
    %82 = vector.load %arg9[%c0_34, %c768] : memref<64x3072xf32, #tpu.memory_space<vmem>>, vector<64x384xf32>
    %83 = arith.truncf %80 : vector<64x128xf32> to vector<64x128xbf16>
    %cst_35 = arith.constant dense<0.000000e+00> : vector<64x384xf32>
    %84 = tpu.matmul %83, %7, %cst_35 {dimension_numbers = #tpu.dot_dimension_numbers<[1], [0], [0], [1], [0, 0, 1, 1], [], []>} : vector<64x128xbf16>, vector<128x384xbf16>, vector<64x384xf32> -> vector<64x384xf32>
    %85 = vector.extract_strided_slice %82 {offsets = [0, 0], sizes = [64, 128], strides = [1, 1]} : vector<64x384xf32> to vector<64x128xf32>
    %86 = vector.extract_strided_slice %84 {offsets = [0, 0], sizes = [64, 128], strides = [1, 1]} : vector<64x384xf32> to vector<64x128xf32>
    %87 = arith.addf %85, %86 : vector<64x128xf32>
    %cst_36 = arith.constant 5.000000e-01 : f32
    %88 = vector.broadcast %cst_36 : f32 to vector<64x128xf32>
    %89 = arith.mulf %88, %87 : vector<64x128xf32>
    %90 = math.tanh %89 : vector<64x128xf32>
    %cst_37 = arith.constant 5.000000e-01 : f32
    %91 = vector.broadcast %cst_37 : f32 to vector<64x128xf32>
    %92 = arith.mulf %91, %90 : vector<64x128xf32>
    %cst_38 = arith.constant 5.000000e-01 : f32
    %93 = vector.broadcast %cst_38 : f32 to vector<64x128xf32>
    %94 = arith.addf %92, %93 : vector<64x128xf32>
    %95 = vector.extract_strided_slice %82 {offsets = [0, 128], sizes = [64, 128], strides = [1, 1]} : vector<64x384xf32> to vector<64x128xf32>
    %96 = vector.extract_strided_slice %84 {offsets = [0, 128], sizes = [64, 128], strides = [1, 1]} : vector<64x384xf32> to vector<64x128xf32>
    %97 = arith.addf %95, %96 : vector<64x128xf32>
    %cst_39 = arith.constant 5.000000e-01 : f32
    %98 = vector.broadcast %cst_39 : f32 to vector<64x128xf32>
    %99 = arith.mulf %98, %97 : vector<64x128xf32>
    %100 = math.tanh %99 : vector<64x128xf32>
    %cst_40 = arith.constant 5.000000e-01 : f32
    %101 = vector.broadcast %cst_40 : f32 to vector<64x128xf32>
    %102 = arith.mulf %101, %100 : vector<64x128xf32>
    %cst_41 = arith.constant 5.000000e-01 : f32
    %103 = vector.broadcast %cst_41 : f32 to vector<64x128xf32>
    %104 = arith.addf %102, %103 : vector<64x128xf32>
    %105 = vector.extract_strided_slice %82 {offsets = [0, 256], sizes = [64, 128], strides = [1, 1]} : vector<64x384xf32> to vector<64x128xf32>
    %106 = vector.extract_strided_slice %84 {offsets = [0, 256], sizes = [64, 128], strides = [1, 1]} : vector<64x384xf32> to vector<64x128xf32>
    %107 = arith.addf %106, %10 : vector<64x128xf32>
    %108 = arith.mulf %94, %107 : vector<64x128xf32>
    %109 = arith.addf %105, %108 : vector<64x128xf32>
    %110 = math.tanh %109 : vector<64x128xf32>
    %cst_42 = arith.constant 1.000000e+00 : f32
    %111 = vector.broadcast %cst_42 : f32 to vector<64x128xf32>
    %112 = arith.subf %111, %104 : vector<64x128xf32>
    %113 = arith.mulf %112, %110 : vector<64x128xf32>
    %114 = arith.mulf %104, %80 : vector<64x128xf32>
    %115 = arith.addf %113, %114 : vector<64x128xf32>
    %c0_43 = arith.constant 0 : index
    %c256 = arith.constant 256 : index
    %116 = vector.load %arg10[%c0_43, %c256] : memref<64x1024xf32, #tpu.memory_space<vmem>>, vector<64x128xf32>
    tpu.vector_store %arg10[%c0_43, %c256], %115 {strides = array<i32>} : memref<64x1024xf32, #tpu.memory_space<vmem>>, vector<64x128xf32>,
    %c0_44 = arith.constant 0 : index
    %c1152 = arith.constant 1152 : index
    %117 = vector.load %arg9[%c0_44, %c1152] : memref<64x3072xf32, #tpu.memory_space<vmem>>, vector<64x384xf32>
    %118 = arith.truncf %115 : vector<64x128xf32> to vector<64x128xbf16>
    %cst_45 = arith.constant dense<0.000000e+00> : vector<64x384xf32>
    %119 = tpu.matmul %118, %7, %cst_45 {dimension_numbers = #tpu.dot_dimension_numbers<[1], [0], [0], [1], [0, 0, 1, 1], [], []>} : vector<64x128xbf16>, vector<128x384xbf16>, vector<64x384xf32> -> vector<64x384xf32>
    %120 = vector.extract_strided_slice %117 {offsets = [0, 0], sizes = [64, 128], strides = [1, 1]} : vector<64x384xf32> to vector<64x128xf32>
    %121 = vector.extract_strided_slice %119 {offsets = [0, 0], sizes = [64, 128], strides = [1, 1]} : vector<64x384xf32> to vector<64x128xf32>
    %122 = arith.addf %120, %121 : vector<64x128xf32>
    %cst_46 = arith.constant 5.000000e-01 : f32
    %123 = vector.broadcast %cst_46 : f32 to vector<64x128xf32>
    %124 = arith.mulf %123, %122 : vector<64x128xf32>
    %125 = math.tanh %124 : vector<64x128xf32>
    %cst_47 = arith.constant 5.000000e-01 : f32
    %126 = vector.broadcast %cst_47 : f32 to vector<64x128xf32>
    %127 = arith.mulf %126, %125 : vector<64x128xf32>
    %cst_48 = arith.constant 5.000000e-01 : f32
    %128 = vector.broadcast %cst_48 : f32 to vector<64x128xf32>
    %129 = arith.addf %127, %128 : vector<64x128xf32>
    %130 = vector.extract_strided_slice %117 {offsets = [0, 128], sizes = [64, 128], strides = [1, 1]} : vector<64x384xf32> to vector<64x128xf32>
    %131 = vector.extract_strided_slice %119 {offsets = [0, 128], sizes = [64, 128], strides = [1, 1]} : vector<64x384xf32> to vector<64x128xf32>
    %132 = arith.addf %130, %131 : vector<64x128xf32>
    %cst_49 = arith.constant 5.000000e-01 : f32
    %133 = vector.broadcast %cst_49 : f32 to vector<64x128xf32>
    %134 = arith.mulf %133, %132 : vector<64x128xf32>
    %135 = math.tanh %134 : vector<64x128xf32>
    %cst_50 = arith.constant 5.000000e-01 : f32
    %136 = vector.broadcast %cst_50 : f32 to vector<64x128xf32>
    %137 = arith.mulf %136, %135 : vector<64x128xf32>
    %cst_51 = arith.constant 5.000000e-01 : f32
    %138 = vector.broadcast %cst_51 : f32 to vector<64x128xf32>
    %139 = arith.addf %137, %138 : vector<64x128xf32>
    %140 = vector.extract_strided_slice %117 {offsets = [0, 256], sizes = [64, 128], strides = [1, 1]} : vector<64x384xf32> to vector<64x128xf32>
    %141 = vector.extract_strided_slice %119 {offsets = [0, 256], sizes = [64, 128], strides = [1, 1]} : vector<64x384xf32> to vector<64x128xf32>
    %142 = arith.addf %141, %10 : vector<64x128xf32>
    %143 = arith.mulf %129, %142 : vector<64x128xf32>
    %144 = arith.addf %140, %143 : vector<64x128xf32>
    %145 = math.tanh %144 : vector<64x128xf32>
    %cst_52 = arith.constant 1.000000e+00 : f32
    %146 = vector.broadcast %cst_52 : f32 to vector<64x128xf32>
    %147 = arith.subf %146, %139 : vector<64x128xf32>
    %148 = arith.mulf %147, %145 : vector<64x128xf32>
    %149 = arith.mulf %139, %115 : vector<64x128xf32>
    %150 = arith.addf %148, %149 : vector<64x128xf32>
    %c0_53 = arith.constant 0 : index
    %c384_54 = arith.constant 384 : index
    %151 = vector.load %arg10[%c0_53, %c384_54] : memref<64x1024xf32, #tpu.memory_space<vmem>>, vector<64x128xf32>
    tpu.vector_store %arg10[%c0_53, %c384_54], %150 {strides = array<i32>} : memref<64x1024xf32, #tpu.memory_space<vmem>>, vector<64x128xf32>,
    %c0_55 = arith.constant 0 : index
    %c1536 = arith.constant 1536 : index
    %152 = vector.load %arg9[%c0_55, %c1536] : memref<64x3072xf32, #tpu.memory_space<vmem>>, vector<64x384xf32>
    %153 = arith.truncf %150 : vector<64x128xf32> to vector<64x128xbf16>
    %cst_56 = arith.constant dense<0.000000e+00> : vector<64x384xf32>
    %154 = tpu.matmul %153, %7, %cst_56 {dimension_numbers = #tpu.dot_dimension_numbers<[1], [0], [0], [1], [0, 0, 1, 1], [], []>} : vector<64x128xbf16>, vector<128x384xbf16>, vector<64x384xf32> -> vector<64x384xf32>
    %155 = vector.extract_strided_slice %152 {offsets = [0, 0], sizes = [64, 128], strides = [1, 1]} : vector<64x384xf32> to vector<64x128xf32>
    %156 = vector.extract_strided_slice %154 {offsets = [0, 0], sizes = [64, 128], strides = [1, 1]} : vector<64x384xf32> to vector<64x128xf32>
    %157 = arith.addf %155, %156 : vector<64x128xf32>
    %cst_57 = arith.constant 5.000000e-01 : f32
    %158 = vector.broadcast %cst_57 : f32 to vector<64x128xf32>
    %159 = arith.mulf %158, %157 : vector<64x128xf32>
    %160 = math.tanh %159 : vector<64x128xf32>
    %cst_58 = arith.constant 5.000000e-01 : f32
    %161 = vector.broadcast %cst_58 : f32 to vector<64x128xf32>
    %162 = arith.mulf %161, %160 : vector<64x128xf32>
    %cst_59 = arith.constant 5.000000e-01 : f32
    %163 = vector.broadcast %cst_59 : f32 to vector<64x128xf32>
    %164 = arith.addf %162, %163 : vector<64x128xf32>
    %165 = vector.extract_strided_slice %152 {offsets = [0, 128], sizes = [64, 128], strides = [1, 1]} : vector<64x384xf32> to vector<64x128xf32>
    %166 = vector.extract_strided_slice %154 {offsets = [0, 128], sizes = [64, 128], strides = [1, 1]} : vector<64x384xf32> to vector<64x128xf32>
    %167 = arith.addf %165, %166 : vector<64x128xf32>
    %cst_60 = arith.constant 5.000000e-01 : f32
    %168 = vector.broadcast %cst_60 : f32 to vector<64x128xf32>
    %169 = arith.mulf %168, %167 : vector<64x128xf32>
    %170 = math.tanh %169 : vector<64x128xf32>
    %cst_61 = arith.constant 5.000000e-01 : f32
    %171 = vector.broadcast %cst_61 : f32 to vector<64x128xf32>
    %172 = arith.mulf %171, %170 : vector<64x128xf32>
    %cst_62 = arith.constant 5.000000e-01 : f32
    %173 = vector.broadcast %cst_62 : f32 to vector<64x128xf32>
    %174 = arith.addf %172, %173 : vector<64x128xf32>
    %175 = vector.extract_strided_slice %152 {offsets = [0, 256], sizes = [64, 128], strides = [1, 1]} : vector<64x384xf32> to vector<64x128xf32>
    %176 = vector.extract_strided_slice %154 {offsets = [0, 256], sizes = [64, 128], strides = [1, 1]} : vector<64x384xf32> to vector<64x128xf32>
    %177 = arith.addf %176, %10 : vector<64x128xf32>
    %178 = arith.mulf %164, %177 : vector<64x128xf32>
    %179 = arith.addf %175, %178 : vector<64x128xf32>
    %180 = math.tanh %179 : vector<64x128xf32>
    %cst_63 = arith.constant 1.000000e+00 : f32
    %181 = vector.broadcast %cst_63 : f32 to vector<64x128xf32>
    %182 = arith.subf %181, %174 : vector<64x128xf32>
    %183 = arith.mulf %182, %180 : vector<64x128xf32>
    %184 = arith.mulf %174, %150 : vector<64x128xf32>
    %185 = arith.addf %183, %184 : vector<64x128xf32>
    %c0_64 = arith.constant 0 : index
    %c512 = arith.constant 512 : index
    %186 = vector.load %arg10[%c0_64, %c512] : memref<64x1024xf32, #tpu.memory_space<vmem>>, vector<64x128xf32>
    tpu.vector_store %arg10[%c0_64, %c512], %185 {strides = array<i32>} : memref<64x1024xf32, #tpu.memory_space<vmem>>, vector<64x128xf32>,
    %c0_65 = arith.constant 0 : index
    %c1920 = arith.constant 1920 : index
    %187 = vector.load %arg9[%c0_65, %c1920] : memref<64x3072xf32, #tpu.memory_space<vmem>>, vector<64x384xf32>
    %188 = arith.truncf %185 : vector<64x128xf32> to vector<64x128xbf16>
    %cst_66 = arith.constant dense<0.000000e+00> : vector<64x384xf32>
    %189 = tpu.matmul %188, %7, %cst_66 {dimension_numbers = #tpu.dot_dimension_numbers<[1], [0], [0], [1], [0, 0, 1, 1], [], []>} : vector<64x128xbf16>, vector<128x384xbf16>, vector<64x384xf32> -> vector<64x384xf32>
    %190 = vector.extract_strided_slice %187 {offsets = [0, 0], sizes = [64, 128], strides = [1, 1]} : vector<64x384xf32> to vector<64x128xf32>
    %191 = vector.extract_strided_slice %189 {offsets = [0, 0], sizes = [64, 128], strides = [1, 1]} : vector<64x384xf32> to vector<64x128xf32>
    %192 = arith.addf %190, %191 : vector<64x128xf32>
    %cst_67 = arith.constant 5.000000e-01 : f32
    %193 = vector.broadcast %cst_67 : f32 to vector<64x128xf32>
    %194 = arith.mulf %193, %192 : vector<64x128xf32>
    %195 = math.tanh %194 : vector<64x128xf32>
    %cst_68 = arith.constant 5.000000e-01 : f32
    %196 = vector.broadcast %cst_68 : f32 to vector<64x128xf32>
    %197 = arith.mulf %196, %195 : vector<64x128xf32>
    %cst_69 = arith.constant 5.000000e-01 : f32
    %198 = vector.broadcast %cst_69 : f32 to vector<64x128xf32>
    %199 = arith.addf %197, %198 : vector<64x128xf32>
    %200 = vector.extract_strided_slice %187 {offsets = [0, 128], sizes = [64, 128], strides = [1, 1]} : vector<64x384xf32> to vector<64x128xf32>
    %201 = vector.extract_strided_slice %189 {offsets = [0, 128], sizes = [64, 128], strides = [1, 1]} : vector<64x384xf32> to vector<64x128xf32>
    %202 = arith.addf %200, %201 : vector<64x128xf32>
    %cst_70 = arith.constant 5.000000e-01 : f32
    %203 = vector.broadcast %cst_70 : f32 to vector<64x128xf32>
    %204 = arith.mulf %203, %202 : vector<64x128xf32>
    %205 = math.tanh %204 : vector<64x128xf32>
    %cst_71 = arith.constant 5.000000e-01 : f32
    %206 = vector.broadcast %cst_71 : f32 to vector<64x128xf32>
    %207 = arith.mulf %206, %205 : vector<64x128xf32>
    %cst_72 = arith.constant 5.000000e-01 : f32
    %208 = vector.broadcast %cst_72 : f32 to vector<64x128xf32>
    %209 = arith.addf %207, %208 : vector<64x128xf32>
    %210 = vector.extract_strided_slice %187 {offsets = [0, 256], sizes = [64, 128], strides = [1, 1]} : vector<64x384xf32> to vector<64x128xf32>
    %211 = vector.extract_strided_slice %189 {offsets = [0, 256], sizes = [64, 128], strides = [1, 1]} : vector<64x384xf32> to vector<64x128xf32>
    %212 = arith.addf %211, %10 : vector<64x128xf32>
    %213 = arith.mulf %199, %212 : vector<64x128xf32>
    %214 = arith.addf %210, %213 : vector<64x128xf32>
    %215 = math.tanh %214 : vector<64x128xf32>
    %cst_73 = arith.constant 1.000000e+00 : f32
    %216 = vector.broadcast %cst_73 : f32 to vector<64x128xf32>
    %217 = arith.subf %216, %209 : vector<64x128xf32>
    %218 = arith.mulf %217, %215 : vector<64x128xf32>
    %219 = arith.mulf %209, %185 : vector<64x128xf32>
    %220 = arith.addf %218, %219 : vector<64x128xf32>
    %c0_74 = arith.constant 0 : index
    %c640 = arith.constant 640 : index
    %221 = vector.load %arg10[%c0_74, %c640] : memref<64x1024xf32, #tpu.memory_space<vmem>>, vector<64x128xf32>
    tpu.vector_store %arg10[%c0_74, %c640], %220 {strides = array<i32>} : memref<64x1024xf32, #tpu.memory_space<vmem>>, vector<64x128xf32>,
    %c0_75 = arith.constant 0 : index
    %c2304 = arith.constant 2304 : index
    %222 = vector.load %arg9[%c0_75, %c2304] : memref<64x3072xf32, #tpu.memory_space<vmem>>, vector<64x384xf32>
    %223 = arith.truncf %220 : vector<64x128xf32> to vector<64x128xbf16>
    %cst_76 = arith.constant dense<0.000000e+00> : vector<64x384xf32>
    %224 = tpu.matmul %223, %7, %cst_76 {dimension_numbers = #tpu.dot_dimension_numbers<[1], [0], [0], [1], [0, 0, 1, 1], [], []>} : vector<64x128xbf16>, vector<128x384xbf16>, vector<64x384xf32> -> vector<64x384xf32>
    %225 = vector.extract_strided_slice %222 {offsets = [0, 0], sizes = [64, 128], strides = [1, 1]} : vector<64x384xf32> to vector<64x128xf32>
    %226 = vector.extract_strided_slice %224 {offsets = [0, 0], sizes = [64, 128], strides = [1, 1]} : vector<64x384xf32> to vector<64x128xf32>
    %227 = arith.addf %225, %226 : vector<64x128xf32>
    %cst_77 = arith.constant 5.000000e-01 : f32
    %228 = vector.broadcast %cst_77 : f32 to vector<64x128xf32>
    %229 = arith.mulf %228, %227 : vector<64x128xf32>
    %230 = math.tanh %229 : vector<64x128xf32>
    %cst_78 = arith.constant 5.000000e-01 : f32
    %231 = vector.broadcast %cst_78 : f32 to vector<64x128xf32>
    %232 = arith.mulf %231, %230 : vector<64x128xf32>
    %cst_79 = arith.constant 5.000000e-01 : f32
    %233 = vector.broadcast %cst_79 : f32 to vector<64x128xf32>
    %234 = arith.addf %232, %233 : vector<64x128xf32>
    %235 = vector.extract_strided_slice %222 {offsets = [0, 128], sizes = [64, 128], strides = [1, 1]} : vector<64x384xf32> to vector<64x128xf32>
    %236 = vector.extract_strided_slice %224 {offsets = [0, 128], sizes = [64, 128], strides = [1, 1]} : vector<64x384xf32> to vector<64x128xf32>
    %237 = arith.addf %235, %236 : vector<64x128xf32>
    %cst_80 = arith.constant 5.000000e-01 : f32
    %238 = vector.broadcast %cst_80 : f32 to vector<64x128xf32>
    %239 = arith.mulf %238, %237 : vector<64x128xf32>
    %240 = math.tanh %239 : vector<64x128xf32>
    %cst_81 = arith.constant 5.000000e-01 : f32
    %241 = vector.broadcast %cst_81 : f32 to vector<64x128xf32>
    %242 = arith.mulf %241, %240 : vector<64x128xf32>
    %cst_82 = arith.constant 5.000000e-01 : f32
    %243 = vector.broadcast %cst_82 : f32 to vector<64x128xf32>
    %244 = arith.addf %242, %243 : vector<64x128xf32>
    %245 = vector.extract_strided_slice %222 {offsets = [0, 256], sizes = [64, 128], strides = [1, 1]} : vector<64x384xf32> to vector<64x128xf32>
    %246 = vector.extract_strided_slice %224 {offsets = [0, 256], sizes = [64, 128], strides = [1, 1]} : vector<64x384xf32> to vector<64x128xf32>
    %247 = arith.addf %246, %10 : vector<64x128xf32>
    %248 = arith.mulf %234, %247 : vector<64x128xf32>
    %249 = arith.addf %245, %248 : vector<64x128xf32>
    %250 = math.tanh %249 : vector<64x128xf32>
    %cst_83 = arith.constant 1.000000e+00 : f32
    %251 = vector.broadcast %cst_83 : f32 to vector<64x128xf32>
    %252 = arith.subf %251, %244 : vector<64x128xf32>
    %253 = arith.mulf %252, %250 : vector<64x128xf32>
    %254 = arith.mulf %244, %220 : vector<64x128xf32>
    %255 = arith.addf %253, %254 : vector<64x128xf32>
    %c0_84 = arith.constant 0 : index
    %c768_85 = arith.constant 768 : index
    %256 = vector.load %arg10[%c0_84, %c768_85] : memref<64x1024xf32, #tpu.memory_space<vmem>>, vector<64x128xf32>
    tpu.vector_store %arg10[%c0_84, %c768_85], %255 {strides = array<i32>} : memref<64x1024xf32, #tpu.memory_space<vmem>>, vector<64x128xf32>,
    %c0_86 = arith.constant 0 : index
    %c2688 = arith.constant 2688 : index
    %257 = vector.load %arg9[%c0_86, %c2688] : memref<64x3072xf32, #tpu.memory_space<vmem>>, vector<64x384xf32>
    %258 = arith.truncf %255 : vector<64x128xf32> to vector<64x128xbf16>
    %cst_87 = arith.constant dense<0.000000e+00> : vector<64x384xf32>
    %259 = tpu.matmul %258, %7, %cst_87 {dimension_numbers = #tpu.dot_dimension_numbers<[1], [0], [0], [1], [0, 0, 1, 1], [], []>} : vector<64x128xbf16>, vector<128x384xbf16>, vector<64x384xf32> -> vector<64x384xf32>
    %260 = vector.extract_strided_slice %257 {offsets = [0, 0], sizes = [64, 128], strides = [1, 1]} : vector<64x384xf32> to vector<64x128xf32>
    %261 = vector.extract_strided_slice %259 {offsets = [0, 0], sizes = [64, 128], strides = [1, 1]} : vector<64x384xf32> to vector<64x128xf32>
    %262 = arith.addf %260, %261 : vector<64x128xf32>
    %cst_88 = arith.constant 5.000000e-01 : f32
    %263 = vector.broadcast %cst_88 : f32 to vector<64x128xf32>
    %264 = arith.mulf %263, %262 : vector<64x128xf32>
    %265 = math.tanh %264 : vector<64x128xf32>
    %cst_89 = arith.constant 5.000000e-01 : f32
    %266 = vector.broadcast %cst_89 : f32 to vector<64x128xf32>
    %267 = arith.mulf %266, %265 : vector<64x128xf32>
    %cst_90 = arith.constant 5.000000e-01 : f32
    %268 = vector.broadcast %cst_90 : f32 to vector<64x128xf32>
    %269 = arith.addf %267, %268 : vector<64x128xf32>
    %270 = vector.extract_strided_slice %257 {offsets = [0, 128], sizes = [64, 128], strides = [1, 1]} : vector<64x384xf32> to vector<64x128xf32>
    %271 = vector.extract_strided_slice %259 {offsets = [0, 128], sizes = [64, 128], strides = [1, 1]} : vector<64x384xf32> to vector<64x128xf32>
    %272 = arith.addf %270, %271 : vector<64x128xf32>
    %cst_91 = arith.constant 5.000000e-01 : f32
    %273 = vector.broadcast %cst_91 : f32 to vector<64x128xf32>
    %274 = arith.mulf %273, %272 : vector<64x128xf32>
    %275 = math.tanh %274 : vector<64x128xf32>
    %cst_92 = arith.constant 5.000000e-01 : f32
    %276 = vector.broadcast %cst_92 : f32 to vector<64x128xf32>
    %277 = arith.mulf %276, %275 : vector<64x128xf32>
    %cst_93 = arith.constant 5.000000e-01 : f32
    %278 = vector.broadcast %cst_93 : f32 to vector<64x128xf32>
    %279 = arith.addf %277, %278 : vector<64x128xf32>
    %280 = vector.extract_strided_slice %257 {offsets = [0, 256], sizes = [64, 128], strides = [1, 1]} : vector<64x384xf32> to vector<64x128xf32>
    %281 = vector.extract_strided_slice %259 {offsets = [0, 256], sizes = [64, 128], strides = [1, 1]} : vector<64x384xf32> to vector<64x128xf32>
    %282 = arith.addf %281, %10 : vector<64x128xf32>
    %283 = arith.mulf %269, %282 : vector<64x128xf32>
    %284 = arith.addf %280, %283 : vector<64x128xf32>
    %285 = math.tanh %284 : vector<64x128xf32>
    %cst_94 = arith.constant 1.000000e+00 : f32
    %286 = vector.broadcast %cst_94 : f32 to vector<64x128xf32>
    %287 = arith.subf %286, %279 : vector<64x128xf32>
    %288 = arith.mulf %287, %285 : vector<64x128xf32>
    %289 = arith.mulf %279, %255 : vector<64x128xf32>
    %290 = arith.addf %288, %289 : vector<64x128xf32>
    %c0_95 = arith.constant 0 : index
    %c896 = arith.constant 896 : index
    %291 = vector.load %arg10[%c0_95, %c896] : memref<64x1024xf32, #tpu.memory_space<vmem>>, vector<64x128xf32>
    tpu.vector_store %arg10[%c0_95, %c896], %290 {strides = array<i32>} : memref<64x1024xf32, #tpu.memory_space<vmem>>, vector<64x128xf32>,
    %c0_96 = arith.constant 0 : index
    %c0_97 = arith.constant 0 : index
    %292 = vector.load %arg10[%c0_96, %c0_97] : memref<64x1024xf32, #tpu.memory_space<vmem>>, vector<64x1024xf32>
    %293 = arith.truncf %292 : vector<64x1024xf32> to vector<64x1024xbf16>
    %c0_98 = arith.constant 0 : index
    %c0_99 = arith.constant 0 : index
    %294 = vector.load %arg6[%c0_98, %c0_99] : memref<1024x256xbf16, #tpu.memory_space<vmem>>, vector<1024x256xbf16>
    %cst_100 = arith.constant dense<0.000000e+00> : vector<64x256xf32>
    %295 = tpu.matmul %293, %294, %cst_100 {dimension_numbers = #tpu.dot_dimension_numbers<[1], [0], [0], [1], [0, 0, 1, 1], [], []>} : vector<64x1024xbf16>, vector<1024x256xbf16>, vector<64x256xf32> -> vector<64x256xf32>
    %c0_101 = arith.constant 0 : index
    %c0_102 = arith.constant 0 : index
    %296 = vector.load %arg7[%c0_101, %c0_102] : memref<1x256xf32, #tpu.memory_space<vmem>>, vector<1x256xf32>
    %297 = vector.broadcast %296 : vector<1x256xf32> to vector<64x256xf32>
    %298 = arith.addf %295, %297 : vector<64x256xf32>
    %c0_103 = arith.constant 0 : index
    %c0_104 = arith.constant 0 : index
    %299 = vector.load %arg8[%c0_103, %c0_104] : memref<64x256xf32, #tpu.memory_space<vmem>>, vector<64x256xf32>
    tpu.vector_store %arg8[%c0_103, %c0_104], %298 {strides = array<i32>} : memref<64x256xf32, #tpu.memory_space<vmem>>, vector<64x256xf32>,
    return
  }
  func.func @transform_0(%arg0: i32) -> (i32, i32) {
    %c0_i32 = arith.constant 0 : i32
    %c0_i32_0 = arith.constant 0 : i32
    return %arg0, %c0_i32 : i32, i32
  }
  func.func @transform_1(%arg0: i32) -> (i32, i32) {
    %c0_i32 = arith.constant 0 : i32
    %c0_i32_0 = arith.constant 0 : i32
    %c0_i32_1 = arith.constant 0 : i32
    return %c0_i32, %c0_i32_0 : i32, i32
  }
  func.func @transform_2(%arg0: i32) -> (i32, i32) {
    %c0_i32 = arith.constant 0 : i32
    %c0_i32_0 = arith.constant 0 : i32
    %c0_i32_1 = arith.constant 0 : i32
    return %c0_i32, %c0_i32_0 : i32, i32
  }
  func.func @transform_3(%arg0: i32) -> (i32, i32) {
    %c0_i32 = arith.constant 0 : i32
    %c0_i32_0 = arith.constant 0 : i32
    %c0_i32_1 = arith.constant 0 : i32
    return %c0_i32, %c0_i32_0 : i32, i32
  }
  func.func @transform_4(%arg0: i32) -> (i32, i32) {
    %c0_i32 = arith.constant 0 : i32
    %c0_i32_0 = arith.constant 0 : i32
    %c0_i32_1 = arith.constant 0 : i32
    return %c0_i32, %c0_i32_0 : i32, i32
  }
  func.func @transform_5(%arg0: i32) -> (i32, i32) {
    %c0_i32 = arith.constant 0 : i32
    %c0_i32_0 = arith.constant 0 : i32
    %c0_i32_1 = arith.constant 0 : i32
    return %c0_i32, %c0_i32_0 : i32, i32
  }
  func.func @transform_6(%arg0: i32) -> (i32, i32) {
    %c0_i32 = arith.constant 0 : i32
    %c0_i32_0 = arith.constant 0 : i32
    %c0_i32_1 = arith.constant 0 : i32
    return %c0_i32, %c0_i32_0 : i32, i32
  }
  func.func @transform_7(%arg0: i32) -> (i32, i32) {
    %c0_i32 = arith.constant 0 : i32
    %c0_i32_0 = arith.constant 0 : i32
    return %arg0, %c0_i32 : i32, i32
  }
}

</mosaic_0001>

<llo_original>
// kernel: tpu_custom_call.1
$region0: #{tpu_custom_call.1}
  #allocation0 [shape = 'u32[]', space=smem, size = 0x4, offset = 0x4, fixed_abs, tag = 'smem constant byte address 0x4 - core index']
  #allocation1 [shape = 'u32[72,128]{1,0:T(1,128)}', space=vmem, size = 0x9000, scoped, tag = 'internal scratch']
  #allocation2 [shape = 'f32[64,3072]{1,0:T(8,128)}', space=vmem, size = 0xc0000, scoped, tag = 'scratch operand']
  #allocation3 [shape = 'f32[64,1024]{1,0:T(8,128)}', space=vmem, size = 0x40000, scoped, tag = 'scratch operand']
  %s0 = inlined_call_operand.vmem [shape: f32[64,32], index: 0, kind: input, shape index: {}]
  %s1 = inlined_call_operand.hbm [shape: f32[32,3072], index: 1, kind: input, shape index: {}]
  %s2 = inlined_call_operand.vmem [shape: f32[1,3072], index: 2, kind: input, shape index: {}]
  %s3 = inlined_call_operand.vmem [shape: f32[1,128], index: 3, kind: input, shape index: {}]
  %s4 = inlined_call_operand.hbm [shape: bf16[128,384], index: 4, kind: input, shape index: {}]
  %s5 = inlined_call_operand.hbm [shape: bf16[1024,256], index: 5, kind: input, shape index: {}]
  %s6 = inlined_call_operand.vmem [shape: f32[1,256], index: 6, kind: input, shape index: {}]
  %s7 = inlined_call_operand.hbm [shape: f32[64,256], index: 7, kind: output, shape index: {}]
  %s8 = sld [smem:[#allocation0]]
  $region50: #{tpu_custom_call.1} parent=0
    _
  %s10 = ssub.s32 1, %s8
  %s11 = scalar_select 0, %s10, %s8
  $region1: #{tpu_custom_call.1} parent=0
    #allocation4 [shape = 'u8[393216]{0}', space=vmem, size = 0x60000, scoped, tag = 'input window, operand 1, single buffered']
    #allocation5 [shape = 's32[1]{0}', space=sflag, size = 0x4, scoped, tag = 'scoped memory for tpu_custom_call.1']
    #allocation6 [shape = 's32[1]{0}', space=sflag, size = 0x4, scoped, tag = 'scoped memory for tpu_custom_call.1']
    #allocation7 [shape = 'u8[98304]{0}', space=vmem, size = 0x18000, scoped, tag = 'input window, operand 4, single buffered']
    #allocation8 [shape = 's32[1]{0}', space=sflag, size = 0x4, scoped, tag = 'scoped memory for tpu_custom_call.1']
    #allocation9 [shape = 'u8[524288]{0}', space=vmem, size = 0x80000, scoped, tag = 'input window, operand 5, single buffered']
    #allocation10 [shape = 'u8[65536]{0}', space=vmem, size = 0x10000, scoped, tag = 'output window, operand 0, single buffered']
    %12 = vsyncpa [#allocation5], 0
    %13 = vsyncpa [#allocation8], 0
    %14 = vsyncpa [#allocation6], 0
    // Predicated region
    $region2: #{tpu_custom_call.1} parent=1 // pred_check
      _
    $region3: #{tpu_custom_call.1} parent=1 // pred_check_branch
      %16 = sbr.rel (0) target = $region5
    $region4: #{tpu_custom_call.1} parent=1 // pred_region
      _
    $region5: #{tpu_custom_call.1} parent=1 // pred_fallthru
      _
    // Predicated region
    $region6: #{tpu_custom_call.1} parent=1 // pred_check
      _
    $region7: #{tpu_custom_call.1} parent=1 // pred_check_branch
      %18 = sbr.rel (0) target = $region9
    $region8: #{tpu_custom_call.1} parent=1 // pred_region
      %20 = vsyncadd [#allocation5], 0
      %s21 = sshll.u32 %s1, 4
      %s22 = int_to_ptr.hbm [resolvable:$true] %s21
      %s23 = sshll.u32 [#allocation4], 4
      %s24 = int_to_ptr.vmem [resolvable:$true] %s23
      %29 = dma.hbm_to_vmem [thread:$0]  %s22, 12288, %s24, [#allocation5], 3072, 3072, 192
    $region9: #{tpu_custom_call.1} parent=1 // pred_fallthru
      _
    // Predicated region
    $region10: #{tpu_custom_call.1} parent=1 // pred_check
      _
    $region11: #{tpu_custom_call.1} parent=1 // pred_check_branch
      %31 = sbr.rel (0) target = $region13
    $region12: #{tpu_custom_call.1} parent=1 // pred_region
      _
    $region13: #{tpu_custom_call.1} parent=1 // pred_fallthru
      _
    // Predicated region
    $region14: #{tpu_custom_call.1} parent=1 // pred_check
      _
    $region15: #{tpu_custom_call.1} parent=1 // pred_check_branch
      %33 = sbr.rel (0) target = $region17
    $region16: #{tpu_custom_call.1} parent=1 // pred_region
      _
    $region17: #{tpu_custom_call.1} parent=1 // pred_fallthru
      _
    // Predicated region
    $region18: #{tpu_custom_call.1} parent=1 // pred_check
      _
    $region19: #{tpu_custom_call.1} parent=1 // pred_check_branch
      %35 = sbr.rel (0) target = $region21
    $region20: #{tpu_custom_call.1} parent=1 // pred_region
      %37 = vsyncadd [#allocation8], 0
      %s38 = sshll.u32 %s4, 4
      %s39 = int_to_ptr.hbm [resolvable:$true] %s38
      %s40 = sshll.u32 [#allocation7], 4
      %s41 = int_to_ptr.vmem [resolvable:$true] %s40
      %46 = dma.hbm_to_vmem [thread:$0]  %s39, 3072, %s41, [#allocation8], 192, 192, 12
    $region21: #{tpu_custom_call.1} parent=1 // pred_fallthru
      _
    // Predicated region
    $region22: #{tpu_custom_call.1} parent=1 // pred_check
      _
    $region23: #{tpu_custom_call.1} parent=1 // pred_check_branch
      %48 = sbr.rel (0) target = $region25
    $region24: #{tpu_custom_call.1} parent=1 // pred_region
      %50 = vsyncadd [#allocation8], 0
      %s51 = sshll.u32 %s5, 4
      %s52 = int_to_ptr.hbm [resolvable:$true] %s51
      %s53 = sshll.u32 [#allocation9], 4
      %s54 = int_to_ptr.vmem [resolvable:$true] %s53
      %59 = dma.hbm_to_vmem [thread:$0]  %s52, 16384, %s54, [#allocation8], 128, 128, 8
    $region25: #{tpu_custom_call.1} parent=1 // pred_fallthru
      _
    // Predicated region
    $region26: #{tpu_custom_call.1} parent=1 // pred_check
      _
    $region27: #{tpu_custom_call.1} parent=1 // pred_check_branch
      %61 = sbr.rel (0) target = $region29
    $region28: #{tpu_custom_call.1} parent=1 // pred_region
      _
    $region29: #{tpu_custom_call.1} parent=1 // pred_fallthru
      _
    // Predicated region
    $region30: #{tpu_custom_call.1} parent=1 // pred_check
      _
    $region31: #{tpu_custom_call.1} parent=1 // pred_check_branch
      %63 = sbr.rel (0) target = $region33
    $region32: #{tpu_custom_call.1} parent=1 // pred_region
      %65 = dma.done [#allocation5], 12288
    $region33: #{tpu_custom_call.1} parent=1 // pred_fallthru
      _
    // Predicated region
    $region34: #{tpu_custom_call.1} parent=1 // pred_check
      _
    $region35: #{tpu_custom_call.1} parent=1 // pred_check_branch
      %67 = sbr.rel (0) target = $region37
    $region36: #{tpu_custom_call.1} parent=1 // pred_region
      %69 = dma.done [#allocation8], 3072
    $region37: #{tpu_custom_call.1} parent=1 // pred_fallthru
      _
    // Predicated region
    $region38: #{tpu_custom_call.1} parent=1 // pred_check
      _
    $region39: #{tpu_custom_call.1} parent=1 // pred_check_branch
      %71 = sbr.rel (0) target = $region41
    $region40: #{tpu_custom_call.1} parent=1 // pred_region
      %73 = dma.done [#allocation8], 16384
    $region41: #{tpu_custom_call.1} parent=1 // pred_fallthru
      _
    %v75 = vld [vmem:[%s0] sm:$0xff]
    %v76 = vld [vmem:[%s0 + $0x8] sm:$0xff]
    %v77 = vld [vmem:[%s0 + $0x10] sm:$0xff]
    %v78 = vld [vmem:[%s0 + $0x18] sm:$0xff]
    %v79 = vld [vmem:[%s0 + $0x20] sm:$0xff]
    %v80 = vld [vmem:[%s0 + $0x28] sm:$0xff]
    %v81 = vld [vmem:[%s0 + $0x30] sm:$0xff]
    %v82 = vld [vmem:[%s0 + $0x38] sm:$0xff]
    %v83 = vld [vmem:[#allocation4] sm:$0xff]
    %v84 = vld [vmem:[#allocation4 + $0x8] sm:$0xff]
    %v85 = vld [vmem:[#allocation4 + $0x10] sm:$0xff]
    %v86 = vld [vmem:[#allocation4 + $0x18] sm:$0xff]
    %v87 = vld [vmem:[#allocation4 + $0x20] sm:$0xff]
    %v88 = vld [vmem:[#allocation4 + $0x28] sm:$0xff]
    %v89 = vld [vmem:[#allocation4 + $0x30] sm:$0xff]
    %v90 = vld [vmem:[#allocation4 + $0x38] sm:$0xff]
    %v91 = vld [vmem:[#allocation4 + $0x40] sm:$0xff]
    %v92 = vld [vmem:[#allocation4 + $0x48] sm:$0xff]
    %v93 = vld [vmem:[#allocation4 + $0x50] sm:$0xff]
    %v94 = vld [vmem:[#allocation4 + $0x58] sm:$0xff]
    %v95 = vld [vmem:[#allocation4 + $0x60] sm:$0xff]
    %v96 = vld [vmem:[#allocation4 + $0x68] sm:$0xff]
    %v97 = vld [vmem:[#allocation4 + $0x70] sm:$0xff]
    %v98 = vld [vmem:[#allocation4 + $0x78] sm:$0xff]
    %v99 = vld [vmem:[#allocation4 + $0x80] sm:$0xff]
    %v100 = vld [vmem:[#allocation4 + $0x88] sm:$0xff]
    %v101 = vld [vmem:[#allocation4 + $0x90] sm:$0xff]
    %v102 = vld [vmem:[#allocation4 + $0x98] sm:$0xff]
    %v103 = vld [vmem:[#allocation4 + $0xa0] sm:$0xff]
    %v104 = vld [vmem:[#allocation4 + $0xa8] sm:$0xff]
    %v105 = vld [vmem:[#allocation4 + $0xb0] sm:$0xff]
    %v106 = vld [vmem:[#allocation4 + $0xb8] sm:$0xff]
    %v107 = vld [vmem:[#allocation4 + $0xc0] sm:$0xff]
    %v108 = vld [vmem:[#allocation4 + $0xc8] sm:$0xff]
    %v109 = vld [vmem:[#allocation4 + $0xd0] sm:$0xff]
    %v110 = vld [vmem:[#allocation4 + $0xd8] sm:$0xff]
    %v111 = vld [vmem:[#allocation4 + $0xe0] sm:$0xff]
    %v112 = vld [vmem:[#allocation4 + $0xe8] sm:$0xff]
    %v113 = vld [vmem:[#allocation4 + $0xf0] sm:$0xff]
    %v114 = vld [vmem:[#allocation4 + $0xf8] sm:$0xff]
    %v115 = vld [vmem:[#allocation4 + $0x100] sm:$0xff]
    %v116 = vld [vmem:[#allocation4 + $0x108] sm:$0xff]
    %v117 = vld [vmem:[#allocation4 + $0x110] sm:$0xff]
    %v118 = vld [vmem:[#allocation4 + $0x118] sm:$0xff]
    %v119 = vld [vmem:[#allocation4 + $0x120] sm:$0xff]
    %v120 = vld [vmem:[#allocation4 + $0x128] sm:$0xff]
    %v121 = vld [vmem:[#allocation4 + $0x130] sm:$0xff]
    %v122 = vld [vmem:[#allocation4 + $0x138] sm:$0xff]
    %v123 = vld [vmem:[#allocation4 + $0x140] sm:$0xff]
    %v124 = vld [vmem:[#allocation4 + $0x148] sm:$0xff]
    %v125 = vld [vmem:[#allocation4 + $0x150] sm:$0xff]
    %v126 = vld [vmem:[#allocation4 + $0x158] sm:$0xff]
    %v127 = vld [vmem:[#allocation4 + $0x160] sm:$0xff]
    %v128 = vld [vmem:[#allocation4 + $0x168] sm:$0xff]
    %v129 = vld [vmem:[#allocation4 + $0x170] sm:$0xff]
    %v130 = vld [vmem:[#allocation4 + $0x178] sm:$0xff]
    %v131 = vld [vmem:[#allocation4 + $0x180] sm:$0xff]
    %v132 = vld [vmem:[#allocation4 + $0x188] sm:$0xff]
    %v133 = vld [vmem:[#allocation4 + $0x190] sm:$0xff]
    %v134 = vld [vmem:[#allocation4 + $0x198] sm:$0xff]
    %v135 = vld [vmem:[#allocation4 + $0x1a0] sm:$0xff]
    %v136 = vld [vmem:[#allocation4 + $0x1a8] sm:$0xff]
    %v137 = vld [vmem:[#allocation4 + $0x1b0] sm:$0xff]
    %v138 = vld [vmem:[#allocation4 + $0x1b8] sm:$0xff]
    %v139 = vld [vmem:[#allocation4 + $0x1c0] sm:$0xff]
    %v140 = vld [vmem:[#allocation4 + $0x1c8] sm:$0xff]
    %v141 = vld [vmem:[#allocation4 + $0x1d0] sm:$0xff]
    %v142 = vld [vmem:[#allocation4 + $0x1d8] sm:$0xff]
    %v143 = vld [vmem:[#allocation4 + $0x1e0] sm:$0xff]
    %v144 = vld [vmem:[#allocation4 + $0x1e8] sm:$0xff]
    %v145 = vld [vmem:[#allocation4 + $0x1f0] sm:$0xff]
    %v146 = vld [vmem:[#allocation4 + $0x1f8] sm:$0xff]
    %v147 = vld [vmem:[#allocation4 + $0x200] sm:$0xff]
    %v148 = vld [vmem:[#allocation4 + $0x208] sm:$0xff]
    %v149 = vld [vmem:[#allocation4 + $0x210] sm:$0xff]
    %v150 = vld [vmem:[#allocation4 + $0x218] sm:$0xff]
    %v151 = vld [vmem:[#allocation4 + $0x220] sm:$0xff]
    %v152 = vld [vmem:[#allocation4 + $0x228] sm:$0xff]
    %v153 = vld [vmem:[#allocation4 + $0x230] sm:$0xff]
    %v154 = vld [vmem:[#allocation4 + $0x238] sm:$0xff]
    %v155 = vld [vmem:[#allocation4 + $0x240] sm:$0xff]
    %v156 = vld [vmem:[#allocation4 + $0x248] sm:$0xff]
    %v157 = vld [vmem:[#allocation4 + $0x250] sm:$0xff]
    %v158 = vld [vmem:[#allocation4 + $0x258] sm:$0xff]
    %v159 = vld [vmem:[#allocation4 + $0x260] sm:$0xff]
    %v160 = vld [vmem:[#allocation4 + $0x268] sm:$0xff]
    %v161 = vld [vmem:[#allocation4 + $0x270] sm:$0xff]
    %v162 = vld [vmem:[#allocation4 + $0x278] sm:$0xff]
    %v163 = vld [vmem:[#allocation4 + $0x280] sm:$0xff]
    %v164 = vld [vmem:[#allocation4 + $0x288] sm:$0xff]
    %v165 = vld [vmem:[#allocation4 + $0x290] sm:$0xff]
    %v166 = vld [vmem:[#allocation4 + $0x298] sm:$0xff]
    %v167 = vld [vmem:[#allocation4 + $0x2a0] sm:$0xff]
    %v168 = vld [vmem:[#allocation4 + $0x2a8] sm:$0xff]
    %v169 = vld [vmem:[#allocation4 + $0x2b0] sm:$0xff]
    %v170 = vld [vmem:[#allocation4 + $0x2b8] sm:$0xff]
    %v171 = vld [vmem:[#allocation4 + $0x2c0] sm:$0xff]
    %v172 = vld [vmem:[#allocation4 + $0x2c8] sm:$0xff]
    %v173 = vld [vmem:[#allocation4 + $0x2d0] sm:$0xff]
    %v174 = vld [vmem:[#allocation4 + $0x2d8] sm:$0xff]
    %v175 = vld [vmem:[#allocation4 + $0x2e0] sm:$0xff]
    %v176 = vld [vmem:[#allocation4 + $0x2e8] sm:$0xff]
    %v177 = vld [vmem:[#allocation4 + $0x2f0] sm:$0xff]
    %v178 = vld [vmem:[#allocation4 + $0x2f8] sm:$0xff]
    %v179 = vld [vmem:[%s2] sm:$0xff]
    %v180 = vld [vmem:[%s2 + $0x8] sm:$0xff]
    %v181 = vld [vmem:[%s2 + $0x10] sm:$0xff]
    %v185 = vperm.slane %v179, 0
    %v186 = vperm.slane %v179, 1
    %v187 = vperm.slane %v179, 2
    %v188 = vperm.slane %v179, 3
    %v189 = vperm.slane %v179, 4
    %v190 = vperm.slane %v179, 5
    %v191 = vperm.slane %v179, 6
    %v192 = vperm.slane %v179, 7
    %v193 = vperm.slane %v180, 0
    %v194 = vperm.slane %v180, 1
    %v195 = vperm.slane %v180, 2
    %v196 = vperm.slane %v180, 3
    %v197 = vperm.slane %v180, 4
    %v198 = vperm.slane %v180, 5
    %v199 = vperm.slane %v180, 6
    %v200 = vperm.slane %v180, 7
    %v201 = vperm.slane %v181, 0
    %v202 = vperm.slane %v181, 1
    %v203 = vperm.slane %v181, 2
    %v204 = vperm.slane %v181, 3
    %v205 = vperm.slane %v181, 4
    %v206 = vperm.slane %v181, 5
    %v207 = vperm.slane %v181, 6
    %v208 = vperm.slane %v181, 7
    %vm233 = vcmask 261120
    %v235 = vsel %vm233, %v75, 0
    %v238 = vsel %vm233, %v76, 0
    %v241 = vsel %vm233, %v77, 0
    %v244 = vsel %vm233, %v78, 0
    %v247 = vsel %vm233, %v79, 0
    %v250 = vsel %vm233, %v80, 0
    %v253 = vsel %vm233, %v81, 0
    %v256 = vsel %vm233, %v82, 0
    %258 = vmatpush.msra.mxu0 0.0
    %259 = vmatpush.msra.mxu0 0.0
    %260 = vmatpush.msra.mxu0 0.0
    %261 = vmatpush.msra.mxu0 0.0
    %262 = vmatpush.msra.mxu0 0.0
    %263 = vmatpush.msra.mxu0 0.0
    %264 = vmatpush.msra.mxu0 0.0
    %265 = vmatpush.msra.mxu0 0.0
    %266 = vmatpush.msra.mxu0 0.0
    %267 = vmatpush.msra.mxu0 0.0
    %268 = vmatpush.msra.mxu0 0.0
    %269 = vmatpush.msra.mxu0 0.0
    %270 = vmatpush.msra.mxu0 %v155
    %271 = vmatpush.msra.mxu0 %v131
    %272 = vmatpush.msra.mxu0 %v107
    %273 = vmatpush.msra.mxu0 %v83
    %274 = vmatmul.f32.gmra.mxu0 %v235
    %v275 = vpop.f32.mrf.mxu0
    %v276 = vadd.f32 %v185, %v275
    %277 = vmatmul.f32.gmra.mxu0 %v238
    %v278 = vpop.f32.mrf.mxu0
    %v279 = vadd.f32 %v185, %v278
    %280 = vmatmul.f32.gmra.mxu0 %v241
    %v281 = vpop.f32.mrf.mxu0
    %v282 = vadd.f32 %v185, %v281
    %283 = vmatmul.f32.gmra.mxu0 %v244
    %v284 = vpop.f32.mrf.mxu0
    %v285 = vadd.f32 %v185, %v284
    %286 = vmatmul.f32.gmra.mxu0 %v247
    %v287 = vpop.f32.mrf.mxu0
    %v288 = vadd.f32 %v185, %v287
    %289 = vmatmul.f32.gmra.mxu0 %v250
    %v290 = vpop.f32.mrf.mxu0
    %v291 = vadd.f32 %v185, %v290
    %292 = vmatmul.f32.gmra.mxu0 %v253
    %v293 = vpop.f32.mrf.mxu0
    %v294 = vadd.f32 %v185, %v293
    %295 = vmatmul.f32.gmra.mxu0 %v256
    %v296 = vpop.f32.mrf.mxu0
    %v297 = vadd.f32 %v185, %v296
    %298 = vdwg.mxu0
    %299 = vmatpush.msra.mxu0 0.0
    %300 = vmatpush.msra.mxu0 0.0
    %301 = vmatpush.msra.mxu0 0.0
    %302 = vmatpush.msra.mxu0 0.0
    %303 = vmatpush.msra.mxu0 0.0
    %304 = vmatpush.msra.mxu0 0.0
    %305 = vmatpush.msra.mxu0 0.0
    %306 = vmatpush.msra.mxu0 0.0
    %307 = vmatpush.msra.mxu0 0.0
    %308 = vmatpush.msra.mxu0 0.0
    %309 = vmatpush.msra.mxu0 0.0
    %310 = vmatpush.msra.mxu0 0.0
    %311 = vmatpush.msra.mxu0 %v156
    %312 = vmatpush.msra.mxu0 %v132
    %313 = vmatpush.msra.mxu0 %v108
    %314 = vmatpush.msra.mxu0 %v84
    %315 = vmatmul.f32.gmra.mxu0 %v235
    %v316 = vpop.f32.mrf.mxu0
    %v317 = vadd.f32 %v186, %v316
    %318 = vmatmul.f32.gmra.mxu0 %v238
    %v319 = vpop.f32.mrf.mxu0
    %v320 = vadd.f32 %v186, %v319
    %321 = vmatmul.f32.gmra.mxu0 %v241
    %v322 = vpop.f32.mrf.mxu0
    %v323 = vadd.f32 %v186, %v322
    %324 = vmatmul.f32.gmra.mxu0 %v244
    %v325 = vpop.f32.mrf.mxu0
    %v326 = vadd.f32 %v186, %v325
    %327 = vmatmul.f32.gmra.mxu0 %v247
    %v328 = vpop.f32.mrf.mxu0
    %v329 = vadd.f32 %v186, %v328
    %330 = vmatmul.f32.gmra.mxu0 %v250
    %v331 = vpop.f32.mrf.mxu0
    %v332 = vadd.f32 %v186, %v331
    %333 = vmatmul.f32.gmra.mxu0 %v253
    %v334 = vpop.f32.mrf.mxu0
    %v335 = vadd.f32 %v186, %v334
    %336 = vmatmul.f32.gmra.mxu0 %v256
    %v337 = vpop.f32.mrf.mxu0
    %v338 = vadd.f32 %v186, %v337
    %339 = vdwg.mxu0
    %340 = vmatpush.msra.mxu0 0.0
    %341 = vmatpush.msra.mxu0 0.0
    %342 = vmatpush.msra.mxu0 0.0
    %343 = vmatpush.msra.mxu0 0.0
    %344 = vmatpush.msra.mxu0 0.0
    %345 = vmatpush.msra.mxu0 0.0
    %346 = vmatpush.msra.mxu0 0.0
    %347 = vmatpush.msra.mxu0 0.0
    %348 = vmatpush.msra.mxu0 0.0
    %349 = vmatpush.msra.mxu0 0.0
    %350 = vmatpush.msra.mxu0 0.0
    %351 = vmatpush.msra.mxu0 0.0
    %352 = vmatpush.msra.mxu0 %v157
    %353 = vmatpush.msra.mxu0 %v133
    %354 = vmatpush.msra.mxu0 %v109
    %355 = vmatpush.msra.mxu0 %v85
    %356 = vmatmul.f32.gmra.mxu0 %v235
    %v357 = vpop.f32.mrf.mxu0
    %v358 = vadd.f32 %v187, %v357
    %359 = vmatmul.f32.gmra.mxu0 %v238
    %v360 = vpop.f32.mrf.mxu0
    %v361 = vadd.f32 %v187, %v360
    %362 = vmatmul.f32.gmra.mxu0 %v241
    %v363 = vpop.f32.mrf.mxu0
    %v364 = vadd.f32 %v187, %v363
    %365 = vmatmul.f32.gmra.mxu0 %v244
    %v366 = vpop.f32.mrf.mxu0
    %v367 = vadd.f32 %v187, %v366
    %368 = vmatmul.f32.gmra.mxu0 %v247
    %v369 = vpop.f32.mrf.mxu0
    %v370 = vadd.f32 %v187, %v369
    %371 = vmatmul.f32.gmra.mxu0 %v250
    %v372 = vpop.f32.mrf.mxu0
    %v373 = vadd.f32 %v187, %v372
    %374 = vmatmul.f32.gmra.mxu0 %v253
    %v375 = vpop.f32.mrf.mxu0
    %v376 = vadd.f32 %v187, %v375
    %377 = vmatmul.f32.gmra.mxu0 %v256
    %v378 = vpop.f32.mrf.mxu0
    %v379 = vadd.f32 %v187, %v378
    %380 = vdwg.mxu0
    %381 = vmatpush.msra.mxu0 0.0
    %382 = vmatpush.msra.mxu0 0.0
    %383 = vmatpush.msra.mxu0 0.0
    %384 = vmatpush.msra.mxu0 0.0
    %385 = vmatpush.msra.mxu0 0.0
    %386 = vmatpush.msra.mxu0 0.0
    %387 = vmatpush.msra.mxu0 0.0
    %388 = vmatpush.msra.mxu0 0.0
    %389 = vmatpush.msra.mxu0 0.0
    %390 = vmatpush.msra.mxu0 0.0
    %391 = vmatpush.msra.mxu0 0.0
    %392 = vmatpush.msra.mxu0 0.0
    %393 = vmatpush.msra.mxu0 %v158
    %394 = vmatpush.msra.mxu0 %v134
    %395 = vmatpush.msra.mxu0 %v110
    %396 = vmatpush.msra.mxu0 %v86
    %397 = vmatmul.f32.gmra.mxu0 %v235
    %v398 = vpop.f32.mrf.mxu0
    %v399 = vadd.f32 %v188, %v398
    %400 = vmatmul.f32.gmra.mxu0 %v238
    %v401 = vpop.f32.mrf.mxu0
    %v402 = vadd.f32 %v188, %v401
    %403 = vmatmul.f32.gmra.mxu0 %v241
    %v404 = vpop.f32.mrf.mxu0
    %v405 = vadd.f32 %v188, %v404
    %406 = vmatmul.f32.gmra.mxu0 %v244
    %v407 = vpop.f32.mrf.mxu0
    %v408 = vadd.f32 %v188, %v407
    %409 = vmatmul.f32.gmra.mxu0 %v247
    %v410 = vpop.f32.mrf.mxu0
    %v411 = vadd.f32 %v188, %v410
    %412 = vmatmul.f32.gmra.mxu0 %v250
    %v413 = vpop.f32.mrf.mxu0
    %v414 = vadd.f32 %v188, %v413
    %415 = vmatmul.f32.gmra.mxu0 %v253
    %v416 = vpop.f32.mrf.mxu0
    %v417 = vadd.f32 %v188, %v416
    %418 = vmatmul.f32.gmra.mxu0 %v256
    %v419 = vpop.f32.mrf.mxu0
    %v420 = vadd.f32 %v188, %v419
    %421 = vdwg.mxu0
    %422 = vmatpush.msra.mxu0 0.0
    %423 = vmatpush.msra.mxu0 0.0
    %424 = vmatpush.msra.mxu0 0.0
    %425 = vmatpush.msra.mxu0 0.0
    %426 = vmatpush.msra.mxu0 0.0
    %427 = vmatpush.msra.mxu0 0.0
    %428 = vmatpush.msra.mxu0 0.0
    %429 = vmatpush.msra.mxu0 0.0
    %430 = vmatpush.msra.mxu0 0.0
    %431 = vmatpush.msra.mxu0 0.0
    %432 = vmatpush.msra.mxu0 0.0
    %433 = vmatpush.msra.mxu0 0.0
    %434 = vmatpush.msra.mxu0 %v159
    %435 = vmatpush.msra.mxu0 %v135
    %436 = vmatpush.msra.mxu0 %v111
    %437 = vmatpush.msra.mxu0 %v87
    %438 = vmatmul.f32.gmra.mxu0 %v235
    %v439 = vpop.f32.mrf.mxu0
    %v440 = vadd.f32 %v189, %v439
    %441 = vmatmul.f32.gmra.mxu0 %v238
    %v442 = vpop.f32.mrf.mxu0
    %v443 = vadd.f32 %v189, %v442
    %444 = vmatmul.f32.gmra.mxu0 %v241
    %v445 = vpop.f32.mrf.mxu0
    %v446 = vadd.f32 %v189, %v445
    %447 = vmatmul.f32.gmra.mxu0 %v244
    %v448 = vpop.f32.mrf.mxu0
    %v449 = vadd.f32 %v189, %v448
    %450 = vmatmul.f32.gmra.mxu0 %v247
    %v451 = vpop.f32.mrf.mxu0
    %v452 = vadd.f32 %v189, %v451
    %453 = vmatmul.f32.gmra.mxu0 %v250
    %v454 = vpop.f32.mrf.mxu0
    %v455 = vadd.f32 %v189, %v454
    %456 = vmatmul.f32.gmra.mxu0 %v253
    %v457 = vpop.f32.mrf.mxu0
    %v458 = vadd.f32 %v189, %v457
    %459 = vmatmul.f32.gmra.mxu0 %v256
    %v460 = vpop.f32.mrf.mxu0
    %v461 = vadd.f32 %v189, %v460
    %462 = vdwg.mxu0
    %463 = vmatpush.msra.mxu0 0.0
    %464 = vmatpush.msra.mxu0 0.0
    %465 = vmatpush.msra.mxu0 0.0
    %466 = vmatpush.msra.mxu0 0.0
    %467 = vmatpush.msra.mxu0 0.0
    %468 = vmatpush.msra.mxu0 0.0
    %469 = vmatpush.msra.mxu0 0.0
    %470 = vmatpush.msra.mxu0 0.0
    %471 = vmatpush.msra.mxu0 0.0
    %472 = vmatpush.msra.mxu0 0.0
    %473 = vmatpush.msra.mxu0 0.0
    %474 = vmatpush.msra.mxu0 0.0
    %475 = vmatpush.msra.mxu0 %v160
    %476 = vmatpush.msra.mxu0 %v136
    %477 = vmatpush.msra.mxu0 %v112
    %478 = vmatpush.msra.mxu0 %v88
    %479 = vmatmul.f32.gmra.mxu0 %v235
    %v480 = vpop.f32.mrf.mxu0
    %v481 = vadd.f32 %v190, %v480
    %482 = vmatmul.f32.gmra.mxu0 %v238
    %v483 = vpop.f32.mrf.mxu0
    %v484 = vadd.f32 %v190, %v483
    %485 = vmatmul.f32.gmra.mxu0 %v241
    %v486 = vpop.f32.mrf.mxu0
    %v487 = vadd.f32 %v190, %v486
    %488 = vmatmul.f32.gmra.mxu0 %v244
    %v489 = vpop.f32.mrf.mxu0
    %v490 = vadd.f32 %v190, %v489
    %491 = vmatmul.f32.gmra.mxu0 %v247
    %v492 = vpop.f32.mrf.mxu0
    %v493 = vadd.f32 %v190, %v492
    %494 = vmatmul.f32.gmra.mxu0 %v250
    %v495 = vpop.f32.mrf.mxu0
    %v496 = vadd.f32 %v190, %v495
    %497 = vmatmul.f32.gmra.mxu0 %v253
    %v498 = vpop.f32.mrf.mxu0
    %v499 = vadd.f32 %v190, %v498
    %500 = vmatmul.f32.gmra.mxu0 %v256
    %v501 = vpop.f32.mrf.mxu0
    %v502 = vadd.f32 %v190, %v501
    %503 = vdwg.mxu0
    %504 = vmatpush.msra.mxu0 0.0
    %505 = vmatpush.msra.mxu0 0.0
    %506 = vmatpush.msra.mxu0 0.0
    %507 = vmatpush.msra.mxu0 0.0
    %508 = vmatpush.msra.mxu0 0.0
    %509 = vmatpush.msra.mxu0 0.0
    %510 = vmatpush.msra.mxu0 0.0
    %511 = vmatpush.msra.mxu0 0.0
    %512 = vmatpush.msra.mxu0 0.0
    %513 = vmatpush.msra.mxu0 0.0
    %514 = vmatpush.msra.mxu0 0.0
    %515 = vmatpush.msra.mxu0 0.0
    %516 = vmatpush.msra.mxu0 %v161
    %517 = vmatpush.msra.mxu0 %v137
    %518 = vmatpush.msra.mxu0 %v113
    %519 = vmatpush.msra.mxu0 %v89
    %520 = vmatmul.f32.gmra.mxu0 %v235
    %v521 = vpop.f32.mrf.mxu0
    %v522 = vadd.f32 %v191, %v521
    %523 = vmatmul.f32.gmra.mxu0 %v238
    %v524 = vpop.f32.mrf.mxu0
    %v525 = vadd.f32 %v191, %v524
    %526 = vmatmul.f32.gmra.mxu0 %v241
    %v527 = vpop.f32.mrf.mxu0
    %v528 = vadd.f32 %v191, %v527
    %529 = vmatmul.f32.gmra.mxu0 %v244
    %v530 = vpop.f32.mrf.mxu0
    %v531 = vadd.f32 %v191, %v530
    %532 = vmatmul.f32.gmra.mxu0 %v247
    %v533 = vpop.f32.mrf.mxu0
    %v534 = vadd.f32 %v191, %v533
    %535 = vmatmul.f32.gmra.mxu0 %v250
    %v536 = vpop.f32.mrf.mxu0
    %v537 = vadd.f32 %v191, %v536
    %538 = vmatmul.f32.gmra.mxu0 %v253
    %v539 = vpop.f32.mrf.mxu0
    %v540 = vadd.f32 %v191, %v539
    %541 = vmatmul.f32.gmra.mxu0 %v256
    %v542 = vpop.f32.mrf.mxu0
    %v543 = vadd.f32 %v191, %v542
    %544 = vdwg.mxu0
    %545 = vmatpush.msra.mxu0 0.0
    %546 = vmatpush.msra.mxu0 0.0
    %547 = vmatpush.msra.mxu0 0.0
    %548 = vmatpush.msra.mxu0 0.0
    %549 = vmatpush.msra.mxu0 0.0
    %550 = vmatpush.msra.mxu0 0.0
    %551 = vmatpush.msra.mxu0 0.0
    %552 = vmatpush.msra.mxu0 0.0
    %553 = vmatpush.msra.mxu0 0.0
    %554 = vmatpush.msra.mxu0 0.0
    %555 = vmatpush.msra.mxu0 0.0
    %556 = vmatpush.msra.mxu0 0.0
    %557 = vmatpush.msra.mxu0 %v162
    %558 = vmatpush.msra.mxu0 %v138
    %559 = vmatpush.msra.mxu0 %v114
    %560 = vmatpush.msra.mxu0 %v90
    %561 = vmatmul.f32.gmra.mxu0 %v235
    %v562 = vpop.f32.mrf.mxu0
    %v563 = vadd.f32 %v192, %v562
    %564 = vmatmul.f32.gmra.mxu0 %v238
    %v565 = vpop.f32.mrf.mxu0
    %v566 = vadd.f32 %v192, %v565
    %567 = vmatmul.f32.gmra.mxu0 %v241
    %v568 = vpop.f32.mrf.mxu0
    %v569 = vadd.f32 %v192, %v568
    %570 = vmatmul.f32.gmra.mxu0 %v244
    %v571 = vpop.f32.mrf.mxu0
    %v572 = vadd.f32 %v192, %v571
    %573 = vmatmul.f32.gmra.mxu0 %v247
    %v574 = vpop.f32.mrf.mxu0
    %v575 = vadd.f32 %v192, %v574
    %576 = vmatmul.f32.gmra.mxu0 %v250
    %v577 = vpop.f32.mrf.mxu0
    %v578 = vadd.f32 %v192, %v577
    %579 = vmatmul.f32.gmra.mxu0 %v253
    %v580 = vpop.f32.mrf.mxu0
    %v581 = vadd.f32 %v192, %v580
    %582 = vmatmul.f32.gmra.mxu0 %v256
    %v583 = vpop.f32.mrf.mxu0
    %v584 = vadd.f32 %v192, %v583
    %585 = vdwg.mxu0
    %586 = vmatpush.msra.mxu0 0.0
    %587 = vmatpush.msra.mxu0 0.0
    %588 = vmatpush.msra.mxu0 0.0
    %589 = vmatpush.msra.mxu0 0.0
    %590 = vmatpush.msra.mxu0 0.0
    %591 = vmatpush.msra.mxu0 0.0
    %592 = vmatpush.msra.mxu0 0.0
    %593 = vmatpush.msra.mxu0 0.0
    %594 = vmatpush.msra.mxu0 0.0
    %595 = vmatpush.msra.mxu0 0.0
    %596 = vmatpush.msra.mxu0 0.0
    %597 = vmatpush.msra.mxu0 0.0
    %598 = vmatpush.msra.mxu0 %v163
    %599 = vmatpush.msra.mxu0 %v139
    %600 = vmatpush.msra.mxu0 %v115
    %601 = vmatpush.msra.mxu0 %v91
    %602 = vmatmul.f32.gmra.mxu0 %v235
    %v603 = vpop.f32.mrf.mxu0
    %v604 = vadd.f32 %v193, %v603
    %605 = vmatmul.f32.gmra.mxu0 %v238
    %v606 = vpop.f32.mrf.mxu0
    %v607 = vadd.f32 %v193, %v606
    %608 = vmatmul.f32.gmra.mxu0 %v241
    %v609 = vpop.f32.mrf.mxu0
    %v610 = vadd.f32 %v193, %v609
    %611 = vmatmul.f32.gmra.mxu0 %v244
    %v612 = vpop.f32.mrf.mxu0
    %v613 = vadd.f32 %v193, %v612
    %614 = vmatmul.f32.gmra.mxu0 %v247
    %v615 = vpop.f32.mrf.mxu0
    %v616 = vadd.f32 %v193, %v615
    %617 = vmatmul.f32.gmra.mxu0 %v250
    %v618 = vpop.f32.mrf.mxu0
    %v619 = vadd.f32 %v193, %v618
    %620 = vmatmul.f32.gmra.mxu0 %v253
    %v621 = vpop.f32.mrf.mxu0
    %v622 = vadd.f32 %v193, %v621
    %623 = vmatmul.f32.gmra.mxu0 %v256
    %v624 = vpop.f32.mrf.mxu0
    %v625 = vadd.f32 %v193, %v624
    %626 = vdwg.mxu0
    %627 = vmatpush.msra.mxu0 0.0
    %628 = vmatpush.msra.mxu0 0.0
    %629 = vmatpush.msra.mxu0 0.0
    %630 = vmatpush.msra.mxu0 0.0
    %631 = vmatpush.msra.mxu0 0.0
    %632 = vmatpush.msra.mxu0 0.0
    %633 = vmatpush.msra.mxu0 0.0
    %634 = vmatpush.msra.mxu0 0.0
    %635 = vmatpush.msra.mxu0 0.0
    %636 = vmatpush.msra.mxu0 0.0
    %637 = vmatpush.msra.mxu0 0.0
    %638 = vmatpush.msra.mxu0 0.0
    %639 = vmatpush.msra.mxu0 %v164
    %640 = vmatpush.msra.mxu0 %v140
    %641 = vmatpush.msra.mxu0 %v116
    %642 = vmatpush.msra.mxu0 %v92
    %643 = vmatmul.f32.gmra.mxu0 %v235
    %v644 = vpop.f32.mrf.mxu0
    %v645 = vadd.f32 %v194, %v644
    %646 = vmatmul.f32.gmra.mxu0 %v238
    %v647 = vpop.f32.mrf.mxu0
    %v648 = vadd.f32 %v194, %v647
    %649 = vmatmul.f32.gmra.mxu0 %v241
    %v650 = vpop.f32.mrf.mxu0
    %v651 = vadd.f32 %v194, %v650
    %652 = vmatmul.f32.gmra.mxu0 %v244
    %v653 = vpop.f32.mrf.mxu0
    %v654 = vadd.f32 %v194, %v653
    %655 = vmatmul.f32.gmra.mxu0 %v247
    %v656 = vpop.f32.mrf.mxu0
    %v657 = vadd.f32 %v194, %v656
    %658 = vmatmul.f32.gmra.mxu0 %v250
    %v659 = vpop.f32.mrf.mxu0
    %v660 = vadd.f32 %v194, %v659
    %661 = vmatmul.f32.gmra.mxu0 %v253
    %v662 = vpop.f32.mrf.mxu0
    %v663 = vadd.f32 %v194, %v662
    %664 = vmatmul.f32.gmra.mxu0 %v256
    %v665 = vpop.f32.mrf.mxu0
    %v666 = vadd.f32 %v194, %v665
    %667 = vdwg.mxu0
    %668 = vmatpush.msra.mxu0 0.0
    %669 = vmatpush.msra.mxu0 0.0
    %670 = vmatpush.msra.mxu0 0.0
    %671 = vmatpush.msra.mxu0 0.0
    %672 = vmatpush.msra.mxu0 0.0
    %673 = vmatpush.msra.mxu0 0.0
    %674 = vmatpush.msra.mxu0 0.0
    %675 = vmatpush.msra.mxu0 0.0
    %676 = vmatpush.msra.mxu0 0.0
    %677 = vmatpush.msra.mxu0 0.0
    %678 = vmatpush.msra.mxu0 0.0
    %679 = vmatpush.msra.mxu0 0.0
    %680 = vmatpush.msra.mxu0 %v165
    %681 = vmatpush.msra.mxu0 %v141
    %682 = vmatpush.msra.mxu0 %v117
    %683 = vmatpush.msra.mxu0 %v93
    %684 = vmatmul.f32.gmra.mxu0 %v235
    %v685 = vpop.f32.mrf.mxu0
    %v686 = vadd.f32 %v195, %v685
    %687 = vmatmul.f32.gmra.mxu0 %v238
    %v688 = vpop.f32.mrf.mxu0
    %v689 = vadd.f32 %v195, %v688
    %690 = vmatmul.f32.gmra.mxu0 %v241
    %v691 = vpop.f32.mrf.mxu0
    %v692 = vadd.f32 %v195, %v691
    %693 = vmatmul.f32.gmra.mxu0 %v244
    %v694 = vpop.f32.mrf.mxu0
    %v695 = vadd.f32 %v195, %v694
    %696 = vmatmul.f32.gmra.mxu0 %v247
    %v697 = vpop.f32.mrf.mxu0
    %v698 = vadd.f32 %v195, %v697
    %699 = vmatmul.f32.gmra.mxu0 %v250
    %v700 = vpop.f32.mrf.mxu0
    %v701 = vadd.f32 %v195, %v700
    %702 = vmatmul.f32.gmra.mxu0 %v253
    %v703 = vpop.f32.mrf.mxu0
    %v704 = vadd.f32 %v195, %v703
    %705 = vmatmul.f32.gmra.mxu0 %v256
    %v706 = vpop.f32.mrf.mxu0
    %v707 = vadd.f32 %v195, %v706
    %708 = vdwg.mxu0
    %709 = vmatpush.msra.mxu0 0.0
    %710 = vmatpush.msra.mxu0 0.0
    %711 = vmatpush.msra.mxu0 0.0
    %712 = vmatpush.msra.mxu0 0.0
    %713 = vmatpush.msra.mxu0 0.0
    %714 = vmatpush.msra.mxu0 0.0
    %715 = vmatpush.msra.mxu0 0.0
    %716 = vmatpush.msra.mxu0 0.0
    %717 = vmatpush.msra.mxu0 0.0
    %718 = vmatpush.msra.mxu0 0.0
    %719 = vmatpush.msra.mxu0 0.0
    %720 = vmatpush.msra.mxu0 0.0
    %721 = vmatpush.msra.mxu0 %v166
    %722 = vmatpush.msra.mxu0 %v142
    %723 = vmatpush.msra.mxu0 %v118
    %724 = vmatpush.msra.mxu0 %v94
    %725 = vmatmul.f32.gmra.mxu0 %v235
    %v726 = vpop.f32.mrf.mxu0
    %v727 = vadd.f32 %v196, %v726
    %728 = vmatmul.f32.gmra.mxu0 %v238
    %v729 = vpop.f32.mrf.mxu0
    %v730 = vadd.f32 %v196, %v729
    %731 = vmatmul.f32.gmra.mxu0 %v241
    %v732 = vpop.f32.mrf.mxu0
    %v733 = vadd.f32 %v196, %v732
    %734 = vmatmul.f32.gmra.mxu0 %v244
    %v735 = vpop.f32.mrf.mxu0
    %v736 = vadd.f32 %v196, %v735
    %737 = vmatmul.f32.gmra.mxu0 %v247
    %v738 = vpop.f32.mrf.mxu0
    %v739 = vadd.f32 %v196, %v738
    %740 = vmatmul.f32.gmra.mxu0 %v250
    %v741 = vpop.f32.mrf.mxu0
    %v742 = vadd.f32 %v196, %v741
    %743 = vmatmul.f32.gmra.mxu0 %v253
    %v744 = vpop.f32.mrf.mxu0
    %v745 = vadd.f32 %v196, %v744
    %746 = vmatmul.f32.gmra.mxu0 %v256
    %v747 = vpop.f32.mrf.mxu0
    %v748 = vadd.f32 %v196, %v747
    %749 = vdwg.mxu0
    %750 = vmatpush.msra.mxu0 0.0
    %751 = vmatpush.msra.mxu0 0.0
    %752 = vmatpush.msra.mxu0 0.0
    %753 = vmatpush.msra.mxu0 0.0
    %754 = vmatpush.msra.mxu0 0.0
    %755 = vmatpush.msra.mxu0 0.0
    %756 = vmatpush.msra.mxu0 0.0
    %757 = vmatpush.msra.mxu0 0.0
    %758 = vmatpush.msra.mxu0 0.0
    %759 = vmatpush.msra.mxu0 0.0
    %760 = vmatpush.msra.mxu0 0.0
    %761 = vmatpush.msra.mxu0 0.0
    %762 = vmatpush.msra.mxu0 %v167
    %763 = vmatpush.msra.mxu0 %v143
    %764 = vmatpush.msra.mxu0 %v119
    %765 = vmatpush.msra.mxu0 %v95
    %766 = vmatmul.f32.gmra.mxu0 %v235
    %v767 = vpop.f32.mrf.mxu0
    %v768 = vadd.f32 %v197, %v767
    %769 = vmatmul.f32.gmra.mxu0 %v238
    %v770 = vpop.f32.mrf.mxu0
    %v771 = vadd.f32 %v197, %v770
    %772 = vmatmul.f32.gmra.mxu0 %v241
    %v773 = vpop.f32.mrf.mxu0
    %v774 = vadd.f32 %v197, %v773
    %775 = vmatmul.f32.gmra.mxu0 %v244
    %v776 = vpop.f32.mrf.mxu0
    %v777 = vadd.f32 %v197, %v776
    %778 = vmatmul.f32.gmra.mxu0 %v247
    %v779 = vpop.f32.mrf.mxu0
    %v780 = vadd.f32 %v197, %v779
    %781 = vmatmul.f32.gmra.mxu0 %v250
    %v782 = vpop.f32.mrf.mxu0
    %v783 = vadd.f32 %v197, %v782
    %784 = vmatmul.f32.gmra.mxu0 %v253
    %v785 = vpop.f32.mrf.mxu0
    %v786 = vadd.f32 %v197, %v785
    %787 = vmatmul.f32.gmra.mxu0 %v256
    %v788 = vpop.f32.mrf.mxu0
    %v789 = vadd.f32 %v197, %v788
    %790 = vdwg.mxu0
    %791 = vmatpush.msra.mxu0 0.0
    %792 = vmatpush.msra.mxu0 0.0
    %793 = vmatpush.msra.mxu0 0.0
    %794 = vmatpush.msra.mxu0 0.0
    %795 = vmatpush.msra.mxu0 0.0
    %796 = vmatpush.msra.mxu0 0.0
    %797 = vmatpush.msra.mxu0 0.0
    %798 = vmatpush.msra.mxu0 0.0
    %799 = vmatpush.msra.mxu0 0.0
    %800 = vmatpush.msra.mxu0 0.0
    %801 = vmatpush.msra.mxu0 0.0
    %802 = vmatpush.msra.mxu0 0.0
    %803 = vmatpush.msra.mxu0 %v168
    %804 = vmatpush.msra.mxu0 %v144
    %805 = vmatpush.msra.mxu0 %v120
    %806 = vmatpush.msra.mxu0 %v96
    %807 = vmatmul.f32.gmra.mxu0 %v235
    %v808 = vpop.f32.mrf.mxu0
    %v809 = vadd.f32 %v198, %v808
    %810 = vmatmul.f32.gmra.mxu0 %v238
    %v811 = vpop.f32.mrf.mxu0
    %v812 = vadd.f32 %v198, %v811
    %813 = vmatmul.f32.gmra.mxu0 %v241
    %v814 = vpop.f32.mrf.mxu0
    %v815 = vadd.f32 %v198, %v814
    %816 = vmatmul.f32.gmra.mxu0 %v244
    %v817 = vpop.f32.mrf.mxu0
    %v818 = vadd.f32 %v198, %v817
    %819 = vmatmul.f32.gmra.mxu0 %v247
    %v820 = vpop.f32.mrf.mxu0
    %v821 = vadd.f32 %v198, %v820
    %822 = vmatmul.f32.gmra.mxu0 %v250
    %v823 = vpop.f32.mrf.mxu0
    %v824 = vadd.f32 %v198, %v823
    %825 = vmatmul.f32.gmra.mxu0 %v253
    %v826 = vpop.f32.mrf.mxu0
    %v827 = vadd.f32 %v198, %v826
    %828 = vmatmul.f32.gmra.mxu0 %v256
    %v829 = vpop.f32.mrf.mxu0
    %v830 = vadd.f32 %v198, %v829
    %831 = vdwg.mxu0
    %832 = vmatpush.msra.mxu0 0.0
    %833 = vmatpush.msra.mxu0 0.0
    %834 = vmatpush.msra.mxu0 0.0
    %835 = vmatpush.msra.mxu0 0.0
    %836 = vmatpush.msra.mxu0 0.0
    %837 = vmatpush.msra.mxu0 0.0
    %838 = vmatpush.msra.mxu0 0.0
    %839 = vmatpush.msra.mxu0 0.0
    %840 = vmatpush.msra.mxu0 0.0
    %841 = vmatpush.msra.mxu0 0.0
    %842 = vmatpush.msra.mxu0 0.0
    %843 = vmatpush.msra.mxu0 0.0
    %844 = vmatpush.msra.mxu0 %v169
    %845 = vmatpush.msra.mxu0 %v145
    %846 = vmatpush.msra.mxu0 %v121
    %847 = vmatpush.msra.mxu0 %v97
    %848 = vmatmul.f32.gmra.mxu0 %v235
    %v849 = vpop.f32.mrf.mxu0
    %v850 = vadd.f32 %v199, %v849
    %851 = vmatmul.f32.gmra.mxu0 %v238
    %v852 = vpop.f32.mrf.mxu0
    %v853 = vadd.f32 %v199, %v852
    %854 = vmatmul.f32.gmra.mxu0 %v241
    %v855 = vpop.f32.mrf.mxu0
    %v856 = vadd.f32 %v199, %v855
    %857 = vmatmul.f32.gmra.mxu0 %v244
    %v858 = vpop.f32.mrf.mxu0
    %v859 = vadd.f32 %v199, %v858
    %860 = vmatmul.f32.gmra.mxu0 %v247
    %v861 = vpop.f32.mrf.mxu0
    %v862 = vadd.f32 %v199, %v861
    %863 = vmatmul.f32.gmra.mxu0 %v250
    %v864 = vpop.f32.mrf.mxu0
    %v865 = vadd.f32 %v199, %v864
    %866 = vmatmul.f32.gmra.mxu0 %v253
    %v867 = vpop.f32.mrf.mxu0
    %v868 = vadd.f32 %v199, %v867
    %869 = vmatmul.f32.gmra.mxu0 %v256
    %v870 = vpop.f32.mrf.mxu0
    %v871 = vadd.f32 %v199, %v870
    %872 = vdwg.mxu0
    %873 = vmatpush.msra.mxu0 0.0
    %874 = vmatpush.msra.mxu0 0.0
    %875 = vmatpush.msra.mxu0 0.0
    %876 = vmatpush.msra.mxu0 0.0
    %877 = vmatpush.msra.mxu0 0.0
    %878 = vmatpush.msra.mxu0 0.0
    %879 = vmatpush.msra.mxu0 0.0
    %880 = vmatpush.msra.mxu0 0.0
    %881 = vmatpush.msra.mxu0 0.0
    %882 = vmatpush.msra.mxu0 0.0
    %883 = vmatpush.msra.mxu0 0.0
    %884 = vmatpush.msra.mxu0 0.0
    %885 = vmatpush.msra.mxu0 %v170
    %886 = vmatpush.msra.mxu0 %v146
    %887 = vmatpush.msra.mxu0 %v122
    %888 = vmatpush.msra.mxu0 %v98
    %889 = vmatmul.f32.gmra.mxu0 %v235
    %v890 = vpop.f32.mrf.mxu0
    %v891 = vadd.f32 %v200, %v890
    %892 = vmatmul.f32.gmra.mxu0 %v238
    %v893 = vpop.f32.mrf.mxu0
    %v894 = vadd.f32 %v200, %v893
    %895 = vmatmul.f32.gmra.mxu0 %v241
    %v896 = vpop.f32.mrf.mxu0
    %v897 = vadd.f32 %v200, %v896
    %898 = vmatmul.f32.gmra.mxu0 %v244
    %v899 = vpop.f32.mrf.mxu0
    %v900 = vadd.f32 %v200, %v899
    %901 = vmatmul.f32.gmra.mxu0 %v247
    %v902 = vpop.f32.mrf.mxu0
    %v903 = vadd.f32 %v200, %v902
    %904 = vmatmul.f32.gmra.mxu0 %v250
    %v905 = vpop.f32.mrf.mxu0
    %v906 = vadd.f32 %v200, %v905
    %907 = vmatmul.f32.gmra.mxu0 %v253
    %v908 = vpop.f32.mrf.mxu0
    %v909 = vadd.f32 %v200, %v908
    %910 = vmatmul.f32.gmra.mxu0 %v256
    %v911 = vpop.f32.mrf.mxu0
    %v912 = vadd.f32 %v200, %v911
    %913 = vdwg.mxu0
    %914 = vmatpush.msra.mxu0 0.0
    %915 = vmatpush.msra.mxu0 0.0
    %916 = vmatpush.msra.mxu0 0.0
    %917 = vmatpush.msra.mxu0 0.0
    %918 = vmatpush.msra.mxu0 0.0
    %919 = vmatpush.msra.mxu0 0.0
    %920 = vmatpush.msra.mxu0 0.0
    %921 = vmatpush.msra.mxu0 0.0
    %922 = vmatpush.msra.mxu0 0.0
    %923 = vmatpush.msra.mxu0 0.0
    %924 = vmatpush.msra.mxu0 0.0
    %925 = vmatpush.msra.mxu0 0.0
    %926 = vmatpush.msra.mxu0 %v171
    %927 = vmatpush.msra.mxu0 %v147
    %928 = vmatpush.msra.mxu0 %v123
    %929 = vmatpush.msra.mxu0 %v99
    %930 = vmatmul.f32.gmra.mxu0 %v235
    %v931 = vpop.f32.mrf.mxu0
    %v932 = vadd.f32 %v201, %v931
    %933 = vmatmul.f32.gmra.mxu0 %v238
    %v934 = vpop.f32.mrf.mxu0
    %v935 = vadd.f32 %v201, %v934
    %936 = vmatmul.f32.gmra.mxu0 %v241
    %v937 = vpop.f32.mrf.mxu0
    %v938 = vadd.f32 %v201, %v937
    %939 = vmatmul.f32.gmra.mxu0 %v244
    %v940 = vpop.f32.mrf.mxu0
    %v941 = vadd.f32 %v201, %v940
    %942 = vmatmul.f32.gmra.mxu0 %v247
    %v943 = vpop.f32.mrf.mxu0
    %v944 = vadd.f32 %v201, %v943
    %945 = vmatmul.f32.gmra.mxu0 %v250
    %v946 = vpop.f32.mrf.mxu0
    %v947 = vadd.f32 %v201, %v946
    %948 = vmatmul.f32.gmra.mxu0 %v253
    %v949 = vpop.f32.mrf.mxu0
    %v950 = vadd.f32 %v201, %v949
    %951 = vmatmul.f32.gmra.mxu0 %v256
    %v952 = vpop.f32.mrf.mxu0
    %v953 = vadd.f32 %v201, %v952
    %954 = vdwg.mxu0
    %955 = vmatpush.msra.mxu0 0.0
    %956 = vmatpush.msra.mxu0 0.0
    %957 = vmatpush.msra.mxu0 0.0
    %958 = vmatpush.msra.mxu0 0.0
    %959 = vmatpush.msra.mxu0 0.0
    %960 = vmatpush.msra.mxu0 0.0
    %961 = vmatpush.msra.mxu0 0.0
    %962 = vmatpush.msra.mxu0 0.0
    %963 = vmatpush.msra.mxu0 0.0
    %964 = vmatpush.msra.mxu0 0.0
    %965 = vmatpush.msra.mxu0 0.0
    %966 = vmatpush.msra.mxu0 0.0
    %967 = vmatpush.msra.mxu0 %v172
    %968 = vmatpush.msra.mxu0 %v148
    %969 = vmatpush.msra.mxu0 %v124
    %970 = vmatpush.msra.mxu0 %v100
    %971 = vmatmul.f32.gmra.mxu0 %v235
    %v972 = vpop.f32.mrf.mxu0
    %v973 = vadd.f32 %v202, %v972
    %974 = vmatmul.f32.gmra.mxu0 %v238
    %v975 = vpop.f32.mrf.mxu0
    %v976 = vadd.f32 %v202, %v975
    %977 = vmatmul.f32.gmra.mxu0 %v241
    %v978 = vpop.f32.mrf.mxu0
    %v979 = vadd.f32 %v202, %v978
    %980 = vmatmul.f32.gmra.mxu0 %v244
    %v981 = vpop.f32.mrf.mxu0
    %v982 = vadd.f32 %v202, %v981
    %983 = vmatmul.f32.gmra.mxu0 %v247
    %v984 = vpop.f32.mrf.mxu0
    %v985 = vadd.f32 %v202, %v984
    %986 = vmatmul.f32.gmra.mxu0 %v250
    %v987 = vpop.f32.mrf.mxu0
    %v988 = vadd.f32 %v202, %v987
    %989 = vmatmul.f32.gmra.mxu0 %v253
    %v990 = vpop.f32.mrf.mxu0
    %v991 = vadd.f32 %v202, %v990
    %992 = vmatmul.f32.gmra.mxu0 %v256
    %v993 = vpop.f32.mrf.mxu0
    %v994 = vadd.f32 %v202, %v993
    %995 = vdwg.mxu0
    %996 = vmatpush.msra.mxu0 0.0
    %997 = vmatpush.msra.mxu0 0.0
    %998 = vmatpush.msra.mxu0 0.0
    %999 = vmatpush.msra.mxu0 0.0
    %1000 = vmatpush.msra.mxu0 0.0
    %1001 = vmatpush.msra.mxu0 0.0
    %1002 = vmatpush.msra.mxu0 0.0
    %1003 = vmatpush.msra.mxu0 0.0
    %1004 = vmatpush.msra.mxu0 0.0
    %1005 = vmatpush.msra.mxu0 0.0
    %1006 = vmatpush.msra.mxu0 0.0
    %1007 = vmatpush.msra.mxu0 0.0
    %1008 = vmatpush.msra.mxu0 %v173
    %1009 = vmatpush.msra.mxu0 %v149
    %1010 = vmatpush.msra.mxu0 %v125
    %1011 = vmatpush.msra.mxu0 %v101
    %1012 = vmatmul.f32.gmra.mxu0 %v235
    %v1013 = vpop.f32.mrf.mxu0
    %v1014 = vadd.f32 %v203, %v1013
    %1015 = vmatmul.f32.gmra.mxu0 %v238
    %v1016 = vpop.f32.mrf.mxu0
    %v1017 = vadd.f32 %v203, %v1016
    %1018 = vmatmul.f32.gmra.mxu0 %v241
    %v1019 = vpop.f32.mrf.mxu0
    %v1020 = vadd.f32 %v203, %v1019
    %1021 = vmatmul.f32.gmra.mxu0 %v244
    %v1022 = vpop.f32.mrf.mxu0
    %v1023 = vadd.f32 %v203, %v1022
    %1024 = vmatmul.f32.gmra.mxu0 %v247
    %v1025 = vpop.f32.mrf.mxu0
    %v1026 = vadd.f32 %v203, %v1025
    %1027 = vmatmul.f32.gmra.mxu0 %v250
    %v1028 = vpop.f32.mrf.mxu0
    %v1029 = vadd.f32 %v203, %v1028
    %1030 = vmatmul.f32.gmra.mxu0 %v253
    %v1031 = vpop.f32.mrf.mxu0
    %v1032 = vadd.f32 %v203, %v1031
    %1033 = vmatmul.f32.gmra.mxu0 %v256
    %v1034 = vpop.f32.mrf.mxu0
    %v1035 = vadd.f32 %v203, %v1034
    %1036 = vdwg.mxu0
    %1037 = vmatpush.msra.mxu0 0.0
    %1038 = vmatpush.msra.mxu0 0.0
    %1039 = vmatpush.msra.mxu0 0.0
    %1040 = vmatpush.msra.mxu0 0.0
    %1041 = vmatpush.msra.mxu0 0.0
    %1042 = vmatpush.msra.mxu0 0.0
    %1043 = vmatpush.msra.mxu0 0.0
    %1044 = vmatpush.msra.mxu0 0.0
    %1045 = vmatpush.msra.mxu0 0.0
    %1046 = vmatpush.msra.mxu0 0.0
    %1047 = vmatpush.msra.mxu0 0.0
    %1048 = vmatpush.msra.mxu0 0.0
    %1049 = vmatpush.msra.mxu0 %v174
    %1050 = vmatpush.msra.mxu0 %v150
    %1051 = vmatpush.msra.mxu0 %v126
    %1052 = vmatpush.msra.mxu0 %v102
    %1053 = vmatmul.f32.gmra.mxu0 %v235
    %v1054 = vpop.f32.mrf.mxu0
    %v1055 = vadd.f32 %v204, %v1054
    %1056 = vmatmul.f32.gmra.mxu0 %v238
    %v1057 = vpop.f32.mrf.mxu0
    %v1058 = vadd.f32 %v204, %v1057
    %1059 = vmatmul.f32.gmra.mxu0 %v241
    %v1060 = vpop.f32.mrf.mxu0
    %v1061 = vadd.f32 %v204, %v1060
    %1062 = vmatmul.f32.gmra.mxu0 %v244
    %v1063 = vpop.f32.mrf.mxu0
    %v1064 = vadd.f32 %v204, %v1063
    %1065 = vmatmul.f32.gmra.mxu0 %v247
    %v1066 = vpop.f32.mrf.mxu0
    %v1067 = vadd.f32 %v204, %v1066
    %1068 = vmatmul.f32.gmra.mxu0 %v250
    %v1069 = vpop.f32.mrf.mxu0
    %v1070 = vadd.f32 %v204, %v1069
    %1071 = vmatmul.f32.gmra.mxu0 %v253
    %v1072 = vpop.f32.mrf.mxu0
    %v1073 = vadd.f32 %v204, %v1072
    %1074 = vmatmul.f32.gmra.mxu0 %v256
    %v1075 = vpop.f32.mrf.mxu0
    %v1076 = vadd.f32 %v204, %v1075
    %1077 = vdwg.mxu0
    %1078 = vmatpush.msra.mxu0 0.0
    %1079 = vmatpush.msra.mxu0 0.0
    %1080 = vmatpush.msra.mxu0 0.0
    %1081 = vmatpush.msra.mxu0 0.0
    %1082 = vmatpush.msra.mxu0 0.0
    %1083 = vmatpush.msra.mxu0 0.0
    %1084 = vmatpush.msra.mxu0 0.0
    %1085 = vmatpush.msra.mxu0 0.0
    %1086 = vmatpush.msra.mxu0 0.0
    %1087 = vmatpush.msra.mxu0 0.0
    %1088 = vmatpush.msra.mxu0 0.0
    %1089 = vmatpush.msra.mxu0 0.0
    %1090 = vmatpush.msra.mxu0 %v175
    %1091 = vmatpush.msra.mxu0 %v151
    %1092 = vmatpush.msra.mxu0 %v127
    %1093 = vmatpush.msra.mxu0 %v103
    %1094 = vmatmul.f32.gmra.mxu0 %v235
    %v1095 = vpop.f32.mrf.mxu0
    %v1096 = vadd.f32 %v205, %v1095
    %1097 = vmatmul.f32.gmra.mxu0 %v238
    %v1098 = vpop.f32.mrf.mxu0
    %v1099 = vadd.f32 %v205, %v1098
    %1100 = vmatmul.f32.gmra.mxu0 %v241
    %v1101 = vpop.f32.mrf.mxu0
    %v1102 = vadd.f32 %v205, %v1101
    %1103 = vmatmul.f32.gmra.mxu0 %v244
    %v1104 = vpop.f32.mrf.mxu0
    %v1105 = vadd.f32 %v205, %v1104
    %1106 = vmatmul.f32.gmra.mxu0 %v247
    %v1107 = vpop.f32.mrf.mxu0
    %v1108 = vadd.f32 %v205, %v1107
    %1109 = vmatmul.f32.gmra.mxu0 %v250
    %v1110 = vpop.f32.mrf.mxu0
    %v1111 = vadd.f32 %v205, %v1110
    %1112 = vmatmul.f32.gmra.mxu0 %v253
    %v1113 = vpop.f32.mrf.mxu0
    %v1114 = vadd.f32 %v205, %v1113
    %1115 = vmatmul.f32.gmra.mxu0 %v256
    %v1116 = vpop.f32.mrf.mxu0
    %v1117 = vadd.f32 %v205, %v1116
    %1118 = vdwg.mxu0
    %1119 = vmatpush.msra.mxu0 0.0
    %1120 = vmatpush.msra.mxu0 0.0
    %1121 = vmatpush.msra.mxu0 0.0
    %1122 = vmatpush.msra.mxu0 0.0
    %1123 = vmatpush.msra.mxu0 0.0
    %1124 = vmatpush.msra.mxu0 0.0
    %1125 = vmatpush.msra.mxu0 0.0
    %1126 = vmatpush.msra.mxu0 0.0
    %1127 = vmatpush.msra.mxu0 0.0
    %1128 = vmatpush.msra.mxu0 0.0
    %1129 = vmatpush.msra.mxu0 0.0
    %1130 = vmatpush.msra.mxu0 0.0
    %1131 = vmatpush.msra.mxu0 %v176
    %1132 = vmatpush.msra.mxu0 %v152
    %1133 = vmatpush.msra.mxu0 %v128
    %1134 = vmatpush.msra.mxu0 %v104
    %1135 = vmatmul.f32.gmra.mxu0 %v235
    %v1136 = vpop.f32.mrf.mxu0
    %v1137 = vadd.f32 %v206, %v1136
    %1138 = vmatmul.f32.gmra.mxu0 %v238
    %v1139 = vpop.f32.mrf.mxu0
    %v1140 = vadd.f32 %v206, %v1139
    %1141 = vmatmul.f32.gmra.mxu0 %v241
    %v1142 = vpop.f32.mrf.mxu0
    %v1143 = vadd.f32 %v206, %v1142
    %1144 = vmatmul.f32.gmra.mxu0 %v244
    %v1145 = vpop.f32.mrf.mxu0
    %v1146 = vadd.f32 %v206, %v1145
    %1147 = vmatmul.f32.gmra.mxu0 %v247
    %v1148 = vpop.f32.mrf.mxu0
    %v1149 = vadd.f32 %v206, %v1148
    %1150 = vmatmul.f32.gmra.mxu0 %v250
    %v1151 = vpop.f32.mrf.mxu0
    %v1152 = vadd.f32 %v206, %v1151
    %1153 = vmatmul.f32.gmra.mxu0 %v253
    %v1154 = vpop.f32.mrf.mxu0
    %v1155 = vadd.f32 %v206, %v1154
    %1156 = vmatmul.f32.gmra.mxu0 %v256
    %v1157 = vpop.f32.mrf.mxu0
    %v1158 = vadd.f32 %v206, %v1157
    %1159 = vdwg.mxu0
    %1160 = vmatpush.msra.mxu0 0.0
    %1161 = vmatpush.msra.mxu0 0.0
    %1162 = vmatpush.msra.mxu0 0.0
    %1163 = vmatpush.msra.mxu0 0.0
    %1164 = vmatpush.msra.mxu0 0.0
    %1165 = vmatpush.msra.mxu0 0.0
    %1166 = vmatpush.msra.mxu0 0.0
    %1167 = vmatpush.msra.mxu0 0.0
    %1168 = vmatpush.msra.mxu0 0.0
    %1169 = vmatpush.msra.mxu0 0.0
    %1170 = vmatpush.msra.mxu0 0.0
    %1171 = vmatpush.msra.mxu0 0.0
    %1172 = vmatpush.msra.mxu0 %v177
    %1173 = vmatpush.msra.mxu0 %v153
    %1174 = vmatpush.msra.mxu0 %v129
    %1175 = vmatpush.msra.mxu0 %v105
    %1176 = vmatmul.f32.gmra.mxu0 %v235
    %v1177 = vpop.f32.mrf.mxu0
    %v1178 = vadd.f32 %v207, %v1177
    %1179 = vmatmul.f32.gmra.mxu0 %v238
    %v1180 = vpop.f32.mrf.mxu0
    %v1181 = vadd.f32 %v207, %v1180
    %1182 = vmatmul.f32.gmra.mxu0 %v241
    %v1183 = vpop.f32.mrf.mxu0
    %v1184 = vadd.f32 %v207, %v1183
    %1185 = vmatmul.f32.gmra.mxu0 %v244
    %v1186 = vpop.f32.mrf.mxu0
    %v1187 = vadd.f32 %v207, %v1186
    %1188 = vmatmul.f32.gmra.mxu0 %v247
    %v1189 = vpop.f32.mrf.mxu0
    %v1190 = vadd.f32 %v207, %v1189
    %1191 = vmatmul.f32.gmra.mxu0 %v250
    %v1192 = vpop.f32.mrf.mxu0
    %v1193 = vadd.f32 %v207, %v1192
    %1194 = vmatmul.f32.gmra.mxu0 %v253
    %v1195 = vpop.f32.mrf.mxu0
    %v1196 = vadd.f32 %v207, %v1195
    %1197 = vmatmul.f32.gmra.mxu0 %v256
    %v1198 = vpop.f32.mrf.mxu0
    %v1199 = vadd.f32 %v207, %v1198
    %1200 = vdwg.mxu0
    %1201 = vmatpush.msra.mxu0 0.0
    %1202 = vmatpush.msra.mxu0 0.0
    %1203 = vmatpush.msra.mxu0 0.0
    %1204 = vmatpush.msra.mxu0 0.0
    %1205 = vmatpush.msra.mxu0 0.0
    %1206 = vmatpush.msra.mxu0 0.0
    %1207 = vmatpush.msra.mxu0 0.0
    %1208 = vmatpush.msra.mxu0 0.0
    %1209 = vmatpush.msra.mxu0 0.0
    %1210 = vmatpush.msra.mxu0 0.0
    %1211 = vmatpush.msra.mxu0 0.0
    %1212 = vmatpush.msra.mxu0 0.0
    %1213 = vmatpush.msra.mxu0 %v178
    %1214 = vmatpush.msra.mxu0 %v154
    %1215 = vmatpush.msra.mxu0 %v130
    %1216 = vmatpush.msra.mxu0 %v106
    %1217 = vmatmul.f32.gmra.mxu0 %v235
    %v1218 = vpop.f32.mrf.mxu0
    %v1219 = vadd.f32 %v208, %v1218
    %1220 = vmatmul.f32.gmra.mxu0 %v238
    %v1221 = vpop.f32.mrf.mxu0
    %v1222 = vadd.f32 %v208, %v1221
    %1223 = vmatmul.f32.gmra.mxu0 %v241
    %v1224 = vpop.f32.mrf.mxu0
    %v1225 = vadd.f32 %v208, %v1224
    %1226 = vmatmul.f32.gmra.mxu0 %v244
    %v1227 = vpop.f32.mrf.mxu0
    %v1228 = vadd.f32 %v208, %v1227
    %1229 = vmatmul.f32.gmra.mxu0 %v247
    %v1230 = vpop.f32.mrf.mxu0
    %v1231 = vadd.f32 %v208, %v1230
    %1232 = vmatmul.f32.gmra.mxu0 %v250
    %v1233 = vpop.f32.mrf.mxu0
    %v1234 = vadd.f32 %v208, %v1233
    %1235 = vmatmul.f32.gmra.mxu0 %v253
    %v1236 = vpop.f32.mrf.mxu0
    %v1237 = vadd.f32 %v208, %v1236
    %1238 = vmatmul.f32.gmra.mxu0 %v256
    %v1239 = vpop.f32.mrf.mxu0
    %v1240 = vadd.f32 %v208, %v1239
    %1241 = vdwg.mxu0
    %1242 = vst [vmem:[#allocation2] sm:$0xff] %v276
    %1243 = vst [vmem:[#allocation2 + $0x8] sm:$0xff] %v317
    %1244 = vst [vmem:[#allocation2 + $0x10] sm:$0xff] %v358
    %1245 = vst [vmem:[#allocation2 + $0x18] sm:$0xff] %v399
    %1246 = vst [vmem:[#allocation2 + $0x20] sm:$0xff] %v440
    %1247 = vst [vmem:[#allocation2 + $0x28] sm:$0xff] %v481
    %1248 = vst [vmem:[#allocation2 + $0x30] sm:$0xff] %v522
    %1249 = vst [vmem:[#allocation2 + $0x38] sm:$0xff] %v563
    %1250 = vst [vmem:[#allocation2 + $0x40] sm:$0xff] %v604
    %1251 = vst [vmem:[#allocation2 + $0x48] sm:$0xff] %v645
    %1252 = vst [vmem:[#allocation2 + $0x50] sm:$0xff] %v686
    %1253 = vst [vmem:[#allocation2 + $0x58] sm:$0xff] %v727
    %1254 = vst [vmem:[#allocation2 + $0x60] sm:$0xff] %v768
    %1255 = vst [vmem:[#allocation2 + $0x68] sm:$0xff] %v809
    %1256 = vst [vmem:[#allocation2 + $0x70] sm:$0xff] %v850
    %1257 = vst [vmem:[#allocation2 + $0x78] sm:$0xff] %v891
    %1258 = vst [vmem:[#allocation2 + $0x80] sm:$0xff] %v932
    %1259 = vst [vmem:[#allocation2 + $0x88] sm:$0xff] %v973
    %1260 = vst [vmem:[#allocation2 + $0x90] sm:$0xff] %v1014
    %1261 = vst [vmem:[#allocation2 + $0x98] sm:$0xff] %v1055
    %1262 = vst [vmem:[#allocation2 + $0xa0] sm:$0xff] %v1096
    %1263 = vst [vmem:[#allocation2 + $0xa8] sm:$0xff] %v1137
    %1264 = vst [vmem:[#allocation2 + $0xb0] sm:$0xff] %v1178
    %1265 = vst [vmem:[#allocation2 + $0xb8] sm:$0xff] %v1219
    %1266 = vst [vmem:[#allocation2 + $0xc0] sm:$0xff] %v279
    %1267 = vst [vmem:[#allocation2 + $0xc8] sm:$0xff] %v320
    %1268 = vst [vmem:[#allocation2 + $0xd0] sm:$0xff] %v361
    %1269 = vst [vmem:[#allocation2 + $0xd8] sm:$0xff] %v402
    %1270 = vst [vmem:[#allocation2 + $0xe0] sm:$0xff] %v443
    %1271 = vst [vmem:[#allocation2 + $0xe8] sm:$0xff] %v484
    %1272 = vst [vmem:[#allocation2 + $0xf0] sm:$0xff] %v525
    %1273 = vst [vmem:[#allocation2 + $0xf8] sm:$0xff] %v566
    %1274 = vst [vmem:[#allocation2 + $0x100] sm:$0xff] %v607
    %1275 = vst [vmem:[#allocation2 + $0x108] sm:$0xff] %v648
    %1276 = vst [vmem:[#allocation2 + $0x110] sm:$0xff] %v689
    %1277 = vst [vmem:[#allocation2 + $0x118] sm:$0xff] %v730
    %1278 = vst [vmem:[#allocation2 + $0x120] sm:$0xff] %v771
    %1279 = vst [vmem:[#allocation2 + $0x128] sm:$0xff] %v812
    %1280 = vst [vmem:[#allocation2 + $0x130] sm:$0xff] %v853
    %1281 = vst [vmem:[#allocation2 + $0x138] sm:$0xff] %v894
    %1282 = vst [vmem:[#allocation2 + $0x140] sm:$0xff] %v935
    %1283 = vst [vmem:[#allocation2 + $0x148] sm:$0xff] %v976
    %1284 = vst [vmem:[#allocation2 + $0x150] sm:$0xff] %v1017
    %1285 = vst [vmem:[#allocation2 + $0x158] sm:$0xff] %v1058
    %1286 = vst [vmem:[#allocation2 + $0x160] sm:$0xff] %v1099
    %1287 = vst [vmem:[#allocation2 + $0x168] sm:$0xff] %v1140
    %1288 = vst [vmem:[#allocation2 + $0x170] sm:$0xff] %v1181
    %1289 = vst [vmem:[#allocation2 + $0x178] sm:$0xff] %v1222
    %1290 = vst [vmem:[#allocation2 + $0x180] sm:$0xff] %v282
    %1291 = vst [vmem:[#allocation2 + $0x188] sm:$0xff] %v323
    %1292 = vst [vmem:[#allocation2 + $0x190] sm:$0xff] %v364
    %1293 = vst [vmem:[#allocation2 + $0x198] sm:$0xff] %v405
    %1294 = vst [vmem:[#allocation2 + $0x1a0] sm:$0xff] %v446
    %1295 = vst [vmem:[#allocation2 + $0x1a8] sm:$0xff] %v487
    %1296 = vst [vmem:[#allocation2 + $0x1b0] sm:$0xff] %v528
    %1297 = vst [vmem:[#allocation2 + $0x1b8] sm:$0xff] %v569
    %1298 = vst [vmem:[#allocation2 + $0x1c0] sm:$0xff] %v610
    %1299 = vst [vmem:[#allocation2 + $0x1c8] sm:$0xff] %v651
    %1300 = vst [vmem:[#allocation2 + $0x1d0] sm:$0xff] %v692
    %1301 = vst [vmem:[#allocation2 + $0x1d8] sm:$0xff] %v733
    %1302 = vst [vmem:[#allocation2 + $0x1e0] sm:$0xff] %v774
    %1303 = vst [vmem:[#allocation2 + $0x1e8] sm:$0xff] %v815
    %1304 = vst [vmem:[#allocation2 + $0x1f0] sm:$0xff] %v856
    %1305 = vst [vmem:[#allocation2 + $0x1f8] sm:$0xff] %v897
    %1306 = vst [vmem:[#allocation2 + $0x200] sm:$0xff] %v938
    %1307 = vst [vmem:[#allocation2 + $0x208] sm:$0xff] %v979
    %1308 = vst [vmem:[#allocation2 + $0x210] sm:$0xff] %v1020
    %1309 = vst [vmem:[#allocation2 + $0x218] sm:$0xff] %v1061
    %1310 = vst [vmem:[#allocation2 + $0x220] sm:$0xff] %v1102
    %1311 = vst [vmem:[#allocation2 + $0x228] sm:$0xff] %v1143
    %1312 = vst [vmem:[#allocation2 + $0x230] sm:$0xff] %v1184
    %1313 = vst [vmem:[#allocation2 + $0x238] sm:$0xff] %v1225
    %1314 = vst [vmem:[#allocation2 + $0x240] sm:$0xff] %v285
    %1315 = vst [vmem:[#allocation2 + $0x248] sm:$0xff] %v326
    %1316 = vst [vmem:[#allocation2 + $0x250] sm:$0xff] %v367
    %1317 = vst [vmem:[#allocation2 + $0x258] sm:$0xff] %v408
    %1318 = vst [vmem:[#allocation2 + $0x260] sm:$0xff] %v449
    %1319 = vst [vmem:[#allocation2 + $0x268] sm:$0xff] %v490
    %1320 = vst [vmem:[#allocation2 + $0x270] sm:$0xff] %v531
    %1321 = vst [vmem:[#allocation2 + $0x278] sm:$0xff] %v572
    %1322 = vst [vmem:[#allocation2 + $0x280] sm:$0xff] %v613
    %1323 = vst [vmem:[#allocation2 + $0x288] sm:$0xff] %v654
    %1324 = vst [vmem:[#allocation2 + $0x290] sm:$0xff] %v695
    %1325 = vst [vmem:[#allocation2 + $0x298] sm:$0xff] %v736
    %1326 = vst [vmem:[#allocation2 + $0x2a0] sm:$0xff] %v777
    %1327 = vst [vmem:[#allocation2 + $0x2a8] sm:$0xff] %v818
    %1328 = vst [vmem:[#allocation2 + $0x2b0] sm:$0xff] %v859
    %1329 = vst [vmem:[#allocation2 + $0x2b8] sm:$0xff] %v900
    %1330 = vst [vmem:[#allocation2 + $0x2c0] sm:$0xff] %v941
    %1331 = vst [vmem:[#allocation2 + $0x2c8] sm:$0xff] %v982
    %1332 = vst [vmem:[#allocation2 + $0x2d0] sm:$0xff] %v1023
    %1333 = vst [vmem:[#allocation2 + $0x2d8] sm:$0xff] %v1064
    %1334 = vst [vmem:[#allocation2 + $0x2e0] sm:$0xff] %v1105
    %1335 = vst [vmem:[#allocation2 + $0x2e8] sm:$0xff] %v1146
    %1336 = vst [vmem:[#allocation2 + $0x2f0] sm:$0xff] %v1187
    %1337 = vst [vmem:[#allocation2 + $0x2f8] sm:$0xff] %v1228
    %1338 = vst [vmem:[#allocation2 + $0x300] sm:$0xff] %v288
    %1339 = vst [vmem:[#allocation2 + $0x308] sm:$0xff] %v329
    %1340 = vst [vmem:[#allocation2 + $0x310] sm:$0xff] %v370
    %1341 = vst [vmem:[#allocation2 + $0x318] sm:$0xff] %v411
    %1342 = vst [vmem:[#allocation2 + $0x320] sm:$0xff] %v452
    %1343 = vst [vmem:[#allocation2 + $0x328] sm:$0xff] %v493
    %1344 = vst [vmem:[#allocation2 + $0x330] sm:$0xff] %v534
    %1345 = vst [vmem:[#allocation2 + $0x338] sm:$0xff] %v575
    %1346 = vst [vmem:[#allocation2 + $0x340] sm:$0xff] %v616
    %1347 = vst [vmem:[#allocation2 + $0x348] sm:$0xff] %v657
    %1348 = vst [vmem:[#allocation2 + $0x350] sm:$0xff] %v698
    %1349 = vst [vmem:[#allocation2 + $0x358] sm:$0xff] %v739
    %1350 = vst [vmem:[#allocation2 + $0x360] sm:$0xff] %v780
    %1351 = vst [vmem:[#allocation2 + $0x368] sm:$0xff] %v821
    %1352 = vst [vmem:[#allocation2 + $0x370] sm:$0xff] %v862
    %1353 = vst [vmem:[#allocation2 + $0x378] sm:$0xff] %v903
    %1354 = vst [vmem:[#allocation2 + $0x380] sm:$0xff] %v944
    %1355 = vst [vmem:[#allocation2 + $0x388] sm:$0xff] %v985
    %1356 = vst [vmem:[#allocation2 + $0x390] sm:$0xff] %v1026
    %1357 = vst [vmem:[#allocation2 + $0x398] sm:$0xff] %v1067
    %1358 = vst [vmem:[#allocation2 + $0x3a0] sm:$0xff] %v1108
    %1359 = vst [vmem:[#allocation2 + $0x3a8] sm:$0xff] %v1149
    %1360 = vst [vmem:[#allocation2 + $0x3b0] sm:$0xff] %v1190
    %1361 = vst [vmem:[#allocation2 + $0x3b8] sm:$0xff] %v1231
    %1362 = vst [vmem:[#allocation2 + $0x3c0] sm:$0xff] %v291
    %1363 = vst [vmem:[#allocation2 + $0x3c8] sm:$0xff] %v332
    %1364 = vst [vmem:[#allocation2 + $0x3d0] sm:$0xff] %v373
    %1365 = vst [vmem:[#allocation2 + $0x3d8] sm:$0xff] %v414
    %1366 = vst [vmem:[#allocation2 + $0x3e0] sm:$0xff] %v455
    %1367 = vst [vmem:[#allocation2 + $0x3e8] sm:$0xff] %v496
    %1368 = vst [vmem:[#allocation2 + $0x3f0] sm:$0xff] %v537
    %1369 = vst [vmem:[#allocation2 + $0x3f8] sm:$0xff] %v578
    %1370 = vst [vmem:[#allocation2 + $0x400] sm:$0xff] %v619
    %1371 = vst [vmem:[#allocation2 + $0x408] sm:$0xff] %v660
    %1372 = vst [vmem:[#allocation2 + $0x410] sm:$0xff] %v701
    %1373 = vst [vmem:[#allocation2 + $0x418] sm:$0xff] %v742
    %1374 = vst [vmem:[#allocation2 + $0x420] sm:$0xff] %v783
    %1375 = vst [vmem:[#allocation2 + $0x428] sm:$0xff] %v824
    %1376 = vst [vmem:[#allocation2 + $0x430] sm:$0xff] %v865
    %1377 = vst [vmem:[#allocation2 + $0x438] sm:$0xff] %v906
    %1378 = vst [vmem:[#allocation2 + $0x440] sm:$0xff] %v947
    %1379 = vst [vmem:[#allocation2 + $0x448] sm:$0xff] %v988
    %1380 = vst [vmem:[#allocation2 + $0x450] sm:$0xff] %v1029
    %1381 = vst [vmem:[#allocation2 + $0x458] sm:$0xff] %v1070
    %1382 = vst [vmem:[#allocation2 + $0x460] sm:$0xff] %v1111
    %1383 = vst [vmem:[#allocation2 + $0x468] sm:$0xff] %v1152
    %1384 = vst [vmem:[#allocation2 + $0x470] sm:$0xff] %v1193
    %1385 = vst [vmem:[#allocation2 + $0x478] sm:$0xff] %v1234
    %1386 = vst [vmem:[#allocation2 + $0x480] sm:$0xff] %v294
    %1387 = vst [vmem:[#allocation2 + $0x488] sm:$0xff] %v335
    %1388 = vst [vmem:[#allocation2 + $0x490] sm:$0xff] %v376
    %1389 = vst [vmem:[#allocation2 + $0x498] sm:$0xff] %v417
    %1390 = vst [vmem:[#allocation2 + $0x4a0] sm:$0xff] %v458
    %1391 = vst [vmem:[#allocation2 + $0x4a8] sm:$0xff] %v499
    %1392 = vst [vmem:[#allocation2 + $0x4b0] sm:$0xff] %v540
    %1393 = vst [vmem:[#allocation2 + $0x4b8] sm:$0xff] %v581
    %1394 = vst [vmem:[#allocation2 + $0x4c0] sm:$0xff] %v622
    %1395 = vst [vmem:[#allocation2 + $0x4c8] sm:$0xff] %v663
    %1396 = vst [vmem:[#allocation2 + $0x4d0] sm:$0xff] %v704
    %1397 = vst [vmem:[#allocation2 + $0x4d8] sm:$0xff] %v745
    %1398 = vst [vmem:[#allocation2 + $0x4e0] sm:$0xff] %v786
    %1399 = vst [vmem:[#allocation2 + $0x4e8] sm:$0xff] %v827
    %1400 = vst [vmem:[#allocation2 + $0x4f0] sm:$0xff] %v868
    %1401 = vst [vmem:[#allocation2 + $0x4f8] sm:$0xff] %v909
    %1402 = vst [vmem:[#allocation2 + $0x500] sm:$0xff] %v950
    %1403 = vst [vmem:[#allocation2 + $0x508] sm:$0xff] %v991
    %1404 = vst [vmem:[#allocation2 + $0x510] sm:$0xff] %v1032
    %1405 = vst [vmem:[#allocation2 + $0x518] sm:$0xff] %v1073
    %1406 = vst [vmem:[#allocation2 + $0x520] sm:$0xff] %v1114
    %1407 = vst [vmem:[#allocation2 + $0x528] sm:$0xff] %v1155
    %1408 = vst [vmem:[#allocation2 + $0x530] sm:$0xff] %v1196
    %1409 = vst [vmem:[#allocation2 + $0x538] sm:$0xff] %v1237
    %1410 = vst [vmem:[#allocation2 + $0x540] sm:$0xff] %v297
    %1411 = vst [vmem:[#allocation2 + $0x548] sm:$0xff] %v338
    %1412 = vst [vmem:[#allocation2 + $0x550] sm:$0xff] %v379
    %1413 = vst [vmem:[#allocation2 + $0x558] sm:$0xff] %v420
    %1414 = vst [vmem:[#allocation2 + $0x560] sm:$0xff] %v461
    %1415 = vst [vmem:[#allocation2 + $0x568] sm:$0xff] %v502
    %1416 = vst [vmem:[#allocation2 + $0x570] sm:$0xff] %v543
    %1417 = vst [vmem:[#allocation2 + $0x578] sm:$0xff] %v584
    %1418 = vst [vmem:[#allocation2 + $0x580] sm:$0xff] %v625
    %1419 = vst [vmem:[#allocation2 + $0x588] sm:$0xff] %v666
    %1420 = vst [vmem:[#allocation2 + $0x590] sm:$0xff] %v707
    %1421 = vst [vmem:[#allocation2 + $0x598] sm:$0xff] %v748
    %1422 = vst [vmem:[#allocation2 + $0x5a0] sm:$0xff] %v789
    %1423 = vst [vmem:[#allocation2 + $0x5a8] sm:$0xff] %v830
    %1424 = vst [vmem:[#allocation2 + $0x5b0] sm:$0xff] %v871
    %1425 = vst [vmem:[#allocation2 + $0x5b8] sm:$0xff] %v912
    %1426 = vst [vmem:[#allocation2 + $0x5c0] sm:$0xff] %v953
    %1427 = vst [vmem:[#allocation2 + $0x5c8] sm:$0xff] %v994
    %1428 = vst [vmem:[#allocation2 + $0x5d0] sm:$0xff] %v1035
    %1429 = vst [vmem:[#allocation2 + $0x5d8] sm:$0xff] %v1076
    %1430 = vst [vmem:[#allocation2 + $0x5e0] sm:$0xff] %v1117
    %1431 = vst [vmem:[#allocation2 + $0x5e8] sm:$0xff] %v1158
    %1432 = vst [vmem:[#allocation2 + $0x5f0] sm:$0xff] %v1199
    %1433 = vst [vmem:[#allocation2 + $0x5f8] sm:$0xff] %v1240
    %v1434 = vld [vmem:[#allocation7] sm:$0xff]
    %v1435 = vld [vmem:[#allocation7 + $0x8] sm:$0xf]
    %v1436 = vld [vmem:[#allocation7 + $0xc] sm:$0xff]
    %v1437 = vld [vmem:[#allocation7 + $0x14] sm:$0xf]
    %v1438 = vld [vmem:[#allocation7 + $0x18] sm:$0xff]
    %v1439 = vld [vmem:[#allocation7 + $0x20] sm:$0xf]
    %v1440 = vld [vmem:[#allocation7 + $0x24] sm:$0xff]
    %v1441 = vld [vmem:[#allocation7 + $0x2c] sm:$0xf]
    %v1442 = vld [vmem:[#allocation7 + $0x30] sm:$0xff]
    %v1443 = vld [vmem:[#allocation7 + $0x38] sm:$0xf]
    %v1444 = vld [vmem:[#allocation7 + $0x3c] sm:$0xff]
    %v1445 = vld [vmem:[#allocation7 + $0x44] sm:$0xf]
    %v1446 = vld [vmem:[#allocation7 + $0x48] sm:$0xff]
    %v1447 = vld [vmem:[#allocation7 + $0x50] sm:$0xf]
    %v1448 = vld [vmem:[#allocation7 + $0x54] sm:$0xff]
    %v1449 = vld [vmem:[#allocation7 + $0x5c] sm:$0xf]
    %v1450 = vld [vmem:[#allocation7 + $0x60] sm:$0xff]
    %v1451 = vld [vmem:[#allocation7 + $0x68] sm:$0xf]
    %v1452 = vld [vmem:[#allocation7 + $0x6c] sm:$0xff]
    %v1453 = vld [vmem:[#allocation7 + $0x74] sm:$0xf]
    %v1454 = vld [vmem:[#allocation7 + $0x78] sm:$0xff]
    %v1455 = vld [vmem:[#allocation7 + $0x80] sm:$0xf]
    %v1456 = vld [vmem:[#allocation7 + $0x84] sm:$0xff]
    %v1457 = vld [vmem:[#allocation7 + $0x8c] sm:$0xf]
    %v1458 = vld [vmem:[#allocation7 + $0x90] sm:$0xff]
    %v1459 = vld [vmem:[#allocation7 + $0x98] sm:$0xf]
    %v1460 = vld [vmem:[#allocation7 + $0x9c] sm:$0xff]
    %v1461 = vld [vmem:[#allocation7 + $0xa4] sm:$0xf]
    %v1462 = vld [vmem:[#allocation7 + $0xa8] sm:$0xff]
    %v1463 = vld [vmem:[#allocation7 + $0xb0] sm:$0xf]
    %v1464 = vld [vmem:[#allocation7 + $0xb4] sm:$0xff]
    %v1465 = vld [vmem:[#allocation7 + $0xbc] sm:$0xf]
    %v1466 = vld [vmem:[%s3] sm:$0x1]
    %v1468 = vperm.slane %v1466, 0
    %v1470 = vld [vmem:[#allocation2] sm:$0xff]
    %v1471 = vld [vmem:[#allocation2 + $0x8] sm:$0xff]
    %v1472 = vld [vmem:[#allocation2 + $0x10] sm:$0xff]
    %v1473 = vld [vmem:[#allocation2 + $0xc0] sm:$0xff]
    %v1474 = vld [vmem:[#allocation2 + $0xc8] sm:$0xff]
    %v1475 = vld [vmem:[#allocation2 + $0xd0] sm:$0xff]
    %v1476 = vld [vmem:[#allocation2 + $0x180] sm:$0xff]
    %v1477 = vld [vmem:[#allocation2 + $0x188] sm:$0xff]
    %v1478 = vld [vmem:[#allocation2 + $0x190] sm:$0xff]
    %v1479 = vld [vmem:[#allocation2 + $0x240] sm:$0xff]
    %v1480 = vld [vmem:[#allocation2 + $0x248] sm:$0xff]
    %v1481 = vld [vmem:[#allocation2 + $0x250] sm:$0xff]
    %v1482 = vld [vmem:[#allocation2 + $0x300] sm:$0xff]
    %v1483 = vld [vmem:[#allocation2 + $0x308] sm:$0xff]
    %v1484 = vld [vmem:[#allocation2 + $0x310] sm:$0xff]
    %v1485 = vld [vmem:[#allocation2 + $0x3c0] sm:$0xff]
    %v1486 = vld [vmem:[#allocation2 + $0x3c8] sm:$0xff]
    %v1487 = vld [vmem:[#allocation2 + $0x3d0] sm:$0xff]
    %v1488 = vld [vmem:[#allocation2 + $0x480] sm:$0xff]
    %v1489 = vld [vmem:[#allocation2 + $0x488] sm:$0xff]
    %v1490 = vld [vmem:[#allocation2 + $0x490] sm:$0xff]
    %v1491 = vld [vmem:[#allocation2 + $0x540] sm:$0xff]
    %v1492 = vld [vmem:[#allocation2 + $0x548] sm:$0xff]
    %v1493 = vld [vmem:[#allocation2 + $0x550] sm:$0xff]
    %v1526 = vunpack.c.l.b16 %v1434
    %v1527 = vunpack.c.h.b16 %v1434
    %v1528 = vunpack.c.l.b16 %v1435
    %v1529 = vunpack.c.l.b16 %v1436
    %v1530 = vunpack.c.h.b16 %v1436
    %v1531 = vunpack.c.l.b16 %v1437
    %v1532 = vunpack.c.l.b16 %v1438
    %v1533 = vunpack.c.h.b16 %v1438
    %v1534 = vunpack.c.l.b16 %v1439
    %v1535 = vunpack.c.l.b16 %v1440
    %v1536 = vunpack.c.h.b16 %v1440
    %v1537 = vunpack.c.l.b16 %v1441
    %v1538 = vunpack.c.l.b16 %v1442
    %v1539 = vunpack.c.h.b16 %v1442
    %v1540 = vunpack.c.l.b16 %v1443
    %v1541 = vunpack.c.l.b16 %v1444
    %v1542 = vunpack.c.h.b16 %v1444
    %v1543 = vunpack.c.l.b16 %v1445
    %v1544 = vunpack.c.l.b16 %v1446
    %v1545 = vunpack.c.h.b16 %v1446
    %v1546 = vunpack.c.l.b16 %v1447
    %v1547 = vunpack.c.l.b16 %v1448
    %v1548 = vunpack.c.h.b16 %v1448
    %v1549 = vunpack.c.l.b16 %v1449
    %v1550 = vunpack.c.l.b16 %v1450
    %v1551 = vunpack.c.h.b16 %v1450
    %v1552 = vunpack.c.l.b16 %v1451
    %v1553 = vunpack.c.l.b16 %v1452
    %v1554 = vunpack.c.h.b16 %v1452
    %v1555 = vunpack.c.l.b16 %v1453
    %v1556 = vunpack.c.l.b16 %v1454
    %v1557 = vunpack.c.h.b16 %v1454
    %v1558 = vunpack.c.l.b16 %v1455
    %v1559 = vunpack.c.l.b16 %v1456
    %v1560 = vunpack.c.h.b16 %v1456
    %v1561 = vunpack.c.l.b16 %v1457
    %v1562 = vunpack.c.l.b16 %v1458
    %v1563 = vunpack.c.h.b16 %v1458
    %v1564 = vunpack.c.l.b16 %v1459
    %v1565 = vunpack.c.l.b16 %v1460
    %v1566 = vunpack.c.h.b16 %v1460
    %v1567 = vunpack.c.l.b16 %v1461
    %v1568 = vunpack.c.l.b16 %v1462
    %v1569 = vunpack.c.h.b16 %v1462
    %v1570 = vunpack.c.l.b16 %v1463
    %v1571 = vunpack.c.l.b16 %v1464
    %v1572 = vunpack.c.h.b16 %v1464
    %v1573 = vunpack.c.l.b16 %v1465
    %v1574 = vpack.c.b16 %v1529, %v1526
    %v1575 = vpack.c.b16 %v1530, %v1527
    %v1576 = vpack.c.b16 %v1531, %v1528
    %v1577 = vpack.c.b16 %v1535, %v1532
    %v1578 = vpack.c.b16 %v1536, %v1533
    %v1579 = vpack.c.b16 %v1537, %v1534
    %v1580 = vpack.c.b16 %v1541, %v1538
    %v1581 = vpack.c.b16 %v1542, %v1539
    %v1582 = vpack.c.b16 %v1543, %v1540
    %v1583 = vpack.c.b16 %v1547, %v1544
    %v1584 = vpack.c.b16 %v1548, %v1545
    %v1585 = vpack.c.b16 %v1549, %v1546
    %v1586 = vpack.c.b16 %v1553, %v1550
    %v1587 = vpack.c.b16 %v1554, %v1551
    %v1588 = vpack.c.b16 %v1555, %v1552
    %v1589 = vpack.c.b16 %v1559, %v1556
    %v1590 = vpack.c.b16 %v1560, %v1557
    %v1591 = vpack.c.b16 %v1561, %v1558
    %v1592 = vpack.c.b16 %v1565, %v1562
    %v1593 = vpack.c.b16 %v1566, %v1563
    %v1594 = vpack.c.b16 %v1567, %v1564
    %v1595 = vpack.c.b16 %v1571, %v1568
    %v1596 = vpack.c.b16 %v1572, %v1569
    %v1597 = vpack.c.b16 %v1573, %v1570
    %1622 = vmatpush.bf16.msra.mxu0 %v1595
    %1623 = vmatpush.bf16.msra.mxu0 %v1592
    %1624 = vmatpush.bf16.msra.mxu0 %v1589
    %1625 = vmatpush.bf16.msra.mxu0 %v1586
    %1626 = vmatpush.bf16.msra.mxu0 %v1583
    %1627 = vmatpush.bf16.msra.mxu0 %v1580
    %1628 = vmatpush.bf16.msra.mxu0 %v1577
    %1629 = vmatpush.bf16.msra.mxu0 %v1574
    %1630 = vmatmul.bf16.gmra.mxu0 0
    %v1631 = vpop.f32.mrf.mxu0
    %v1632 = vadd.f32 0.0, %v1631
    %v1633 = vpop.f32.mrf.mxu0
    %v1634 = vadd.f32 0.0, %v1633
    %1635 = vmatmul.bf16.gmra.mxu0 0
    %v1636 = vpop.f32.mrf.mxu0
    %v1637 = vadd.f32 0.0, %v1636
    %v1638 = vpop.f32.mrf.mxu0
    %v1639 = vadd.f32 0.0, %v1638
    %1640 = vmatmul.bf16.gmra.mxu0 0
    %v1641 = vpop.f32.mrf.mxu0
    %v1642 = vadd.f32 0.0, %v1641
    %v1643 = vpop.f32.mrf.mxu0
    %v1644 = vadd.f32 0.0, %v1643
    %1645 = vmatmul.bf16.gmra.mxu0 0
    %v1646 = vpop.f32.mrf.mxu0
    %v1647 = vadd.f32 0.0, %v1646
    %v1648 = vpop.f32.mrf.mxu0
    %v1649 = vadd.f32 0.0, %v1648
    %1650 = vdwg.mxu0
    %1651 = vmatpush.bf16.msra.mxu0 %v1596
    %1652 = vmatpush.bf16.msra.mxu0 %v1593
    %1653 = vmatpush.bf16.msra.mxu0 %v1590
    %1654 = vmatpush.bf16.msra.mxu0 %v1587
    %1655 = vmatpush.bf16.msra.mxu0 %v1584
    %1656 = vmatpush.bf16.msra.mxu0 %v1581
    %1657 = vmatpush.bf16.msra.mxu0 %v1578
    %1658 = vmatpush.bf16.msra.mxu0 %v1575
    %1659 = vmatmul.bf16.gmra.mxu0 0
    %v1660 = vpop.f32.mrf.mxu0
    %v1661 = vadd.f32 0.0, %v1660
    %v1662 = vpop.f32.mrf.mxu0
    %v1663 = vadd.f32 0.0, %v1662
    %1664 = vmatmul.bf16.gmra.mxu0 0
    %v1665 = vpop.f32.mrf.mxu0
    %v1666 = vadd.f32 0.0, %v1665
    %v1667 = vpop.f32.mrf.mxu0
    %v1668 = vadd.f32 0.0, %v1667
    %1669 = vmatmul.bf16.gmra.mxu0 0
    %v1670 = vpop.f32.mrf.mxu0
    %v1671 = vadd.f32 0.0, %v1670
    %v1672 = vpop.f32.mrf.mxu0
    %v1673 = vadd.f32 0.0, %v1672
    %1674 = vmatmul.bf16.gmra.mxu0 0
    %v1675 = vpop.f32.mrf.mxu0
    %v1676 = vadd.f32 0.0, %v1675
    %v1677 = vpop.f32.mrf.mxu0
    %v1678 = vadd.f32 0.0, %v1677
    %1679 = vdwg.mxu0
    %1680 = vmatpush.bf16.msra.mxu0 %v1597
    %1681 = vmatpush.bf16.msra.mxu0 %v1594
    %1682 = vmatpush.bf16.msra.mxu0 %v1591
    %1683 = vmatpush.bf16.msra.mxu0 %v1588
    %1684 = vmatpush.bf16.msra.mxu0 %v1585
    %1685 = vmatpush.bf16.msra.mxu0 %v1582
    %1686 = vmatpush.bf16.msra.mxu0 %v1579
    %1687 = vmatpush.bf16.msra.mxu0 %v1576
    %1688 = vmatmul.bf16.gmra.mxu0 0
    %v1689 = vpop.f32.mrf.mxu0
    %v1690 = vadd.f32 0.0, %v1689
    %v1691 = vpop.f32.mrf.mxu0
    %v1692 = vadd.f32 0.0, %v1691
    %1693 = vmatmul.bf16.gmra.mxu0 0
    %v1694 = vpop.f32.mrf.mxu0
    %v1695 = vadd.f32 0.0, %v1694
    %v1696 = vpop.f32.mrf.mxu0
    %v1697 = vadd.f32 0.0, %v1696
    %1698 = vmatmul.bf16.gmra.mxu0 0
    %v1699 = vpop.f32.mrf.mxu0
    %v1700 = vadd.f32 0.0, %v1699
    %v1701 = vpop.f32.mrf.mxu0
    %v1702 = vadd.f32 0.0, %v1701
    %1703 = vmatmul.bf16.gmra.mxu0 0
    %v1704 = vpop.f32.mrf.mxu0
    %v1705 = vadd.f32 0.0, %v1704
    %v1706 = vpop.f32.mrf.mxu0
    %v1707 = vadd.f32 0.0, %v1706
    %1708 = vdwg.mxu0
    %v1709 = vadd.f32 %v1470, %v1632
    %v1710 = vadd.f32 %v1473, %v1634
    %v1711 = vadd.f32 %v1476, %v1637
    %v1712 = vadd.f32 %v1479, %v1639
    %v1713 = vadd.f32 %v1482, %v1642
    %v1714 = vadd.f32 %v1485, %v1644
    %v1715 = vadd.f32 %v1488, %v1647
    %v1716 = vadd.f32 %v1491, %v1649
    %v1717 = vmul.f32 %v1709, 0.5
    %v1718 = vmul.f32 %v1710, 0.5
    %v1719 = vmul.f32 %v1711, 0.5
    %v1720 = vmul.f32 %v1712, 0.5
    %v1721 = vmul.f32 %v1713, 0.5
    %v1722 = vmul.f32 %v1714, 0.5
    %v1723 = vmul.f32 %v1715, 0.5
    %v1724 = vmul.f32 %v1716, 0.5
    %v1725 = vtanh.pop %v1717
    %v1726 = vtanh.pop %v1718
    %v1727 = vtanh.pop %v1719
    %v1728 = vtanh.pop %v1720
    %v1729 = vtanh.pop %v1721
    %v1730 = vtanh.pop %v1722
    %v1731 = vtanh.pop %v1723
    %v1732 = vtanh.pop %v1724
    %v1733 = vmul.f32 %v1725, 0.5
    %v1734 = vmul.f32 %v1726, 0.5
    %v1735 = vmul.f32 %v1727, 0.5
    %v1736 = vmul.f32 %v1728, 0.5
    %v1737 = vmul.f32 %v1729, 0.5
    %v1738 = vmul.f32 %v1730, 0.5
    %v1739 = vmul.f32 %v1731, 0.5
    %v1740 = vmul.f32 %v1732, 0.5
    %v1741 = vadd.f32 %v1733, 0.5
    %v1742 = vadd.f32 %v1734, 0.5
    %v1743 = vadd.f32 %v1735, 0.5
    %v1744 = vadd.f32 %v1736, 0.5
    %v1745 = vadd.f32 %v1737, 0.5
    %v1746 = vadd.f32 %v1738, 0.5
    %v1747 = vadd.f32 %v1739, 0.5
    %v1748 = vadd.f32 %v1740, 0.5
    %v1749 = vadd.f32 %v1471, %v1661
    %v1750 = vadd.f32 %v1474, %v1663
    %v1751 = vadd.f32 %v1477, %v1666
    %v1752 = vadd.f32 %v1480, %v1668
    %v1753 = vadd.f32 %v1483, %v1671
    %v1754 = vadd.f32 %v1486, %v1673
    %v1755 = vadd.f32 %v1489, %v1676
    %v1756 = vadd.f32 %v1492, %v1678
    %v1757 = vmul.f32 %v1749, 0.5
    %v1758 = vmul.f32 %v1750, 0.5
    %v1759 = vmul.f32 %v1751, 0.5
    %v1760 = vmul.f32 %v1752, 0.5
    %v1761 = vmul.f32 %v1753, 0.5
    %v1762 = vmul.f32 %v1754, 0.5
    %v1763 = vmul.f32 %v1755, 0.5
    %v1764 = vmul.f32 %v1756, 0.5
    %v1765 = vtanh.pop %v1757
    %v1766 = vtanh.pop %v1758
    %v1767 = vtanh.pop %v1759
    %v1768 = vtanh.pop %v1760
    %v1769 = vtanh.pop %v1761
    %v1770 = vtanh.pop %v1762
    %v1771 = vtanh.pop %v1763
    %v1772 = vtanh.pop %v1764
    %v1773 = vmul.f32 %v1765, 0.5
    %v1774 = vmul.f32 %v1766, 0.5
    %v1775 = vmul.f32 %v1767, 0.5
    %v1776 = vmul.f32 %v1768, 0.5
    %v1777 = vmul.f32 %v1769, 0.5
    %v1778 = vmul.f32 %v1770, 0.5
    %v1779 = vmul.f32 %v1771, 0.5
    %v1780 = vmul.f32 %v1772, 0.5
    %v1781 = vadd.f32 %v1773, 0.5
    %v1782 = vadd.f32 %v1774, 0.5
    %v1783 = vadd.f32 %v1775, 0.5
    %v1784 = vadd.f32 %v1776, 0.5
    %v1785 = vadd.f32 %v1777, 0.5
    %v1786 = vadd.f32 %v1778, 0.5
    %v1787 = vadd.f32 %v1779, 0.5
    %v1788 = vadd.f32 %v1780, 0.5
    %v1789 = vadd.f32 %v1690, %v1468
    %v1790 = vadd.f32 %v1692, %v1468
    %v1791 = vadd.f32 %v1695, %v1468
    %v1792 = vadd.f32 %v1697, %v1468
    %v1793 = vadd.f32 %v1700, %v1468
    %v1794 = vadd.f32 %v1702, %v1468
    %v1795 = vadd.f32 %v1705, %v1468
    %v1796 = vadd.f32 %v1707, %v1468
    %v1797 = vmul.f32 %v1741, %v1789
    %v1798 = vmul.f32 %v1742, %v1790
    %v1799 = vmul.f32 %v1743, %v1791
    %v1800 = vmul.f32 %v1744, %v1792
    %v1801 = vmul.f32 %v1745, %v1793
    %v1802 = vmul.f32 %v1746, %v1794
    %v1803 = vmul.f32 %v1747, %v1795
    %v1804 = vmul.f32 %v1748, %v1796
    %v1805 = vadd.f32 %v1472, %v1797
    %v1806 = vadd.f32 %v1475, %v1798
    %v1807 = vadd.f32 %v1478, %v1799
    %v1808 = vadd.f32 %v1481, %v1800
    %v1809 = vadd.f32 %v1484, %v1801
    %v1810 = vadd.f32 %v1487, %v1802
    %v1811 = vadd.f32 %v1490, %v1803
    %v1812 = vadd.f32 %v1493, %v1804
    %v1813 = vtanh.pop %v1805
    %v1814 = vtanh.pop %v1806
    %v1815 = vtanh.pop %v1807
    %v1816 = vtanh.pop %v1808
    %v1817 = vtanh.pop %v1809
    %v1818 = vtanh.pop %v1810
    %v1819 = vtanh.pop %v1811
    %v1820 = vtanh.pop %v1812
    %v1821 = vsub.f32 1.0, %v1781
    %v1822 = vsub.f32 1.0, %v1782
    %v1823 = vsub.f32 1.0, %v1783
    %v1824 = vsub.f32 1.0, %v1784
    %v1825 = vsub.f32 1.0, %v1785
    %v1826 = vsub.f32 1.0, %v1786
    %v1827 = vsub.f32 1.0, %v1787
    %v1828 = vsub.f32 1.0, %v1788
    %v1829 = vmul.f32 %v1821, %v1813
    %v1830 = vmul.f32 %v1822, %v1814
    %v1831 = vmul.f32 %v1823, %v1815
    %v1832 = vmul.f32 %v1824, %v1816
    %v1833 = vmul.f32 %v1825, %v1817
    %v1834 = vmul.f32 %v1826, %v1818
    %v1835 = vmul.f32 %v1827, %v1819
    %v1836 = vmul.f32 %v1828, %v1820
    %v1837 = vmul.f32 %v1781, 0.0
    %v1838 = vmul.f32 %v1782, 0.0
    %v1839 = vmul.f32 %v1783, 0.0
    %v1840 = vmul.f32 %v1784, 0.0
    %v1841 = vmul.f32 %v1785, 0.0
    %v1842 = vmul.f32 %v1786, 0.0
    %v1843 = vmul.f32 %v1787, 0.0
    %v1844 = vmul.f32 %v1788, 0.0
    %v1845 = vadd.f32 %v1829, %v1837
    %v1846 = vadd.f32 %v1830, %v1838
    %v1847 = vadd.f32 %v1831, %v1839
    %v1848 = vadd.f32 %v1832, %v1840
    %v1849 = vadd.f32 %v1833, %v1841
    %v1850 = vadd.f32 %v1834, %v1842
    %v1851 = vadd.f32 %v1835, %v1843
    %v1852 = vadd.f32 %v1836, %v1844
    %1853 = vst [vmem:[#allocation3] sm:$0xff] %v1845
    %1854 = vst [vmem:[#allocation3 + $0x40] sm:$0xff] %v1846
    %1855 = vst [vmem:[#allocation3 + $0x80] sm:$0xff] %v1847
    %1856 = vst [vmem:[#allocation3 + $0xc0] sm:$0xff] %v1848
    %1857 = vst [vmem:[#allocation3 + $0x100] sm:$0xff] %v1849
    %1858 = vst [vmem:[#allocation3 + $0x140] sm:$0xff] %v1850
    %1859 = vst [vmem:[#allocation3 + $0x180] sm:$0xff] %v1851
    %1860 = vst [vmem:[#allocation3 + $0x1c0] sm:$0xff] %v1852
    %v1861 = vld [vmem:[#allocation2 + $0x18] sm:$0xff]
    %v1862 = vld [vmem:[#allocation2 + $0x20] sm:$0xff]
    %v1863 = vld [vmem:[#allocation2 + $0x28] sm:$0xff]
    %v1864 = vld [vmem:[#allocation2 + $0xd8] sm:$0xff]
    %v1865 = vld [vmem:[#allocation2 + $0xe0] sm:$0xff]
    %v1866 = vld [vmem:[#allocation2 + $0xe8] sm:$0xff]
    %v1867 = vld [vmem:[#allocation2 + $0x198] sm:$0xff]
    %v1868 = vld [vmem:[#allocation2 + $0x1a0] sm:$0xff]
    %v1869 = vld [vmem:[#allocation2 + $0x1a8] sm:$0xff]
    %v1870 = vld [vmem:[#allocation2 + $0x258] sm:$0xff]
    %v1871 = vld [vmem:[#allocation2 + $0x260] sm:$0xff]
    %v1872 = vld [vmem:[#allocation2 + $0x268] sm:$0xff]
    %v1873 = vld [vmem:[#allocation2 + $0x318] sm:$0xff]
    %v1874 = vld [vmem:[#allocation2 + $0x320] sm:$0xff]
    %v1875 = vld [vmem:[#allocation2 + $0x328] sm:$0xff]
    %v1876 = vld [vmem:[#allocation2 + $0x3d8] sm:$0xff]
    %v1877 = vld [vmem:[#allocation2 + $0x3e0] sm:$0xff]
    %v1878 = vld [vmem:[#allocation2 + $0x3e8] sm:$0xff]
    %v1879 = vld [vmem:[#allocation2 + $0x498] sm:$0xff]
    %v1880 = vld [vmem:[#allocation2 + $0x4a0] sm:$0xff]
    %v1881 = vld [vmem:[#allocation2 + $0x4a8] sm:$0xff]
    %v1882 = vld [vmem:[#allocation2 + $0x558] sm:$0xff]
    %v1883 = vld [vmem:[#allocation2 + $0x560] sm:$0xff]
    %v1884 = vld [vmem:[#allocation2 + $0x568] sm:$0xff]
    %v1885 = vpack.c.bf16 %v1846, %v1845
    %v1886 = vpack.c.bf16 %v1848, %v1847
    %v1887 = vpack.c.bf16 %v1850, %v1849
    %v1888 = vpack.c.bf16 %v1852, %v1851
    %1889 = vmatpush.bf16.msra.mxu0 %v1595
    %1890 = vmatpush.bf16.msra.mxu0 %v1592
    %1891 = vmatpush.bf16.msra.mxu0 %v1589
    %1892 = vmatpush.bf16.msra.mxu0 %v1586
    %1893 = vmatpush.bf16.msra.mxu0 %v1583
    %1894 = vmatpush.bf16.msra.mxu0 %v1580
    %1895 = vmatpush.bf16.msra.mxu0 %v1577
    %1896 = vmatpush.bf16.msra.mxu0 %v1574
    %1897 = vmatmul.bf16.gmra.mxu0 %v1885
    %v1898 = vpop.f32.mrf.mxu0
    %v1899 = vadd.f32 0.0, %v1898
    %v1900 = vpop.f32.mrf.mxu0
    %v1901 = vadd.f32 0.0, %v1900
    %1902 = vmatmul.bf16.gmra.mxu0 %v1886
    %v1903 = vpop.f32.mrf.mxu0
    %v1904 = vadd.f32 0.0, %v1903
    %v1905 = vpop.f32.mrf.mxu0
    %v1906 = vadd.f32 0.0, %v1905
    %1907 = vmatmul.bf16.gmra.mxu0 %v1887
    %v1908 = vpop.f32.mrf.mxu0
    %v1909 = vadd.f32 0.0, %v1908
    %v1910 = vpop.f32.mrf.mxu0
    %v1911 = vadd.f32 0.0, %v1910
    %1912 = vmatmul.bf16.gmra.mxu0 %v1888
    %v1913 = vpop.f32.mrf.mxu0
    %v1914 = vadd.f32 0.0, %v1913
    %v1915 = vpop.f32.mrf.mxu0
    %v1916 = vadd.f32 0.0, %v1915
    %1917 = vdwg.mxu0
    %1918 = vmatpush.bf16.msra.mxu0 %v1596
    %1919 = vmatpush.bf16.msra.mxu0 %v1593
    %1920 = vmatpush.bf16.msra.mxu0 %v1590
    %1921 = vmatpush.bf16.msra.mxu0 %v1587
    %1922 = vmatpush.bf16.msra.mxu0 %v1584
    %1923 = vmatpush.bf16.msra.mxu0 %v1581
    %1924 = vmatpush.bf16.msra.mxu0 %v1578
    %1925 = vmatpush.bf16.msra.mxu0 %v1575
    %1926 = vmatmul.bf16.gmra.mxu0 %v1885
    %v1927 = vpop.f32.mrf.mxu0
    %v1928 = vadd.f32 0.0, %v1927
    %v1929 = vpop.f32.mrf.mxu0
    %v1930 = vadd.f32 0.0, %v1929
    %1931 = vmatmul.bf16.gmra.mxu0 %v1886
    %v1932 = vpop.f32.mrf.mxu0
    %v1933 = vadd.f32 0.0, %v1932
    %v1934 = vpop.f32.mrf.mxu0
    %v1935 = vadd.f32 0.0, %v1934
    %1936 = vmatmul.bf16.gmra.mxu0 %v1887
    %v1937 = vpop.f32.mrf.mxu0
    %v1938 = vadd.f32 0.0, %v1937
    %v1939 = vpop.f32.mrf.mxu0
    %v1940 = vadd.f32 0.0, %v1939
    %1941 = vmatmul.bf16.gmra.mxu0 %v1888
    %v1942 = vpop.f32.mrf.mxu0
    %v1943 = vadd.f32 0.0, %v1942
    %v1944 = vpop.f32.mrf.mxu0
    %v1945 = vadd.f32 0.0, %v1944
    %1946 = vdwg.mxu0
    %1947 = vmatpush.bf16.msra.mxu0 %v1597
    %1948 = vmatpush.bf16.msra.mxu0 %v1594
    %1949 = vmatpush.bf16.msra.mxu0 %v1591
    %1950 = vmatpush.bf16.msra.mxu0 %v1588
    %1951 = vmatpush.bf16.msra.mxu0 %v1585
    %1952 = vmatpush.bf16.msra.mxu0 %v1582
    %1953 = vmatpush.bf16.msra.mxu0 %v1579
    %1954 = vmatpush.bf16.msra.mxu0 %v1576
    %1955 = vmatmul.bf16.gmra.mxu0 %v1885
    %v1956 = vpop.f32.mrf.mxu0
    %v1957 = vadd.f32 0.0, %v1956
    %v1958 = vpop.f32.mrf.mxu0
    %v1959 = vadd.f32 0.0, %v1958
    %1960 = vmatmul.bf16.gmra.mxu0 %v1886
    %v1961 = vpop.f32.mrf.mxu0
    %v1962 = vadd.f32 0.0, %v1961
    %v1963 = vpop.f32.mrf.mxu0
    %v1964 = vadd.f32 0.0, %v1963
    %1965 = vmatmul.bf16.gmra.mxu0 %v1887
    %v1966 = vpop.f32.mrf.mxu0
    %v1967 = vadd.f32 0.0, %v1966
    %v1968 = vpop.f32.mrf.mxu0
    %v1969 = vadd.f32 0.0, %v1968
    %1970 = vmatmul.bf16.gmra.mxu0 %v1888
    %v1971 = vpop.f32.mrf.mxu0
    %v1972 = vadd.f32 0.0, %v1971
    %v1973 = vpop.f32.mrf.mxu0
    %v1974 = vadd.f32 0.0, %v1973
    %1975 = vdwg.mxu0
    %v1976 = vadd.f32 %v1861, %v1899
    %v1977 = vadd.f32 %v1864, %v1901
    %v1978 = vadd.f32 %v1867, %v1904
    %v1979 = vadd.f32 %v1870, %v1906
    %v1980 = vadd.f32 %v1873, %v1909
    %v1981 = vadd.f32 %v1876, %v1911
    %v1982 = vadd.f32 %v1879, %v1914
    %v1983 = vadd.f32 %v1882, %v1916
    %v1984 = vmul.f32 %v1976, 0.5
    %v1985 = vmul.f32 %v1977, 0.5
    %v1986 = vmul.f32 %v1978, 0.5
    %v1987 = vmul.f32 %v1979, 0.5
    %v1988 = vmul.f32 %v1980, 0.5
    %v1989 = vmul.f32 %v1981, 0.5
    %v1990 = vmul.f32 %v1982, 0.5
    %v1991 = vmul.f32 %v1983, 0.5
    %v1992 = vtanh.pop %v1984
    %v1993 = vtanh.pop %v1985
    %v1994 = vtanh.pop %v1986
    %v1995 = vtanh.pop %v1987
    %v1996 = vtanh.pop %v1988
    %v1997 = vtanh.pop %v1989
    %v1998 = vtanh.pop %v1990
    %v1999 = vtanh.pop %v1991
    %v2000 = vmul.f32 %v1992, 0.5
    %v2001 = vmul.f32 %v1993, 0.5
    %v2002 = vmul.f32 %v1994, 0.5
    %v2003 = vmul.f32 %v1995, 0.5
    %v2004 = vmul.f32 %v1996, 0.5
    %v2005 = vmul.f32 %v1997, 0.5
    %v2006 = vmul.f32 %v1998, 0.5
    %v2007 = vmul.f32 %v1999, 0.5
    %v2008 = vadd.f32 %v2000, 0.5
    %v2009 = vadd.f32 %v2001, 0.5
    %v2010 = vadd.f32 %v2002, 0.5
    %v2011 = vadd.f32 %v2003, 0.5
    %v2012 = vadd.f32 %v2004, 0.5
    %v2013 = vadd.f32 %v2005, 0.5
    %v2014 = vadd.f32 %v2006, 0.5
    %v2015 = vadd.f32 %v2007, 0.5
    %v2016 = vadd.f32 %v1862, %v1928
    %v2017 = vadd.f32 %v1865, %v1930
    %v2018 = vadd.f32 %v1868, %v1933
    %v2019 = vadd.f32 %v1871, %v1935
    %v2020 = vadd.f32 %v1874, %v1938
    %v2021 = vadd.f32 %v1877, %v1940
    %v2022 = vadd.f32 %v1880, %v1943
    %v2023 = vadd.f32 %v1883, %v1945
    %v2024 = vmul.f32 %v2016, 0.5
    %v2025 = vmul.f32 %v2017, 0.5
    %v2026 = vmul.f32 %v2018, 0.5
    %v2027 = vmul.f32 %v2019, 0.5
    %v2028 = vmul.f32 %v2020, 0.5
    %v2029 = vmul.f32 %v2021, 0.5
    %v2030 = vmul.f32 %v2022, 0.5
    %v2031 = vmul.f32 %v2023, 0.5
    %v2032 = vtanh.pop %v2024
    %v2033 = vtanh.pop %v2025
    %v2034 = vtanh.pop %v2026
    %v2035 = vtanh.pop %v2027
    %v2036 = vtanh.pop %v2028
    %v2037 = vtanh.pop %v2029
    %v2038 = vtanh.pop %v2030
    %v2039 = vtanh.pop %v2031
    %v2040 = vmul.f32 %v2032, 0.5
    %v2041 = vmul.f32 %v2033, 0.5
    %v2042 = vmul.f32 %v2034, 0.5
    %v2043 = vmul.f32 %v2035, 0.5
    %v2044 = vmul.f32 %v2036, 0.5
    %v2045 = vmul.f32 %v2037, 0.5
    %v2046 = vmul.f32 %v2038, 0.5
    %v2047 = vmul.f32 %v2039, 0.5
    %v2048 = vadd.f32 %v2040, 0.5
    %v2049 = vadd.f32 %v2041, 0.5
    %v2050 = vadd.f32 %v2042, 0.5
    %v2051 = vadd.f32 %v2043, 0.5
    %v2052 = vadd.f32 %v2044, 0.5
    %v2053 = vadd.f32 %v2045, 0.5
    %v2054 = vadd.f32 %v2046, 0.5
    %v2055 = vadd.f32 %v2047, 0.5
    %v2056 = vadd.f32 %v1957, %v1468
    %v2057 = vadd.f32 %v1959, %v1468
    %v2058 = vadd.f32 %v1962, %v1468
    %v2059 = vadd.f32 %v1964, %v1468
    %v2060 = vadd.f32 %v1967, %v1468
    %v2061 = vadd.f32 %v1969, %v1468
    %v2062 = vadd.f32 %v1972, %v1468
    %v2063 = vadd.f32 %v1974, %v1468
    %v2064 = vmul.f32 %v2008, %v2056
    %v2065 = vmul.f32 %v2009, %v2057
    %v2066 = vmul.f32 %v2010, %v2058
    %v2067 = vmul.f32 %v2011, %v2059
    %v2068 = vmul.f32 %v2012, %v2060
    %v2069 = vmul.f32 %v2013, %v2061
    %v2070 = vmul.f32 %v2014, %v2062
    %v2071 = vmul.f32 %v2015, %v2063
    %v2072 = vadd.f32 %v1863, %v2064
    %v2073 = vadd.f32 %v1866, %v2065
    %v2074 = vadd.f32 %v1869, %v2066
    %v2075 = vadd.f32 %v1872, %v2067
    %v2076 = vadd.f32 %v1875, %v2068
    %v2077 = vadd.f32 %v1878, %v2069
    %v2078 = vadd.f32 %v1881, %v2070
    %v2079 = vadd.f32 %v1884, %v2071
    %v2080 = vtanh.pop %v2072
    %v2081 = vtanh.pop %v2073
    %v2082 = vtanh.pop %v2074
    %v2083 = vtanh.pop %v2075
    %v2084 = vtanh.pop %v2076
    %v2085 = vtanh.pop %v2077
    %v2086 = vtanh.pop %v2078
    %v2087 = vtanh.pop %v2079
    %v2088 = vsub.f32 1.0, %v2048
    %v2089 = vsub.f32 1.0, %v2049
    %v2090 = vsub.f32 1.0, %v2050
    %v2091 = vsub.f32 1.0, %v2051
    %v2092 = vsub.f32 1.0, %v2052
    %v2093 = vsub.f32 1.0, %v2053
    %v2094 = vsub.f32 1.0, %v2054
    %v2095 = vsub.f32 1.0, %v2055
    %v2096 = vmul.f32 %v2088, %v2080
    %v2097 = vmul.f32 %v2089, %v2081
    %v2098 = vmul.f32 %v2090, %v2082
    %v2099 = vmul.f32 %v2091, %v2083
    %v2100 = vmul.f32 %v2092, %v2084
    %v2101 = vmul.f32 %v2093, %v2085
    %v2102 = vmul.f32 %v2094, %v2086
    %v2103 = vmul.f32 %v2095, %v2087
    %v2104 = vmul.f32 %v2048, %v1845
    %v2105 = vmul.f32 %v2049, %v1846
    %v2106 = vmul.f32 %v2050, %v1847
    %v2107 = vmul.f32 %v2051, %v1848
    %v2108 = vmul.f32 %v2052, %v1849
    %v2109 = vmul.f32 %v2053, %v1850
    %v2110 = vmul.f32 %v2054, %v1851
    %v2111 = vmul.f32 %v2055, %v1852
    %v2112 = vadd.f32 %v2096, %v2104
    %v2113 = vadd.f32 %v2097, %v2105
    %v2114 = vadd.f32 %v2098, %v2106
    %v2115 = vadd.f32 %v2099, %v2107
    %v2116 = vadd.f32 %v2100, %v2108
    %v2117 = vadd.f32 %v2101, %v2109
    %v2118 = vadd.f32 %v2102, %v2110
    %v2119 = vadd.f32 %v2103, %v2111
    %2120 = vst [vmem:[#allocation3 + $0x8] sm:$0xff] %v2112
    %2121 = vst [vmem:[#allocation3 + $0x48] sm:$0xff] %v2113
    %2122 = vst [vmem:[#allocation3 + $0x88] sm:$0xff] %v2114
    %2123 = vst [vmem:[#allocation3 + $0xc8] sm:$0xff] %v2115
    %2124 = vst [vmem:[#allocation3 + $0x108] sm:$0xff] %v2116
    %2125 = vst [vmem:[#allocation3 + $0x148] sm:$0xff] %v2117
    %2126 = vst [vmem:[#allocation3 + $0x188] sm:$0xff] %v2118
    %2127 = vst [vmem:[#allocation3 + $0x1c8] sm:$0xff] %v2119
    %v2128 = vld [vmem:[#allocation2 + $0x30] sm:$0xff]
    %v2129 = vld [vmem:[#allocation2 + $0x38] sm:$0xff]
    %v2130 = vld [vmem:[#allocation2 + $0x40] sm:$0xff]
    %v2131 = vld [vmem:[#allocation2 + $0xf0] sm:$0xff]
    %v2132 = vld [vmem:[#allocation2 + $0xf8] sm:$0xff]
    %v2133 = vld [vmem:[#allocation2 + $0x100] sm:$0xff]
    %v2134 = vld [vmem:[#allocation2 + $0x1b0] sm:$0xff]
    %v2135 = vld [vmem:[#allocation2 + $0x1b8] sm:$0xff]
    %v2136 = vld [vmem:[#allocation2 + $0x1c0] sm:$0xff]
    %v2137 = vld [vmem:[#allocation2 + $0x270] sm:$0xff]
    %v2138 = vld [vmem:[#allocation2 + $0x278] sm:$0xff]
    %v2139 = vld [vmem:[#allocation2 + $0x280] sm:$0xff]
    %v2140 = vld [vmem:[#allocation2 + $0x330] sm:$0xff]
    %v2141 = vld [vmem:[#allocation2 + $0x338] sm:$0xff]
    %v2142 = vld [vmem:[#allocation2 + $0x340] sm:$0xff]
    %v2143 = vld [vmem:[#allocation2 + $0x3f0] sm:$0xff]
    %v2144 = vld [vmem:[#allocation2 + $0x3f8] sm:$0xff]
    %v2145 = vld [vmem:[#allocation2 + $0x400] sm:$0xff]
    %v2146 = vld [vmem:[#allocation2 + $0x4b0] sm:$0xff]
    %v2147 = vld [vmem:[#allocation2 + $0x4b8] sm:$0xff]
    %v2148 = vld [vmem:[#allocation2 + $0x4c0] sm:$0xff]
    %v2149 = vld [vmem:[#allocation2 + $0x570] sm:$0xff]
    %v2150 = vld [vmem:[#allocation2 + $0x578] sm:$0xff]
    %v2151 = vld [vmem:[#allocation2 + $0x580] sm:$0xff]
    %v2152 = vpack.c.bf16 %v2113, %v2112
    %v2153 = vpack.c.bf16 %v2115, %v2114
    %v2154 = vpack.c.bf16 %v2117, %v2116
    %v2155 = vpack.c.bf16 %v2119, %v2118
    %2156 = vmatpush.bf16.msra.mxu0 %v1595
    %2157 = vmatpush.bf16.msra.mxu0 %v1592
    %2158 = vmatpush.bf16.msra.mxu0 %v1589
    %2159 = vmatpush.bf16.msra.mxu0 %v1586
    %2160 = vmatpush.bf16.msra.mxu0 %v1583
    %2161 = vmatpush.bf16.msra.mxu0 %v1580
    %2162 = vmatpush.bf16.msra.mxu0 %v1577
    %2163 = vmatpush.bf16.msra.mxu0 %v1574
    %2164 = vmatmul.bf16.gmra.mxu0 %v2152
    %v2165 = vpop.f32.mrf.mxu0
    %v2166 = vadd.f32 0.0, %v2165
    %v2167 = vpop.f32.mrf.mxu0
    %v2168 = vadd.f32 0.0, %v2167
    %2169 = vmatmul.bf16.gmra.mxu0 %v2153
    %v2170 = vpop.f32.mrf.mxu0
    %v2171 = vadd.f32 0.0, %v2170
    %v2172 = vpop.f32.mrf.mxu0
    %v2173 = vadd.f32 0.0, %v2172
    %2174 = vmatmul.bf16.gmra.mxu0 %v2154
    %v2175 = vpop.f32.mrf.mxu0
    %v2176 = vadd.f32 0.0, %v2175
    %v2177 = vpop.f32.mrf.mxu0
    %v2178 = vadd.f32 0.0, %v2177
    %2179 = vmatmul.bf16.gmra.mxu0 %v2155
    %v2180 = vpop.f32.mrf.mxu0
    %v2181 = vadd.f32 0.0, %v2180
    %v2182 = vpop.f32.mrf.mxu0
    %v2183 = vadd.f32 0.0, %v2182
    %2184 = vdwg.mxu0
    %2185 = vmatpush.bf16.msra.mxu0 %v1596
    %2186 = vmatpush.bf16.msra.mxu0 %v1593
    %2187 = vmatpush.bf16.msra.mxu0 %v1590
    %2188 = vmatpush.bf16.msra.mxu0 %v1587
    %2189 = vmatpush.bf16.msra.mxu0 %v1584
    %2190 = vmatpush.bf16.msra.mxu0 %v1581
    %2191 = vmatpush.bf16.msra.mxu0 %v1578
    %2192 = vmatpush.bf16.msra.mxu0 %v1575
    %2193 = vmatmul.bf16.gmra.mxu0 %v2152
    %v2194 = vpop.f32.mrf.mxu0
    %v2195 = vadd.f32 0.0, %v2194
    %v2196 = vpop.f32.mrf.mxu0
    %v2197 = vadd.f32 0.0, %v2196
    %2198 = vmatmul.bf16.gmra.mxu0 %v2153
    %v2199 = vpop.f32.mrf.mxu0
    %v2200 = vadd.f32 0.0, %v2199
    %v2201 = vpop.f32.mrf.mxu0
    %v2202 = vadd.f32 0.0, %v2201
    %2203 = vmatmul.bf16.gmra.mxu0 %v2154
    %v2204 = vpop.f32.mrf.mxu0
    %v2205 = vadd.f32 0.0, %v2204
    %v2206 = vpop.f32.mrf.mxu0
    %v2207 = vadd.f32 0.0, %v2206
    %2208 = vmatmul.bf16.gmra.mxu0 %v2155
    %v2209 = vpop.f32.mrf.mxu0
    %v2210 = vadd.f32 0.0, %v2209
    %v2211 = vpop.f32.mrf.mxu0
    %v2212 = vadd.f32 0.0, %v2211
    %2213 = vdwg.mxu0
    %2214 = vmatpush.bf16.msra.mxu0 %v1597
    %2215 = vmatpush.bf16.msra.mxu0 %v1594
    %2216 = vmatpush.bf16.msra.mxu0 %v1591
    %2217 = vmatpush.bf16.msra.mxu0 %v1588
    %2218 = vmatpush.bf16.msra.mxu0 %v1585
    %2219 = vmatpush.bf16.msra.mxu0 %v1582
    %2220 = vmatpush.bf16.msra.mxu0 %v1579
    %2221 = vmatpush.bf16.msra.mxu0 %v1576
    %2222 = vmatmul.bf16.gmra.mxu0 %v2152
    %v2223 = vpop.f32.mrf.mxu0
    %v2224 = vadd.f32 0.0, %v2223
    %v2225 = vpop.f32.mrf.mxu0
    %v2226 = vadd.f32 0.0, %v2225
    %2227 = vmatmul.bf16.gmra.mxu0 %v2153
    %v2228 = vpop.f32.mrf.mxu0
    %v2229 = vadd.f32 0.0, %v2228
    %v2230 = vpop.f32.mrf.mxu0
    %v2231 = vadd.f32 0.0, %v2230
    %2232 = vmatmul.bf16.gmra.mxu0 %v2154
    %v2233 = vpop.f32.mrf.mxu0
    %v2234 = vadd.f32 0.0, %v2233
    %v2235 = vpop.f32.mrf.mxu0
    %v2236 = vadd.f32 0.0, %v2235
    %2237 = vmatmul.bf16.gmra.mxu0 %v2155
    %v2238 = vpop.f32.mrf.mxu0
    %v2239 = vadd.f32 0.0, %v2238
    %v2240 = vpop.f32.mrf.mxu0
    %v2241 = vadd.f32 0.0, %v2240
    %2242 = vdwg.mxu0
    %v2243 = vadd.f32 %v2128, %v2166
    %v2244 = vadd.f32 %v2131, %v2168
    %v2245 = vadd.f32 %v2134, %v2171
    %v2246 = vadd.f32 %v2137, %v2173
    %v2247 = vadd.f32 %v2140, %v2176
    %v2248 = vadd.f32 %v2143, %v2178
    %v2249 = vadd.f32 %v2146, %v2181
    %v2250 = vadd.f32 %v2149, %v2183
    %v2251 = vmul.f32 %v2243, 0.5
    %v2252 = vmul.f32 %v2244, 0.5
    %v2253 = vmul.f32 %v2245, 0.5
    %v2254 = vmul.f32 %v2246, 0.5
    %v2255 = vmul.f32 %v2247, 0.5
    %v2256 = vmul.f32 %v2248, 0.5
    %v2257 = vmul.f32 %v2249, 0.5
    %v2258 = vmul.f32 %v2250, 0.5
    %v2259 = vtanh.pop %v2251
    %v2260 = vtanh.pop %v2252
    %v2261 = vtanh.pop %v2253
    %v2262 = vtanh.pop %v2254
    %v2263 = vtanh.pop %v2255
    %v2264 = vtanh.pop %v2256
    %v2265 = vtanh.pop %v2257
    %v2266 = vtanh.pop %v2258
    %v2267 = vmul.f32 %v2259, 0.5
    %v2268 = vmul.f32 %v2260, 0.5
    %v2269 = vmul.f32 %v2261, 0.5
    %v2270 = vmul.f32 %v2262, 0.5
    %v2271 = vmul.f32 %v2263, 0.5
    %v2272 = vmul.f32 %v2264, 0.5
    %v2273 = vmul.f32 %v2265, 0.5
    %v2274 = vmul.f32 %v2266, 0.5
    %v2275 = vadd.f32 %v2267, 0.5
    %v2276 = vadd.f32 %v2268, 0.5
    %v2277 = vadd.f32 %v2269, 0.5
    %v2278 = vadd.f32 %v2270, 0.5
    %v2279 = vadd.f32 %v2271, 0.5
    %v2280 = vadd.f32 %v2272, 0.5
    %v2281 = vadd.f32 %v2273, 0.5
    %v2282 = vadd.f32 %v2274, 0.5
    %v2283 = vadd.f32 %v2129, %v2195
    %v2284 = vadd.f32 %v2132, %v2197
    %v2285 = vadd.f32 %v2135, %v2200
    %v2286 = vadd.f32 %v2138, %v2202
    %v2287 = vadd.f32 %v2141, %v2205
    %v2288 = vadd.f32 %v2144, %v2207
    %v2289 = vadd.f32 %v2147, %v2210
    %v2290 = vadd.f32 %v2150, %v2212
    %v2291 = vmul.f32 %v2283, 0.5
    %v2292 = vmul.f32 %v2284, 0.5
    %v2293 = vmul.f32 %v2285, 0.5
    %v2294 = vmul.f32 %v2286, 0.5
    %v2295 = vmul.f32 %v2287, 0.5
    %v2296 = vmul.f32 %v2288, 0.5
    %v2297 = vmul.f32 %v2289, 0.5
    %v2298 = vmul.f32 %v2290, 0.5
    %v2299 = vtanh.pop %v2291
    %v2300 = vtanh.pop %v2292
    %v2301 = vtanh.pop %v2293
    %v2302 = vtanh.pop %v2294
    %v2303 = vtanh.pop %v2295
    %v2304 = vtanh.pop %v2296
    %v2305 = vtanh.pop %v2297
    %v2306 = vtanh.pop %v2298
    %v2307 = vmul.f32 %v2299, 0.5
    %v2308 = vmul.f32 %v2300, 0.5
    %v2309 = vmul.f32 %v2301, 0.5
    %v2310 = vmul.f32 %v2302, 0.5
    %v2311 = vmul.f32 %v2303, 0.5
    %v2312 = vmul.f32 %v2304, 0.5
    %v2313 = vmul.f32 %v2305, 0.5
    %v2314 = vmul.f32 %v2306, 0.5
    %v2315 = vadd.f32 %v2307, 0.5
    %v2316 = vadd.f32 %v2308, 0.5
    %v2317 = vadd.f32 %v2309, 0.5
    %v2318 = vadd.f32 %v2310, 0.5
    %v2319 = vadd.f32 %v2311, 0.5
    %v2320 = vadd.f32 %v2312, 0.5
    %v2321 = vadd.f32 %v2313, 0.5
    %v2322 = vadd.f32 %v2314, 0.5
    %v2323 = vadd.f32 %v2224, %v1468
    %v2324 = vadd.f32 %v2226, %v1468
    %v2325 = vadd.f32 %v2229, %v1468
    %v2326 = vadd.f32 %v2231, %v1468
    %v2327 = vadd.f32 %v2234, %v1468
    %v2328 = vadd.f32 %v2236, %v1468
    %v2329 = vadd.f32 %v2239, %v1468
    %v2330 = vadd.f32 %v2241, %v1468
    %v2331 = vmul.f32 %v2275, %v2323
    %v2332 = vmul.f32 %v2276, %v2324
    %v2333 = vmul.f32 %v2277, %v2325
    %v2334 = vmul.f32 %v2278, %v2326
    %v2335 = vmul.f32 %v2279, %v2327
    %v2336 = vmul.f32 %v2280, %v2328
    %v2337 = vmul.f32 %v2281, %v2329
    %v2338 = vmul.f32 %v2282, %v2330
    %v2339 = vadd.f32 %v2130, %v2331
    %v2340 = vadd.f32 %v2133, %v2332
    %v2341 = vadd.f32 %v2136, %v2333
    %v2342 = vadd.f32 %v2139, %v2334
    %v2343 = vadd.f32 %v2142, %v2335
    %v2344 = vadd.f32 %v2145, %v2336
    %v2345 = vadd.f32 %v2148, %v2337
    %v2346 = vadd.f32 %v2151, %v2338
    %v2347 = vtanh.pop %v2339
    %v2348 = vtanh.pop %v2340
    %v2349 = vtanh.pop %v2341
    %v2350 = vtanh.pop %v2342
    %v2351 = vtanh.pop %v2343
    %v2352 = vtanh.pop %v2344
    %v2353 = vtanh.pop %v2345
    %v2354 = vtanh.pop %v2346
    %v2355 = vsub.f32 1.0, %v2315
    %v2356 = vsub.f32 1.0, %v2316
    %v2357 = vsub.f32 1.0, %v2317
    %v2358 = vsub.f32 1.0, %v2318
    %v2359 = vsub.f32 1.0, %v2319
    %v2360 = vsub.f32 1.0, %v2320
    %v2361 = vsub.f32 1.0, %v2321
    %v2362 = vsub.f32 1.0, %v2322
    %v2363 = vmul.f32 %v2355, %v2347
    %v2364 = vmul.f32 %v2356, %v2348
    %v2365 = vmul.f32 %v2357, %v2349
    %v2366 = vmul.f32 %v2358, %v2350
    %v2367 = vmul.f32 %v2359, %v2351
    %v2368 = vmul.f32 %v2360, %v2352
    %v2369 = vmul.f32 %v2361, %v2353
    %v2370 = vmul.f32 %v2362, %v2354
    %v2371 = vmul.f32 %v2315, %v2112
    %v2372 = vmul.f32 %v2316, %v2113
    %v2373 = vmul.f32 %v2317, %v2114
    %v2374 = vmul.f32 %v2318, %v2115
    %v2375 = vmul.f32 %v2319, %v2116
    %v2376 = vmul.f32 %v2320, %v2117
    %v2377 = vmul.f32 %v2321, %v2118
    %v2378 = vmul.f32 %v2322, %v2119
    %v2379 = vadd.f32 %v2363, %v2371
    %v2380 = vadd.f32 %v2364, %v2372
    %v2381 = vadd.f32 %v2365, %v2373
    %v2382 = vadd.f32 %v2366, %v2374
    %v2383 = vadd.f32 %v2367, %v2375
    %v2384 = vadd.f32 %v2368, %v2376
    %v2385 = vadd.f32 %v2369, %v2377
    %v2386 = vadd.f32 %v2370, %v2378
    %2387 = vst [vmem:[#allocation3 + $0x10] sm:$0xff] %v2379
    %2388 = vst [vmem:[#allocation3 + $0x50] sm:$0xff] %v2380
    %2389 = vst [vmem:[#allocation3 + $0x90] sm:$0xff] %v2381
    %2390 = vst [vmem:[#allocation3 + $0xd0] sm:$0xff] %v2382
    %2391 = vst [vmem:[#allocation3 + $0x110] sm:$0xff] %v2383
    %2392 = vst [vmem:[#allocation3 + $0x150] sm:$0xff] %v2384
    %2393 = vst [vmem:[#allocation3 + $0x190] sm:$0xff] %v2385
    %2394 = vst [vmem:[#allocation3 + $0x1d0] sm:$0xff] %v2386
    %v2395 = vld [vmem:[#allocation2 + $0x48] sm:$0xff]
    %v2396 = vld [vmem:[#allocation2 + $0x50] sm:$0xff]
    %v2397 = vld [vmem:[#allocation2 + $0x58] sm:$0xff]
    %v2398 = vld [vmem:[#allocation2 + $0x108] sm:$0xff]
    %v2399 = vld [vmem:[#allocation2 + $0x110] sm:$0xff]
    %v2400 = vld [vmem:[#allocation2 + $0x118] sm:$0xff]
    %v2401 = vld [vmem:[#allocation2 + $0x1c8] sm:$0xff]
    %v2402 = vld [vmem:[#allocation2 + $0x1d0] sm:$0xff]
    %v2403 = vld [vmem:[#allocation2 + $0x1d8] sm:$0xff]
    %v2404 = vld [vmem:[#allocation2 + $0x288] sm:$0xff]
    %v2405 = vld [vmem:[#allocation2 + $0x290] sm:$0xff]
    %v2406 = vld [vmem:[#allocation2 + $0x298] sm:$0xff]
    %v2407 = vld [vmem:[#allocation2 + $0x348] sm:$0xff]
    %v2408 = vld [vmem:[#allocation2 + $0x350] sm:$0xff]
    %v2409 = vld [vmem:[#allocation2 + $0x358] sm:$0xff]
    %v2410 = vld [vmem:[#allocation2 + $0x408] sm:$0xff]
    %v2411 = vld [vmem:[#allocation2 + $0x410] sm:$0xff]
    %v2412 = vld [vmem:[#allocation2 + $0x418] sm:$0xff]
    %v2413 = vld [vmem:[#allocation2 + $0x4c8] sm:$0xff]
    %v2414 = vld [vmem:[#allocation2 + $0x4d0] sm:$0xff]
    %v2415 = vld [vmem:[#allocation2 + $0x4d8] sm:$0xff]
    %v2416 = vld [vmem:[#allocation2 + $0x588] sm:$0xff]
    %v2417 = vld [vmem:[#allocation2 + $0x590] sm:$0xff]
    %v2418 = vld [vmem:[#allocation2 + $0x598] sm:$0xff]
    %v2419 = vpack.c.bf16 %v2380, %v2379
    %v2420 = vpack.c.bf16 %v2382, %v2381
    %v2421 = vpack.c.bf16 %v2384, %v2383
    %v2422 = vpack.c.bf16 %v2386, %v2385
    %2423 = vmatpush.bf16.msra.mxu0 %v1595
    %2424 = vmatpush.bf16.msra.mxu0 %v1592
    %2425 = vmatpush.bf16.msra.mxu0 %v1589
    %2426 = vmatpush.bf16.msra.mxu0 %v1586
    %2427 = vmatpush.bf16.msra.mxu0 %v1583
    %2428 = vmatpush.bf16.msra.mxu0 %v1580
    %2429 = vmatpush.bf16.msra.mxu0 %v1577
    %2430 = vmatpush.bf16.msra.mxu0 %v1574
    %2431 = vmatmul.bf16.gmra.mxu0 %v2419
    %v2432 = vpop.f32.mrf.mxu0
    %v2433 = vadd.f32 0.0, %v2432
    %v2434 = vpop.f32.mrf.mxu0
    %v2435 = vadd.f32 0.0, %v2434
    %2436 = vmatmul.bf16.gmra.mxu0 %v2420
    %v2437 = vpop.f32.mrf.mxu0
    %v2438 = vadd.f32 0.0, %v2437
    %v2439 = vpop.f32.mrf.mxu0
    %v2440 = vadd.f32 0.0, %v2439
    %2441 = vmatmul.bf16.gmra.mxu0 %v2421
    %v2442 = vpop.f32.mrf.mxu0
    %v2443 = vadd.f32 0.0, %v2442
    %v2444 = vpop.f32.mrf.mxu0
    %v2445 = vadd.f32 0.0, %v2444
    %2446 = vmatmul.bf16.gmra.mxu0 %v2422
    %v2447 = vpop.f32.mrf.mxu0
    %v2448 = vadd.f32 0.0, %v2447
    %v2449 = vpop.f32.mrf.mxu0
    %v2450 = vadd.f32 0.0, %v2449
    %2451 = vdwg.mxu0
    %2452 = vmatpush.bf16.msra.mxu0 %v1596
    %2453 = vmatpush.bf16.msra.mxu0 %v1593
    %2454 = vmatpush.bf16.msra.mxu0 %v1590
    %2455 = vmatpush.bf16.msra.mxu0 %v1587
    %2456 = vmatpush.bf16.msra.mxu0 %v1584
    %2457 = vmatpush.bf16.msra.mxu0 %v1581
    %2458 = vmatpush.bf16.msra.mxu0 %v1578
    %2459 = vmatpush.bf16.msra.mxu0 %v1575
    %2460 = vmatmul.bf16.gmra.mxu0 %v2419
    %v2461 = vpop.f32.mrf.mxu0
    %v2462 = vadd.f32 0.0, %v2461
    %v2463 = vpop.f32.mrf.mxu0
    %v2464 = vadd.f32 0.0, %v2463
    %2465 = vmatmul.bf16.gmra.mxu0 %v2420
    %v2466 = vpop.f32.mrf.mxu0
    %v2467 = vadd.f32 0.0, %v2466
    %v2468 = vpop.f32.mrf.mxu0
    %v2469 = vadd.f32 0.0, %v2468
    %2470 = vmatmul.bf16.gmra.mxu0 %v2421
    %v2471 = vpop.f32.mrf.mxu0
    %v2472 = vadd.f32 0.0, %v2471
    %v2473 = vpop.f32.mrf.mxu0
    %v2474 = vadd.f32 0.0, %v2473
    %2475 = vmatmul.bf16.gmra.mxu0 %v2422
    %v2476 = vpop.f32.mrf.mxu0
    %v2477 = vadd.f32 0.0, %v2476
    %v2478 = vpop.f32.mrf.mxu0
    %v2479 = vadd.f32 0.0, %v2478
    %2480 = vdwg.mxu0
    %2481 = vmatpush.bf16.msra.mxu0 %v1597
    %2482 = vmatpush.bf16.msra.mxu0 %v1594
    %2483 = vmatpush.bf16.msra.mxu0 %v1591
    %2484 = vmatpush.bf16.msra.mxu0 %v1588
    %2485 = vmatpush.bf16.msra.mxu0 %v1585
    %2486 = vmatpush.bf16.msra.mxu0 %v1582
    %2487 = vmatpush.bf16.msra.mxu0 %v1579
    %2488 = vmatpush.bf16.msra.mxu0 %v1576
    %2489 = vmatmul.bf16.gmra.mxu0 %v2419
    %v2490 = vpop.f32.mrf.mxu0
    %v2491 = vadd.f32 0.0, %v2490
    %v2492 = vpop.f32.mrf.mxu0
    %v2493 = vadd.f32 0.0, %v2492
    %2494 = vmatmul.bf16.gmra.mxu0 %v2420
    %v2495 = vpop.f32.mrf.mxu0
    %v2496 = vadd.f32 0.0, %v2495
    %v2497 = vpop.f32.mrf.mxu0
    %v2498 = vadd.f32 0.0, %v2497
    %2499 = vmatmul.bf16.gmra.mxu0 %v2421
    %v2500 = vpop.f32.mrf.mxu0
    %v2501 = vadd.f32 0.0, %v2500
    %v2502 = vpop.f32.mrf.mxu0
    %v2503 = vadd.f32 0.0, %v2502
    %2504 = vmatmul.bf16.gmra.mxu0 %v2422
    %v2505 = vpop.f32.mrf.mxu0
    %v2506 = vadd.f32 0.0, %v2505
    %v2507 = vpop.f32.mrf.mxu0
    %v2508 = vadd.f32 0.0, %v2507
    %2509 = vdwg.mxu0
    %v2510 = vadd.f32 %v2395, %v2433
    %v2511 = vadd.f32 %v2398, %v2435
    %v2512 = vadd.f32 %v2401, %v2438
    %v2513 = vadd.f32 %v2404, %v2440
    %v2514 = vadd.f32 %v2407, %v2443
    %v2515 = vadd.f32 %v2410, %v2445
    %v2516 = vadd.f32 %v2413, %v2448
    %v2517 = vadd.f32 %v2416, %v2450
    %v2518 = vmul.f32 %v2510, 0.5
    %v2519 = vmul.f32 %v2511, 0.5
    %v2520 = vmul.f32 %v2512, 0.5
    %v2521 = vmul.f32 %v2513, 0.5
    %v2522 = vmul.f32 %v2514, 0.5
    %v2523 = vmul.f32 %v2515, 0.5
    %v2524 = vmul.f32 %v2516, 0.5
    %v2525 = vmul.f32 %v2517, 0.5
    %v2526 = vtanh.pop %v2518
    %v2527 = vtanh.pop %v2519
    %v2528 = vtanh.pop %v2520
    %v2529 = vtanh.pop %v2521
    %v2530 = vtanh.pop %v2522
    %v2531 = vtanh.pop %v2523
    %v2532 = vtanh.pop %v2524
    %v2533 = vtanh.pop %v2525
    %v2534 = vmul.f32 %v2526, 0.5
    %v2535 = vmul.f32 %v2527, 0.5
    %v2536 = vmul.f32 %v2528, 0.5
    %v2537 = vmul.f32 %v2529, 0.5
    %v2538 = vmul.f32 %v2530, 0.5
    %v2539 = vmul.f32 %v2531, 0.5
    %v2540 = vmul.f32 %v2532, 0.5
    %v2541 = vmul.f32 %v2533, 0.5
    %v2542 = vadd.f32 %v2534, 0.5
    %v2543 = vadd.f32 %v2535, 0.5
    %v2544 = vadd.f32 %v2536, 0.5
    %v2545 = vadd.f32 %v2537, 0.5
    %v2546 = vadd.f32 %v2538, 0.5
    %v2547 = vadd.f32 %v2539, 0.5
    %v2548 = vadd.f32 %v2540, 0.5
    %v2549 = vadd.f32 %v2541, 0.5
    %v2550 = vadd.f32 %v2396, %v2462
    %v2551 = vadd.f32 %v2399, %v2464
    %v2552 = vadd.f32 %v2402, %v2467
    %v2553 = vadd.f32 %v2405, %v2469
    %v2554 = vadd.f32 %v2408, %v2472
    %v2555 = vadd.f32 %v2411, %v2474
    %v2556 = vadd.f32 %v2414, %v2477
    %v2557 = vadd.f32 %v2417, %v2479
    %v2558 = vmul.f32 %v2550, 0.5
    %v2559 = vmul.f32 %v2551, 0.5
    %v2560 = vmul.f32 %v2552, 0.5
    %v2561 = vmul.f32 %v2553, 0.5
    %v2562 = vmul.f32 %v2554, 0.5
    %v2563 = vmul.f32 %v2555, 0.5
    %v2564 = vmul.f32 %v2556, 0.5
    %v2565 = vmul.f32 %v2557, 0.5
    %v2566 = vtanh.pop %v2558
    %v2567 = vtanh.pop %v2559
    %v2568 = vtanh.pop %v2560
    %v2569 = vtanh.pop %v2561
    %v2570 = vtanh.pop %v2562
    %v2571 = vtanh.pop %v2563
    %v2572 = vtanh.pop %v2564
    %v2573 = vtanh.pop %v2565
    %v2574 = vmul.f32 %v2566, 0.5
    %v2575 = vmul.f32 %v2567, 0.5
    %v2576 = vmul.f32 %v2568, 0.5
    %v2577 = vmul.f32 %v2569, 0.5
    %v2578 = vmul.f32 %v2570, 0.5
    %v2579 = vmul.f32 %v2571, 0.5
    %v2580 = vmul.f32 %v2572, 0.5
    %v2581 = vmul.f32 %v2573, 0.5
    %v2582 = vadd.f32 %v2574, 0.5
    %v2583 = vadd.f32 %v2575, 0.5
    %v2584 = vadd.f32 %v2576, 0.5
    %v2585 = vadd.f32 %v2577, 0.5
    %v2586 = vadd.f32 %v2578, 0.5
    %v2587 = vadd.f32 %v2579, 0.5
    %v2588 = vadd.f32 %v2580, 0.5
    %v2589 = vadd.f32 %v2581, 0.5
    %v2590 = vadd.f32 %v2491, %v1468
    %v2591 = vadd.f32 %v2493, %v1468
    %v2592 = vadd.f32 %v2496, %v1468
    %v2593 = vadd.f32 %v2498, %v1468
    %v2594 = vadd.f32 %v2501, %v1468
    %v2595 = vadd.f32 %v2503, %v1468
    %v2596 = vadd.f32 %v2506, %v1468
    %v2597 = vadd.f32 %v2508, %v1468
    %v2598 = vmul.f32 %v2542, %v2590
    %v2599 = vmul.f32 %v2543, %v2591
    %v2600 = vmul.f32 %v2544, %v2592
    %v2601 = vmul.f32 %v2545, %v2593
    %v2602 = vmul.f32 %v2546, %v2594
    %v2603 = vmul.f32 %v2547, %v2595
    %v2604 = vmul.f32 %v2548, %v2596
    %v2605 = vmul.f32 %v2549, %v2597
    %v2606 = vadd.f32 %v2397, %v2598
    %v2607 = vadd.f32 %v2400, %v2599
    %v2608 = vadd.f32 %v2403, %v2600
    %v2609 = vadd.f32 %v2406, %v2601
    %v2610 = vadd.f32 %v2409, %v2602
    %v2611 = vadd.f32 %v2412, %v2603
    %v2612 = vadd.f32 %v2415, %v2604
    %v2613 = vadd.f32 %v2418, %v2605
    %v2614 = vtanh.pop %v2606
    %v2615 = vtanh.pop %v2607
    %v2616 = vtanh.pop %v2608
    %v2617 = vtanh.pop %v2609
    %v2618 = vtanh.pop %v2610
    %v2619 = vtanh.pop %v2611
    %v2620 = vtanh.pop %v2612
    %v2621 = vtanh.pop %v2613
    %v2622 = vsub.f32 1.0, %v2582
    %v2623 = vsub.f32 1.0, %v2583
    %v2624 = vsub.f32 1.0, %v2584
    %v2625 = vsub.f32 1.0, %v2585
    %v2626 = vsub.f32 1.0, %v2586
    %v2627 = vsub.f32 1.0, %v2587
    %v2628 = vsub.f32 1.0, %v2588
    %v2629 = vsub.f32 1.0, %v2589
    %v2630 = vmul.f32 %v2622, %v2614
    %v2631 = vmul.f32 %v2623, %v2615
    %v2632 = vmul.f32 %v2624, %v2616
    %v2633 = vmul.f32 %v2625, %v2617
    %v2634 = vmul.f32 %v2626, %v2618
    %v2635 = vmul.f32 %v2627, %v2619
    %v2636 = vmul.f32 %v2628, %v2620
    %v2637 = vmul.f32 %v2629, %v2621
    %v2638 = vmul.f32 %v2582, %v2379
    %v2639 = vmul.f32 %v2583, %v2380
    %v2640 = vmul.f32 %v2584, %v2381
    %v2641 = vmul.f32 %v2585, %v2382
    %v2642 = vmul.f32 %v2586, %v2383
    %v2643 = vmul.f32 %v2587, %v2384
    %v2644 = vmul.f32 %v2588, %v2385
    %v2645 = vmul.f32 %v2589, %v2386
    %v2646 = vadd.f32 %v2630, %v2638
    %v2647 = vadd.f32 %v2631, %v2639
    %v2648 = vadd.f32 %v2632, %v2640
    %v2649 = vadd.f32 %v2633, %v2641
    %v2650 = vadd.f32 %v2634, %v2642
    %v2651 = vadd.f32 %v2635, %v2643
    %v2652 = vadd.f32 %v2636, %v2644
    %v2653 = vadd.f32 %v2637, %v2645
    %2654 = vst [vmem:[#allocation3 + $0x18] sm:$0xff] %v2646
    %2655 = vst [vmem:[#allocation3 + $0x58] sm:$0xff] %v2647
    %2656 = vst [vmem:[#allocation3 + $0x98] sm:$0xff] %v2648
    %2657 = vst [vmem:[#allocation3 + $0xd8] sm:$0xff] %v2649
    %2658 = vst [vmem:[#allocation3 + $0x118] sm:$0xff] %v2650
    %2659 = vst [vmem:[#allocation3 + $0x158] sm:$0xff] %v2651
    %2660 = vst [vmem:[#allocation3 + $0x198] sm:$0xff] %v2652
    %2661 = vst [vmem:[#allocation3 + $0x1d8] sm:$0xff] %v2653
    %v2662 = vld [vmem:[#allocation2 + $0x60] sm:$0xff]
    %v2663 = vld [vmem:[#allocation2 + $0x68] sm:$0xff]
    %v2664 = vld [vmem:[#allocation2 + $0x70] sm:$0xff]
    %v2665 = vld [vmem:[#allocation2 + $0x120] sm:$0xff]
    %v2666 = vld [vmem:[#allocation2 + $0x128] sm:$0xff]
    %v2667 = vld [vmem:[#allocation2 + $0x130] sm:$0xff]
    %v2668 = vld [vmem:[#allocation2 + $0x1e0] sm:$0xff]
    %v2669 = vld [vmem:[#allocation2 + $0x1e8] sm:$0xff]
    %v2670 = vld [vmem:[#allocation2 + $0x1f0] sm:$0xff]
    %v2671 = vld [vmem:[#allocation2 + $0x2a0] sm:$0xff]
    %v2672 = vld [vmem:[#allocation2 + $0x2a8] sm:$0xff]
    %v2673 = vld [vmem:[#allocation2 + $0x2b0] sm:$0xff]
    %v2674 = vld [vmem:[#allocation2 + $0x360] sm:$0xff]
    %v2675 = vld [vmem:[#allocation2 + $0x368] sm:$0xff]
    %v2676 = vld [vmem:[#allocation2 + $0x370] sm:$0xff]
    %v2677 = vld [vmem:[#allocation2 + $0x420] sm:$0xff]
    %v2678 = vld [vmem:[#allocation2 + $0x428] sm:$0xff]
    %v2679 = vld [vmem:[#allocation2 + $0x430] sm:$0xff]
    %v2680 = vld [vmem:[#allocation2 + $0x4e0] sm:$0xff]
    %v2681 = vld [vmem:[#allocation2 + $0x4e8] sm:$0xff]
    %v2682 = vld [vmem:[#allocation2 + $0x4f0] sm:$0xff]
    %v2683 = vld [vmem:[#allocation2 + $0x5a0] sm:$0xff]
    %v2684 = vld [vmem:[#allocation2 + $0x5a8] sm:$0xff]
    %v2685 = vld [vmem:[#allocation2 + $0x5b0] sm:$0xff]
    %v2686 = vpack.c.bf16 %v2647, %v2646
    %v2687 = vpack.c.bf16 %v2649, %v2648
    %v2688 = vpack.c.bf16 %v2651, %v2650
    %v2689 = vpack.c.bf16 %v2653, %v2652
    %2690 = vmatpush.bf16.msra.mxu0 %v1595
    %2691 = vmatpush.bf16.msra.mxu0 %v1592
    %2692 = vmatpush.bf16.msra.mxu0 %v1589
    %2693 = vmatpush.bf16.msra.mxu0 %v1586
    %2694 = vmatpush.bf16.msra.mxu0 %v1583
    %2695 = vmatpush.bf16.msra.mxu0 %v1580
    %2696 = vmatpush.bf16.msra.mxu0 %v1577
    %2697 = vmatpush.bf16.msra.mxu0 %v1574
    %2698 = vmatmul.bf16.gmra.mxu0 %v2686
    %v2699 = vpop.f32.mrf.mxu0
    %v2700 = vadd.f32 0.0, %v2699
    %v2701 = vpop.f32.mrf.mxu0
    %v2702 = vadd.f32 0.0, %v2701
    %2703 = vmatmul.bf16.gmra.mxu0 %v2687
    %v2704 = vpop.f32.mrf.mxu0
    %v2705 = vadd.f32 0.0, %v2704
    %v2706 = vpop.f32.mrf.mxu0
    %v2707 = vadd.f32 0.0, %v2706
    %2708 = vmatmul.bf16.gmra.mxu0 %v2688
    %v2709 = vpop.f32.mrf.mxu0
    %v2710 = vadd.f32 0.0, %v2709
    %v2711 = vpop.f32.mrf.mxu0
    %v2712 = vadd.f32 0.0, %v2711
    %2713 = vmatmul.bf16.gmra.mxu0 %v2689
    %v2714 = vpop.f32.mrf.mxu0
    %v2715 = vadd.f32 0.0, %v2714
    %v2716 = vpop.f32.mrf.mxu0
    %v2717 = vadd.f32 0.0, %v2716
    %2718 = vdwg.mxu0
    %2719 = vmatpush.bf16.msra.mxu0 %v1596
    %2720 = vmatpush.bf16.msra.mxu0 %v1593
    %2721 = vmatpush.bf16.msra.mxu0 %v1590
    %2722 = vmatpush.bf16.msra.mxu0 %v1587
    %2723 = vmatpush.bf16.msra.mxu0 %v1584
    %2724 = vmatpush.bf16.msra.mxu0 %v1581
    %2725 = vmatpush.bf16.msra.mxu0 %v1578
    %2726 = vmatpush.bf16.msra.mxu0 %v1575
    %2727 = vmatmul.bf16.gmra.mxu0 %v2686
    %v2728 = vpop.f32.mrf.mxu0
    %v2729 = vadd.f32 0.0, %v2728
    %v2730 = vpop.f32.mrf.mxu0
    %v2731 = vadd.f32 0.0, %v2730
    %2732 = vmatmul.bf16.gmra.mxu0 %v2687
    %v2733 = vpop.f32.mrf.mxu0
    %v2734 = vadd.f32 0.0, %v2733
    %v2735 = vpop.f32.mrf.mxu0
    %v2736 = vadd.f32 0.0, %v2735
    %2737 = vmatmul.bf16.gmra.mxu0 %v2688
    %v2738 = vpop.f32.mrf.mxu0
    %v2739 = vadd.f32 0.0, %v2738
    %v2740 = vpop.f32.mrf.mxu0
    %v2741 = vadd.f32 0.0, %v2740
    %2742 = vmatmul.bf16.gmra.mxu0 %v2689
    %v2743 = vpop.f32.mrf.mxu0
    %v2744 = vadd.f32 0.0, %v2743
    %v2745 = vpop.f32.mrf.mxu0
    %v2746 = vadd.f32 0.0, %v2745
    %2747 = vdwg.mxu0
    %2748 = vmatpush.bf16.msra.mxu0 %v1597
    %2749 = vmatpush.bf16.msra.mxu0 %v1594
    %2750 = vmatpush.bf16.msra.mxu0 %v1591
    %2751 = vmatpush.bf16.msra.mxu0 %v1588
    %2752 = vmatpush.bf16.msra.mxu0 %v1585
    %2753 = vmatpush.bf16.msra.mxu0 %v1582
    %2754 = vmatpush.bf16.msra.mxu0 %v1579
    %2755 = vmatpush.bf16.msra.mxu0 %v1576
    %2756 = vmatmul.bf16.gmra.mxu0 %v2686
    %v2757 = vpop.f32.mrf.mxu0
    %v2758 = vadd.f32 0.0, %v2757
    %v2759 = vpop.f32.mrf.mxu0
    %v2760 = vadd.f32 0.0, %v2759
    %2761 = vmatmul.bf16.gmra.mxu0 %v2687
    %v2762 = vpop.f32.mrf.mxu0
    %v2763 = vadd.f32 0.0, %v2762
    %v2764 = vpop.f32.mrf.mxu0
    %v2765 = vadd.f32 0.0, %v2764
    %2766 = vmatmul.bf16.gmra.mxu0 %v2688
    %v2767 = vpop.f32.mrf.mxu0
    %v2768 = vadd.f32 0.0, %v2767
    %v2769 = vpop.f32.mrf.mxu0
    %v2770 = vadd.f32 0.0, %v2769
    %2771 = vmatmul.bf16.gmra.mxu0 %v2689
    %v2772 = vpop.f32.mrf.mxu0
    %v2773 = vadd.f32 0.0, %v2772
    %v2774 = vpop.f32.mrf.mxu0
    %v2775 = vadd.f32 0.0, %v2774
    %2776 = vdwg.mxu0
    %v2777 = vadd.f32 %v2662, %v2700
    %v2778 = vadd.f32 %v2665, %v2702
    %v2779 = vadd.f32 %v2668, %v2705
    %v2780 = vadd.f32 %v2671, %v2707
    %v2781 = vadd.f32 %v2674, %v2710
    %v2782 = vadd.f32 %v2677, %v2712
    %v2783 = vadd.f32 %v2680, %v2715
    %v2784 = vadd.f32 %v2683, %v2717
    %v2785 = vmul.f32 %v2777, 0.5
    %v2786 = vmul.f32 %v2778, 0.5
    %v2787 = vmul.f32 %v2779, 0.5
    %v2788 = vmul.f32 %v2780, 0.5
    %v2789 = vmul.f32 %v2781, 0.5
    %v2790 = vmul.f32 %v2782, 0.5
    %v2791 = vmul.f32 %v2783, 0.5
    %v2792 = vmul.f32 %v2784, 0.5
    %v2793 = vtanh.pop %v2785
    %v2794 = vtanh.pop %v2786
    %v2795 = vtanh.pop %v2787
    %v2796 = vtanh.pop %v2788
    %v2797 = vtanh.pop %v2789
    %v2798 = vtanh.pop %v2790
    %v2799 = vtanh.pop %v2791
    %v2800 = vtanh.pop %v2792
    %v2801 = vmul.f32 %v2793, 0.5
    %v2802 = vmul.f32 %v2794, 0.5
    %v2803 = vmul.f32 %v2795, 0.5
    %v2804 = vmul.f32 %v2796, 0.5
    %v2805 = vmul.f32 %v2797, 0.5
    %v2806 = vmul.f32 %v2798, 0.5
    %v2807 = vmul.f32 %v2799, 0.5
    %v2808 = vmul.f32 %v2800, 0.5
    %v2809 = vadd.f32 %v2801, 0.5
    %v2810 = vadd.f32 %v2802, 0.5
    %v2811 = vadd.f32 %v2803, 0.5
    %v2812 = vadd.f32 %v2804, 0.5
    %v2813 = vadd.f32 %v2805, 0.5
    %v2814 = vadd.f32 %v2806, 0.5
    %v2815 = vadd.f32 %v2807, 0.5
    %v2816 = vadd.f32 %v2808, 0.5
    %v2817 = vadd.f32 %v2663, %v2729
    %v2818 = vadd.f32 %v2666, %v2731
    %v2819 = vadd.f32 %v2669, %v2734
    %v2820 = vadd.f32 %v2672, %v2736
    %v2821 = vadd.f32 %v2675, %v2739
    %v2822 = vadd.f32 %v2678, %v2741
    %v2823 = vadd.f32 %v2681, %v2744
    %v2824 = vadd.f32 %v2684, %v2746
    %v2825 = vmul.f32 %v2817, 0.5
    %v2826 = vmul.f32 %v2818, 0.5
    %v2827 = vmul.f32 %v2819, 0.5
    %v2828 = vmul.f32 %v2820, 0.5
    %v2829 = vmul.f32 %v2821, 0.5
    %v2830 = vmul.f32 %v2822, 0.5
    %v2831 = vmul.f32 %v2823, 0.5
    %v2832 = vmul.f32 %v2824, 0.5
    %v2833 = vtanh.pop %v2825
    %v2834 = vtanh.pop %v2826
    %v2835 = vtanh.pop %v2827
    %v2836 = vtanh.pop %v2828
    %v2837 = vtanh.pop %v2829
    %v2838 = vtanh.pop %v2830
    %v2839 = vtanh.pop %v2831
    %v2840 = vtanh.pop %v2832
    %v2841 = vmul.f32 %v2833, 0.5
    %v2842 = vmul.f32 %v2834, 0.5
    %v2843 = vmul.f32 %v2835, 0.5
    %v2844 = vmul.f32 %v2836, 0.5
    %v2845 = vmul.f32 %v2837, 0.5
    %v2846 = vmul.f32 %v2838, 0.5
    %v2847 = vmul.f32 %v2839, 0.5
    %v2848 = vmul.f32 %v2840, 0.5
    %v2849 = vadd.f32 %v2841, 0.5
    %v2850 = vadd.f32 %v2842, 0.5
    %v2851 = vadd.f32 %v2843, 0.5
    %v2852 = vadd.f32 %v2844, 0.5
    %v2853 = vadd.f32 %v2845, 0.5
    %v2854 = vadd.f32 %v2846, 0.5
    %v2855 = vadd.f32 %v2847, 0.5
    %v2856 = vadd.f32 %v2848, 0.5
    %v2857 = vadd.f32 %v2758, %v1468
    %v2858 = vadd.f32 %v2760, %v1468
    %v2859 = vadd.f32 %v2763, %v1468
    %v2860 = vadd.f32 %v2765, %v1468
    %v2861 = vadd.f32 %v2768, %v1468
    %v2862 = vadd.f32 %v2770, %v1468
    %v2863 = vadd.f32 %v2773, %v1468
    %v2864 = vadd.f32 %v2775, %v1468
    %v2865 = vmul.f32 %v2809, %v2857
    %v2866 = vmul.f32 %v2810, %v2858
    %v2867 = vmul.f32 %v2811, %v2859
    %v2868 = vmul.f32 %v2812, %v2860
    %v2869 = vmul.f32 %v2813, %v2861
    %v2870 = vmul.f32 %v2814, %v2862
    %v2871 = vmul.f32 %v2815, %v2863
    %v2872 = vmul.f32 %v2816, %v2864
    %v2873 = vadd.f32 %v2664, %v2865
    %v2874 = vadd.f32 %v2667, %v2866
    %v2875 = vadd.f32 %v2670, %v2867
    %v2876 = vadd.f32 %v2673, %v2868
    %v2877 = vadd.f32 %v2676, %v2869
    %v2878 = vadd.f32 %v2679, %v2870
    %v2879 = vadd.f32 %v2682, %v2871
    %v2880 = vadd.f32 %v2685, %v2872
    %v2881 = vtanh.pop %v2873
    %v2882 = vtanh.pop %v2874
    %v2883 = vtanh.pop %v2875
    %v2884 = vtanh.pop %v2876
    %v2885 = vtanh.pop %v2877
    %v2886 = vtanh.pop %v2878
    %v2887 = vtanh.pop %v2879
    %v2888 = vtanh.pop %v2880
    %v2889 = vsub.f32 1.0, %v2849
    %v2890 = vsub.f32 1.0, %v2850
    %v2891 = vsub.f32 1.0, %v2851
    %v2892 = vsub.f32 1.0, %v2852
    %v2893 = vsub.f32 1.0, %v2853
    %v2894 = vsub.f32 1.0, %v2854
    %v2895 = vsub.f32 1.0, %v2855
    %v2896 = vsub.f32 1.0, %v2856
    %v2897 = vmul.f32 %v2889, %v2881
    %v2898 = vmul.f32 %v2890, %v2882
    %v2899 = vmul.f32 %v2891, %v2883
    %v2900 = vmul.f32 %v2892, %v2884
    %v2901 = vmul.f32 %v2893, %v2885
    %v2902 = vmul.f32 %v2894, %v2886
    %v2903 = vmul.f32 %v2895, %v2887
    %v2904 = vmul.f32 %v2896, %v2888
    %v2905 = vmul.f32 %v2849, %v2646
    %v2906 = vmul.f32 %v2850, %v2647
    %v2907 = vmul.f32 %v2851, %v2648
    %v2908 = vmul.f32 %v2852, %v2649
    %v2909 = vmul.f32 %v2853, %v2650
    %v2910 = vmul.f32 %v2854, %v2651
    %v2911 = vmul.f32 %v2855, %v2652
    %v2912 = vmul.f32 %v2856, %v2653
    %v2913 = vadd.f32 %v2897, %v2905
    %v2914 = vadd.f32 %v2898, %v2906
    %v2915 = vadd.f32 %v2899, %v2907
    %v2916 = vadd.f32 %v2900, %v2908
    %v2917 = vadd.f32 %v2901, %v2909
    %v2918 = vadd.f32 %v2902, %v2910
    %v2919 = vadd.f32 %v2903, %v2911
    %v2920 = vadd.f32 %v2904, %v2912
    %2921 = vst [vmem:[#allocation3 + $0x20] sm:$0xff] %v2913
    %2922 = vst [vmem:[#allocation3 + $0x60] sm:$0xff] %v2914
    %2923 = vst [vmem:[#allocation3 + $0xa0] sm:$0xff] %v2915
    %2924 = vst [vmem:[#allocation3 + $0xe0] sm:$0xff] %v2916
    %2925 = vst [vmem:[#allocation3 + $0x120] sm:$0xff] %v2917
    %2926 = vst [vmem:[#allocation3 + $0x160] sm:$0xff] %v2918
    %2927 = vst [vmem:[#allocation3 + $0x1a0] sm:$0xff] %v2919
    %2928 = vst [vmem:[#allocation3 + $0x1e0] sm:$0xff] %v2920
    %v2929 = vld [vmem:[#allocation2 + $0x78] sm:$0xff]
    %v2930 = vld [vmem:[#allocation2 + $0x80] sm:$0xff]
    %v2931 = vld [vmem:[#allocation2 + $0x88] sm:$0xff]
    %v2932 = vld [vmem:[#allocation2 + $0x138] sm:$0xff]
    %v2933 = vld [vmem:[#allocation2 + $0x140] sm:$0xff]
    %v2934 = vld [vmem:[#allocation2 + $0x148] sm:$0xff]
    %v2935 = vld [vmem:[#allocation2 + $0x1f8] sm:$0xff]
    %v2936 = vld [vmem:[#allocation2 + $0x200] sm:$0xff]
    %v2937 = vld [vmem:[#allocation2 + $0x208] sm:$0xff]
    %v2938 = vld [vmem:[#allocation2 + $0x2b8] sm:$0xff]
    %v2939 = vld [vmem:[#allocation2 + $0x2c0] sm:$0xff]
    %v2940 = vld [vmem:[#allocation2 + $0x2c8] sm:$0xff]
    %v2941 = vld [vmem:[#allocation2 + $0x378] sm:$0xff]
    %v2942 = vld [vmem:[#allocation2 + $0x380] sm:$0xff]
    %v2943 = vld [vmem:[#allocation2 + $0x388] sm:$0xff]
    %v2944 = vld [vmem:[#allocation2 + $0x438] sm:$0xff]
    %v2945 = vld [vmem:[#allocation2 + $0x440] sm:$0xff]
    %v2946 = vld [vmem:[#allocation2 + $0x448] sm:$0xff]
    %v2947 = vld [vmem:[#allocation2 + $0x4f8] sm:$0xff]
    %v2948 = vld [vmem:[#allocation2 + $0x500] sm:$0xff]
    %v2949 = vld [vmem:[#allocation2 + $0x508] sm:$0xff]
    %v2950 = vld [vmem:[#allocation2 + $0x5b8] sm:$0xff]
    %v2951 = vld [vmem:[#allocation2 + $0x5c0] sm:$0xff]
    %v2952 = vld [vmem:[#allocation2 + $0x5c8] sm:$0xff]
    %v2953 = vpack.c.bf16 %v2914, %v2913
    %v2954 = vpack.c.bf16 %v2916, %v2915
    %v2955 = vpack.c.bf16 %v2918, %v2917
    %v2956 = vpack.c.bf16 %v2920, %v2919
    %2957 = vmatpush.bf16.msra.mxu0 %v1595
    %2958 = vmatpush.bf16.msra.mxu0 %v1592
    %2959 = vmatpush.bf16.msra.mxu0 %v1589
    %2960 = vmatpush.bf16.msra.mxu0 %v1586
    %2961 = vmatpush.bf16.msra.mxu0 %v1583
    %2962 = vmatpush.bf16.msra.mxu0 %v1580
    %2963 = vmatpush.bf16.msra.mxu0 %v1577
    %2964 = vmatpush.bf16.msra.mxu0 %v1574
    %2965 = vmatmul.bf16.gmra.mxu0 %v2953
    %v2966 = vpop.f32.mrf.mxu0
    %v2967 = vadd.f32 0.0, %v2966
    %v2968 = vpop.f32.mrf.mxu0
    %v2969 = vadd.f32 0.0, %v2968
    %2970 = vmatmul.bf16.gmra.mxu0 %v2954
    %v2971 = vpop.f32.mrf.mxu0
    %v2972 = vadd.f32 0.0, %v2971
    %v2973 = vpop.f32.mrf.mxu0
    %v2974 = vadd.f32 0.0, %v2973
    %2975 = vmatmul.bf16.gmra.mxu0 %v2955
    %v2976 = vpop.f32.mrf.mxu0
    %v2977 = vadd.f32 0.0, %v2976
    %v2978 = vpop.f32.mrf.mxu0
    %v2979 = vadd.f32 0.0, %v2978
    %2980 = vmatmul.bf16.gmra.mxu0 %v2956
    %v2981 = vpop.f32.mrf.mxu0
    %v2982 = vadd.f32 0.0, %v2981
    %v2983 = vpop.f32.mrf.mxu0
    %v2984 = vadd.f32 0.0, %v2983
    %2985 = vdwg.mxu0
    %2986 = vmatpush.bf16.msra.mxu0 %v1596
    %2987 = vmatpush.bf16.msra.mxu0 %v1593
    %2988 = vmatpush.bf16.msra.mxu0 %v1590
    %2989 = vmatpush.bf16.msra.mxu0 %v1587
    %2990 = vmatpush.bf16.msra.mxu0 %v1584
    %2991 = vmatpush.bf16.msra.mxu0 %v1581
    %2992 = vmatpush.bf16.msra.mxu0 %v1578
    %2993 = vmatpush.bf16.msra.mxu0 %v1575
    %2994 = vmatmul.bf16.gmra.mxu0 %v2953
    %v2995 = vpop.f32.mrf.mxu0
    %v2996 = vadd.f32 0.0, %v2995
    %v2997 = vpop.f32.mrf.mxu0
    %v2998 = vadd.f32 0.0, %v2997
    %2999 = vmatmul.bf16.gmra.mxu0 %v2954
    %v3000 = vpop.f32.mrf.mxu0
    %v3001 = vadd.f32 0.0, %v3000
    %v3002 = vpop.f32.mrf.mxu0
    %v3003 = vadd.f32 0.0, %v3002
    %3004 = vmatmul.bf16.gmra.mxu0 %v2955
    %v3005 = vpop.f32.mrf.mxu0
    %v3006 = vadd.f32 0.0, %v3005
    %v3007 = vpop.f32.mrf.mxu0
    %v3008 = vadd.f32 0.0, %v3007
    %3009 = vmatmul.bf16.gmra.mxu0 %v2956
    %v3010 = vpop.f32.mrf.mxu0
    %v3011 = vadd.f32 0.0, %v3010
    %v3012 = vpop.f32.mrf.mxu0
    %v3013 = vadd.f32 0.0, %v3012
    %3014 = vdwg.mxu0
    %3015 = vmatpush.bf16.msra.mxu0 %v1597
    %3016 = vmatpush.bf16.msra.mxu0 %v1594
    %3017 = vmatpush.bf16.msra.mxu0 %v1591
    %3018 = vmatpush.bf16.msra.mxu0 %v1588
    %3019 = vmatpush.bf16.msra.mxu0 %v1585
    %3020 = vmatpush.bf16.msra.mxu0 %v1582
    %3021 = vmatpush.bf16.msra.mxu0 %v1579
    %3022 = vmatpush.bf16.msra.mxu0 %v1576
    %3023 = vmatmul.bf16.gmra.mxu0 %v2953
    %v3024 = vpop.f32.mrf.mxu0
    %v3025 = vadd.f32 0.0, %v3024
    %v3026 = vpop.f32.mrf.mxu0
    %v3027 = vadd.f32 0.0, %v3026
    %3028 = vmatmul.bf16.gmra.mxu0 %v2954
    %v3029 = vpop.f32.mrf.mxu0
    %v3030 = vadd.f32 0.0, %v3029
    %v3031 = vpop.f32.mrf.mxu0
    %v3032 = vadd.f32 0.0, %v3031
    %3033 = vmatmul.bf16.gmra.mxu0 %v2955
    %v3034 = vpop.f32.mrf.mxu0
    %v3035 = vadd.f32 0.0, %v3034
    %v3036 = vpop.f32.mrf.mxu0
    %v3037 = vadd.f32 0.0, %v3036
    %3038 = vmatmul.bf16.gmra.mxu0 %v2956
    %v3039 = vpop.f32.mrf.mxu0
    %v3040 = vadd.f32 0.0, %v3039
    %v3041 = vpop.f32.mrf.mxu0
    %v3042 = vadd.f32 0.0, %v3041
    %3043 = vdwg.mxu0
    %v3044 = vadd.f32 %v2929, %v2967
    %v3045 = vadd.f32 %v2932, %v2969
    %v3046 = vadd.f32 %v2935, %v2972
    %v3047 = vadd.f32 %v2938, %v2974
    %v3048 = vadd.f32 %v2941, %v2977
    %v3049 = vadd.f32 %v2944, %v2979
    %v3050 = vadd.f32 %v2947, %v2982
    %v3051 = vadd.f32 %v2950, %v2984
    %v3052 = vmul.f32 %v3044, 0.5
    %v3053 = vmul.f32 %v3045, 0.5
    %v3054 = vmul.f32 %v3046, 0.5
    %v3055 = vmul.f32 %v3047, 0.5
    %v3056 = vmul.f32 %v3048, 0.5
    %v3057 = vmul.f32 %v3049, 0.5
    %v3058 = vmul.f32 %v3050, 0.5
    %v3059 = vmul.f32 %v3051, 0.5
    %v3060 = vtanh.pop %v3052
    %v3061 = vtanh.pop %v3053
    %v3062 = vtanh.pop %v3054
    %v3063 = vtanh.pop %v3055
    %v3064 = vtanh.pop %v3056
    %v3065 = vtanh.pop %v3057
    %v3066 = vtanh.pop %v3058
    %v3067 = vtanh.pop %v3059
    %v3068 = vmul.f32 %v3060, 0.5
    %v3069 = vmul.f32 %v3061, 0.5
    %v3070 = vmul.f32 %v3062, 0.5
    %v3071 = vmul.f32 %v3063, 0.5
    %v3072 = vmul.f32 %v3064, 0.5
    %v3073 = vmul.f32 %v3065, 0.5
    %v3074 = vmul.f32 %v3066, 0.5
    %v3075 = vmul.f32 %v3067, 0.5
    %v3076 = vadd.f32 %v3068, 0.5
    %v3077 = vadd.f32 %v3069, 0.5
    %v3078 = vadd.f32 %v3070, 0.5
    %v3079 = vadd.f32 %v3071, 0.5
    %v3080 = vadd.f32 %v3072, 0.5
    %v3081 = vadd.f32 %v3073, 0.5
    %v3082 = vadd.f32 %v3074, 0.5
    %v3083 = vadd.f32 %v3075, 0.5
    %v3084 = vadd.f32 %v2930, %v2996
    %v3085 = vadd.f32 %v2933, %v2998
    %v3086 = vadd.f32 %v2936, %v3001
    %v3087 = vadd.f32 %v2939, %v3003
    %v3088 = vadd.f32 %v2942, %v3006
    %v3089 = vadd.f32 %v2945, %v3008
    %v3090 = vadd.f32 %v2948, %v3011
    %v3091 = vadd.f32 %v2951, %v3013
    %v3092 = vmul.f32 %v3084, 0.5
    %v3093 = vmul.f32 %v3085, 0.5
    %v3094 = vmul.f32 %v3086, 0.5
    %v3095 = vmul.f32 %v3087, 0.5
    %v3096 = vmul.f32 %v3088, 0.5
    %v3097 = vmul.f32 %v3089, 0.5
    %v3098 = vmul.f32 %v3090, 0.5
    %v3099 = vmul.f32 %v3091, 0.5
    %v3100 = vtanh.pop %v3092
    %v3101 = vtanh.pop %v3093
    %v3102 = vtanh.pop %v3094
    %v3103 = vtanh.pop %v3095
    %v3104 = vtanh.pop %v3096
    %v3105 = vtanh.pop %v3097
    %v3106 = vtanh.pop %v3098
    %v3107 = vtanh.pop %v3099
    %v3108 = vmul.f32 %v3100, 0.5
    %v3109 = vmul.f32 %v3101, 0.5
    %v3110 = vmul.f32 %v3102, 0.5
    %v3111 = vmul.f32 %v3103, 0.5
    %v3112 = vmul.f32 %v3104, 0.5
    %v3113 = vmul.f32 %v3105, 0.5
    %v3114 = vmul.f32 %v3106, 0.5
    %v3115 = vmul.f32 %v3107, 0.5
    %v3116 = vadd.f32 %v3108, 0.5
    %v3117 = vadd.f32 %v3109, 0.5
    %v3118 = vadd.f32 %v3110, 0.5
    %v3119 = vadd.f32 %v3111, 0.5
    %v3120 = vadd.f32 %v3112, 0.5
    %v3121 = vadd.f32 %v3113, 0.5
    %v3122 = vadd.f32 %v3114, 0.5
    %v3123 = vadd.f32 %v3115, 0.5
    %v3124 = vadd.f32 %v3025, %v1468
    %v3125 = vadd.f32 %v3027, %v1468
    %v3126 = vadd.f32 %v3030, %v1468
    %v3127 = vadd.f32 %v3032, %v1468
    %v3128 = vadd.f32 %v3035, %v1468
    %v3129 = vadd.f32 %v3037, %v1468
    %v3130 = vadd.f32 %v3040, %v1468
    %v3131 = vadd.f32 %v3042, %v1468
    %v3132 = vmul.f32 %v3076, %v3124
    %v3133 = vmul.f32 %v3077, %v3125
    %v3134 = vmul.f32 %v3078, %v3126
    %v3135 = vmul.f32 %v3079, %v3127
    %v3136 = vmul.f32 %v3080, %v3128
    %v3137 = vmul.f32 %v3081, %v3129
    %v3138 = vmul.f32 %v3082, %v3130
    %v3139 = vmul.f32 %v3083, %v3131
    %v3140 = vadd.f32 %v2931, %v3132
    %v3141 = vadd.f32 %v2934, %v3133
    %v3142 = vadd.f32 %v2937, %v3134
    %v3143 = vadd.f32 %v2940, %v3135
    %v3144 = vadd.f32 %v2943, %v3136
    %v3145 = vadd.f32 %v2946, %v3137
    %v3146 = vadd.f32 %v2949, %v3138
    %v3147 = vadd.f32 %v2952, %v3139
    %v3148 = vtanh.pop %v3140
    %v3149 = vtanh.pop %v3141
    %v3150 = vtanh.pop %v3142
    %v3151 = vtanh.pop %v3143
    %v3152 = vtanh.pop %v3144
    %v3153 = vtanh.pop %v3145
    %v3154 = vtanh.pop %v3146
    %v3155 = vtanh.pop %v3147
    %v3156 = vsub.f32 1.0, %v3116
    %v3157 = vsub.f32 1.0, %v3117
    %v3158 = vsub.f32 1.0, %v3118
    %v3159 = vsub.f32 1.0, %v3119
    %v3160 = vsub.f32 1.0, %v3120
    %v3161 = vsub.f32 1.0, %v3121
    %v3162 = vsub.f32 1.0, %v3122
    %v3163 = vsub.f32 1.0, %v3123
    %v3164 = vmul.f32 %v3156, %v3148
    %v3165 = vmul.f32 %v3157, %v3149
    %v3166 = vmul.f32 %v3158, %v3150
    %v3167 = vmul.f32 %v3159, %v3151
    %v3168 = vmul.f32 %v3160, %v3152
    %v3169 = vmul.f32 %v3161, %v3153
    %v3170 = vmul.f32 %v3162, %v3154
    %v3171 = vmul.f32 %v3163, %v3155
    %v3172 = vmul.f32 %v3116, %v2913
    %v3173 = vmul.f32 %v3117, %v2914
    %v3174 = vmul.f32 %v3118, %v2915
    %v3175 = vmul.f32 %v3119, %v2916
    %v3176 = vmul.f32 %v3120, %v2917
    %v3177 = vmul.f32 %v3121, %v2918
    %v3178 = vmul.f32 %v3122, %v2919
    %v3179 = vmul.f32 %v3123, %v2920
    %v3180 = vadd.f32 %v3164, %v3172
    %v3181 = vadd.f32 %v3165, %v3173
    %v3182 = vadd.f32 %v3166, %v3174
    %v3183 = vadd.f32 %v3167, %v3175
    %v3184 = vadd.f32 %v3168, %v3176
    %v3185 = vadd.f32 %v3169, %v3177
    %v3186 = vadd.f32 %v3170, %v3178
    %v3187 = vadd.f32 %v3171, %v3179
    %3188 = vst [vmem:[#allocation3 + $0x28] sm:$0xff] %v3180
    %3189 = vst [vmem:[#allocation3 + $0x68] sm:$0xff] %v3181
    %3190 = vst [vmem:[#allocation3 + $0xa8] sm:$0xff] %v3182
    %3191 = vst [vmem:[#allocation3 + $0xe8] sm:$0xff] %v3183
    %3192 = vst [vmem:[#allocation3 + $0x128] sm:$0xff] %v3184
    %3193 = vst [vmem:[#allocation3 + $0x168] sm:$0xff] %v3185
    %3194 = vst [vmem:[#allocation3 + $0x1a8] sm:$0xff] %v3186
    %3195 = vst [vmem:[#allocation3 + $0x1e8] sm:$0xff] %v3187
    %v3196 = vld [vmem:[#allocation2 + $0x90] sm:$0xff]
    %v3197 = vld [vmem:[#allocation2 + $0x98] sm:$0xff]
    %v3198 = vld [vmem:[#allocation2 + $0xa0] sm:$0xff]
    %v3199 = vld [vmem:[#allocation2 + $0x150] sm:$0xff]
    %v3200 = vld [vmem:[#allocation2 + $0x158] sm:$0xff]
    %v3201 = vld [vmem:[#allocation2 + $0x160] sm:$0xff]
    %v3202 = vld [vmem:[#allocation2 + $0x210] sm:$0xff]
    %v3203 = vld [vmem:[#allocation2 + $0x218] sm:$0xff]
    %v3204 = vld [vmem:[#allocation2 + $0x220] sm:$0xff]
    %v3205 = vld [vmem:[#allocation2 + $0x2d0] sm:$0xff]
    %v3206 = vld [vmem:[#allocation2 + $0x2d8] sm:$0xff]
    %v3207 = vld [vmem:[#allocation2 + $0x2e0] sm:$0xff]
    %v3208 = vld [vmem:[#allocation2 + $0x390] sm:$0xff]
    %v3209 = vld [vmem:[#allocation2 + $0x398] sm:$0xff]
    %v3210 = vld [vmem:[#allocation2 + $0x3a0] sm:$0xff]
    %v3211 = vld [vmem:[#allocation2 + $0x450] sm:$0xff]
    %v3212 = vld [vmem:[#allocation2 + $0x458] sm:$0xff]
    %v3213 = vld [vmem:[#allocation2 + $0x460] sm:$0xff]
    %v3214 = vld [vmem:[#allocation2 + $0x510] sm:$0xff]
    %v3215 = vld [vmem:[#allocation2 + $0x518] sm:$0xff]
    %v3216 = vld [vmem:[#allocation2 + $0x520] sm:$0xff]
    %v3217 = vld [vmem:[#allocation2 + $0x5d0] sm:$0xff]
    %v3218 = vld [vmem:[#allocation2 + $0x5d8] sm:$0xff]
    %v3219 = vld [vmem:[#allocation2 + $0x5e0] sm:$0xff]
    %v3220 = vpack.c.bf16 %v3181, %v3180
    %v3221 = vpack.c.bf16 %v3183, %v3182
    %v3222 = vpack.c.bf16 %v3185, %v3184
    %v3223 = vpack.c.bf16 %v3187, %v3186
    %3224 = vmatpush.bf16.msra.mxu0 %v1595
    %3225 = vmatpush.bf16.msra.mxu0 %v1592
    %3226 = vmatpush.bf16.msra.mxu0 %v1589
    %3227 = vmatpush.bf16.msra.mxu0 %v1586
    %3228 = vmatpush.bf16.msra.mxu0 %v1583
    %3229 = vmatpush.bf16.msra.mxu0 %v1580
    %3230 = vmatpush.bf16.msra.mxu0 %v1577
    %3231 = vmatpush.bf16.msra.mxu0 %v1574
    %3232 = vmatmul.bf16.gmra.mxu0 %v3220
    %v3233 = vpop.f32.mrf.mxu0
    %v3234 = vadd.f32 0.0, %v3233
    %v3235 = vpop.f32.mrf.mxu0
    %v3236 = vadd.f32 0.0, %v3235
    %3237 = vmatmul.bf16.gmra.mxu0 %v3221
    %v3238 = vpop.f32.mrf.mxu0
    %v3239 = vadd.f32 0.0, %v3238
    %v3240 = vpop.f32.mrf.mxu0
    %v3241 = vadd.f32 0.0, %v3240
    %3242 = vmatmul.bf16.gmra.mxu0 %v3222
    %v3243 = vpop.f32.mrf.mxu0
    %v3244 = vadd.f32 0.0, %v3243
    %v3245 = vpop.f32.mrf.mxu0
    %v3246 = vadd.f32 0.0, %v3245
    %3247 = vmatmul.bf16.gmra.mxu0 %v3223
    %v3248 = vpop.f32.mrf.mxu0
    %v3249 = vadd.f32 0.0, %v3248
    %v3250 = vpop.f32.mrf.mxu0
    %v3251 = vadd.f32 0.0, %v3250
    %3252 = vdwg.mxu0
    %3253 = vmatpush.bf16.msra.mxu0 %v1596
    %3254 = vmatpush.bf16.msra.mxu0 %v1593
    %3255 = vmatpush.bf16.msra.mxu0 %v1590
    %3256 = vmatpush.bf16.msra.mxu0 %v1587
    %3257 = vmatpush.bf16.msra.mxu0 %v1584
    %3258 = vmatpush.bf16.msra.mxu0 %v1581
    %3259 = vmatpush.bf16.msra.mxu0 %v1578
    %3260 = vmatpush.bf16.msra.mxu0 %v1575
    %3261 = vmatmul.bf16.gmra.mxu0 %v3220
    %v3262 = vpop.f32.mrf.mxu0
    %v3263 = vadd.f32 0.0, %v3262
    %v3264 = vpop.f32.mrf.mxu0
    %v3265 = vadd.f32 0.0, %v3264
    %3266 = vmatmul.bf16.gmra.mxu0 %v3221
    %v3267 = vpop.f32.mrf.mxu0
    %v3268 = vadd.f32 0.0, %v3267
    %v3269 = vpop.f32.mrf.mxu0
    %v3270 = vadd.f32 0.0, %v3269
    %3271 = vmatmul.bf16.gmra.mxu0 %v3222
    %v3272 = vpop.f32.mrf.mxu0
    %v3273 = vadd.f32 0.0, %v3272
    %v3274 = vpop.f32.mrf.mxu0
    %v3275 = vadd.f32 0.0, %v3274
    %3276 = vmatmul.bf16.gmra.mxu0 %v3223
    %v3277 = vpop.f32.mrf.mxu0
    %v3278 = vadd.f32 0.0, %v3277
    %v3279 = vpop.f32.mrf.mxu0
    %v3280 = vadd.f32 0.0, %v3279
    %3281 = vdwg.mxu0
    %3282 = vmatpush.bf16.msra.mxu0 %v1597
    %3283 = vmatpush.bf16.msra.mxu0 %v1594
    %3284 = vmatpush.bf16.msra.mxu0 %v1591
    %3285 = vmatpush.bf16.msra.mxu0 %v1588
    %3286 = vmatpush.bf16.msra.mxu0 %v1585
    %3287 = vmatpush.bf16.msra.mxu0 %v1582
    %3288 = vmatpush.bf16.msra.mxu0 %v1579
    %3289 = vmatpush.bf16.msra.mxu0 %v1576
    %3290 = vmatmul.bf16.gmra.mxu0 %v3220
    %v3291 = vpop.f32.mrf.mxu0
    %v3292 = vadd.f32 0.0, %v3291
    %v3293 = vpop.f32.mrf.mxu0
    %v3294 = vadd.f32 0.0, %v3293
    %3295 = vmatmul.bf16.gmra.mxu0 %v3221
    %v3296 = vpop.f32.mrf.mxu0
    %v3297 = vadd.f32 0.0, %v3296
    %v3298 = vpop.f32.mrf.mxu0
    %v3299 = vadd.f32 0.0, %v3298
    %3300 = vmatmul.bf16.gmra.mxu0 %v3222
    %v3301 = vpop.f32.mrf.mxu0
    %v3302 = vadd.f32 0.0, %v3301
    %v3303 = vpop.f32.mrf.mxu0
    %v3304 = vadd.f32 0.0, %v3303
    %3305 = vmatmul.bf16.gmra.mxu0 %v3223
    %v3306 = vpop.f32.mrf.mxu0
    %v3307 = vadd.f32 0.0, %v3306
    %v3308 = vpop.f32.mrf.mxu0
    %v3309 = vadd.f32 0.0, %v3308
    %3310 = vdwg.mxu0
    %v3311 = vadd.f32 %v3196, %v3234
    %v3312 = vadd.f32 %v3199, %v3236
    %v3313 = vadd.f32 %v3202, %v3239
    %v3314 = vadd.f32 %v3205, %v3241
    %v3315 = vadd.f32 %v3208, %v3244
    %v3316 = vadd.f32 %v3211, %v3246
    %v3317 = vadd.f32 %v3214, %v3249
    %v3318 = vadd.f32 %v3217, %v3251
    %v3319 = vmul.f32 %v3311, 0.5
    %v3320 = vmul.f32 %v3312, 0.5
    %v3321 = vmul.f32 %v3313, 0.5
    %v3322 = vmul.f32 %v3314, 0.5
    %v3323 = vmul.f32 %v3315, 0.5
    %v3324 = vmul.f32 %v3316, 0.5
    %v3325 = vmul.f32 %v3317, 0.5
    %v3326 = vmul.f32 %v3318, 0.5
    %v3327 = vtanh.pop %v3319
    %v3328 = vtanh.pop %v3320
    %v3329 = vtanh.pop %v3321
    %v3330 = vtanh.pop %v3322
    %v3331 = vtanh.pop %v3323
    %v3332 = vtanh.pop %v3324
    %v3333 = vtanh.pop %v3325
    %v3334 = vtanh.pop %v3326
    %v3335 = vmul.f32 %v3327, 0.5
    %v3336 = vmul.f32 %v3328, 0.5
    %v3337 = vmul.f32 %v3329, 0.5
    %v3338 = vmul.f32 %v3330, 0.5
    %v3339 = vmul.f32 %v3331, 0.5
    %v3340 = vmul.f32 %v3332, 0.5
    %v3341 = vmul.f32 %v3333, 0.5
    %v3342 = vmul.f32 %v3334, 0.5
    %v3343 = vadd.f32 %v3335, 0.5
    %v3344 = vadd.f32 %v3336, 0.5
    %v3345 = vadd.f32 %v3337, 0.5
    %v3346 = vadd.f32 %v3338, 0.5
    %v3347 = vadd.f32 %v3339, 0.5
    %v3348 = vadd.f32 %v3340, 0.5
    %v3349 = vadd.f32 %v3341, 0.5
    %v3350 = vadd.f32 %v3342, 0.5
    %v3351 = vadd.f32 %v3197, %v3263
    %v3352 = vadd.f32 %v3200, %v3265
    %v3353 = vadd.f32 %v3203, %v3268
    %v3354 = vadd.f32 %v3206, %v3270
    %v3355 = vadd.f32 %v3209, %v3273
    %v3356 = vadd.f32 %v3212, %v3275
    %v3357 = vadd.f32 %v3215, %v3278
    %v3358 = vadd.f32 %v3218, %v3280
    %v3359 = vmul.f32 %v3351, 0.5
    %v3360 = vmul.f32 %v3352, 0.5
    %v3361 = vmul.f32 %v3353, 0.5
    %v3362 = vmul.f32 %v3354, 0.5
    %v3363 = vmul.f32 %v3355, 0.5
    %v3364 = vmul.f32 %v3356, 0.5
    %v3365 = vmul.f32 %v3357, 0.5
    %v3366 = vmul.f32 %v3358, 0.5
    %v3367 = vtanh.pop %v3359
    %v3368 = vtanh.pop %v3360
    %v3369 = vtanh.pop %v3361
    %v3370 = vtanh.pop %v3362
    %v3371 = vtanh.pop %v3363
    %v3372 = vtanh.pop %v3364
    %v3373 = vtanh.pop %v3365
    %v3374 = vtanh.pop %v3366
    %v3375 = vmul.f32 %v3367, 0.5
    %v3376 = vmul.f32 %v3368, 0.5
    %v3377 = vmul.f32 %v3369, 0.5
    %v3378 = vmul.f32 %v3370, 0.5
    %v3379 = vmul.f32 %v3371, 0.5
    %v3380 = vmul.f32 %v3372, 0.5
    %v3381 = vmul.f32 %v3373, 0.5
    %v3382 = vmul.f32 %v3374, 0.5
    %v3383 = vadd.f32 %v3375, 0.5
    %v3384 = vadd.f32 %v3376, 0.5
    %v3385 = vadd.f32 %v3377, 0.5
    %v3386 = vadd.f32 %v3378, 0.5
    %v3387 = vadd.f32 %v3379, 0.5
    %v3388 = vadd.f32 %v3380, 0.5
    %v3389 = vadd.f32 %v3381, 0.5
    %v3390 = vadd.f32 %v3382, 0.5
    %v3391 = vadd.f32 %v3292, %v1468
    %v3392 = vadd.f32 %v3294, %v1468
    %v3393 = vadd.f32 %v3297, %v1468
    %v3394 = vadd.f32 %v3299, %v1468
    %v3395 = vadd.f32 %v3302, %v1468
    %v3396 = vadd.f32 %v3304, %v1468
    %v3397 = vadd.f32 %v3307, %v1468
    %v3398 = vadd.f32 %v3309, %v1468
    %v3399 = vmul.f32 %v3343, %v3391
    %v3400 = vmul.f32 %v3344, %v3392
    %v3401 = vmul.f32 %v3345, %v3393
    %v3402 = vmul.f32 %v3346, %v3394
    %v3403 = vmul.f32 %v3347, %v3395
    %v3404 = vmul.f32 %v3348, %v3396
    %v3405 = vmul.f32 %v3349, %v3397
    %v3406 = vmul.f32 %v3350, %v3398
    %v3407 = vadd.f32 %v3198, %v3399
    %v3408 = vadd.f32 %v3201, %v3400
    %v3409 = vadd.f32 %v3204, %v3401
    %v3410 = vadd.f32 %v3207, %v3402
    %v3411 = vadd.f32 %v3210, %v3403
    %v3412 = vadd.f32 %v3213, %v3404
    %v3413 = vadd.f32 %v3216, %v3405
    %v3414 = vadd.f32 %v3219, %v3406
    %v3415 = vtanh.pop %v3407
    %v3416 = vtanh.pop %v3408
    %v3417 = vtanh.pop %v3409
    %v3418 = vtanh.pop %v3410
    %v3419 = vtanh.pop %v3411
    %v3420 = vtanh.pop %v3412
    %v3421 = vtanh.pop %v3413
    %v3422 = vtanh.pop %v3414
    %v3423 = vsub.f32 1.0, %v3383
    %v3424 = vsub.f32 1.0, %v3384
    %v3425 = vsub.f32 1.0, %v3385
    %v3426 = vsub.f32 1.0, %v3386
    %v3427 = vsub.f32 1.0, %v3387
    %v3428 = vsub.f32 1.0, %v3388
    %v3429 = vsub.f32 1.0, %v3389
    %v3430 = vsub.f32 1.0, %v3390
    %v3431 = vmul.f32 %v3423, %v3415
    %v3432 = vmul.f32 %v3424, %v3416
    %v3433 = vmul.f32 %v3425, %v3417
    %v3434 = vmul.f32 %v3426, %v3418
    %v3435 = vmul.f32 %v3427, %v3419
    %v3436 = vmul.f32 %v3428, %v3420
    %v3437 = vmul.f32 %v3429, %v3421
    %v3438 = vmul.f32 %v3430, %v3422
    %v3439 = vmul.f32 %v3383, %v3180
    %v3440 = vmul.f32 %v3384, %v3181
    %v3441 = vmul.f32 %v3385, %v3182
    %v3442 = vmul.f32 %v3386, %v3183
    %v3443 = vmul.f32 %v3387, %v3184
    %v3444 = vmul.f32 %v3388, %v3185
    %v3445 = vmul.f32 %v3389, %v3186
    %v3446 = vmul.f32 %v3390, %v3187
    %v3447 = vadd.f32 %v3431, %v3439
    %v3448 = vadd.f32 %v3432, %v3440
    %v3449 = vadd.f32 %v3433, %v3441
    %v3450 = vadd.f32 %v3434, %v3442
    %v3451 = vadd.f32 %v3435, %v3443
    %v3452 = vadd.f32 %v3436, %v3444
    %v3453 = vadd.f32 %v3437, %v3445
    %v3454 = vadd.f32 %v3438, %v3446
    %3455 = vst [vmem:[#allocation3 + $0x30] sm:$0xff] %v3447
    %3456 = vst [vmem:[#allocation3 + $0x70] sm:$0xff] %v3448
    %3457 = vst [vmem:[#allocation3 + $0xb0] sm:$0xff] %v3449
    %3458 = vst [vmem:[#allocation3 + $0xf0] sm:$0xff] %v3450
    %3459 = vst [vmem:[#allocation3 + $0x130] sm:$0xff] %v3451
    %3460 = vst [vmem:[#allocation3 + $0x170] sm:$0xff] %v3452
    %3461 = vst [vmem:[#allocation3 + $0x1b0] sm:$0xff] %v3453
    %3462 = vst [vmem:[#allocation3 + $0x1f0] sm:$0xff] %v3454
    %v3463 = vld [vmem:[#allocation2 + $0xa8] sm:$0xff]
    %v3464 = vld [vmem:[#allocation2 + $0xb0] sm:$0xff]
    %v3465 = vld [vmem:[#allocation2 + $0xb8] sm:$0xff]
    %v3466 = vld [vmem:[#allocation2 + $0x168] sm:$0xff]
    %v3467 = vld [vmem:[#allocation2 + $0x170] sm:$0xff]
    %v3468 = vld [vmem:[#allocation2 + $0x178] sm:$0xff]
    %v3469 = vld [vmem:[#allocation2 + $0x228] sm:$0xff]
    %v3470 = vld [vmem:[#allocation2 + $0x230] sm:$0xff]
    %v3471 = vld [vmem:[#allocation2 + $0x238] sm:$0xff]
    %v3472 = vld [vmem:[#allocation2 + $0x2e8] sm:$0xff]
    %v3473 = vld [vmem:[#allocation2 + $0x2f0] sm:$0xff]
    %v3474 = vld [vmem:[#allocation2 + $0x2f8] sm:$0xff]
    %v3475 = vld [vmem:[#allocation2 + $0x3a8] sm:$0xff]
    %v3476 = vld [vmem:[#allocation2 + $0x3b0] sm:$0xff]
    %v3477 = vld [vmem:[#allocation2 + $0x3b8] sm:$0xff]
    %v3478 = vld [vmem:[#allocation2 + $0x468] sm:$0xff]
    %v3479 = vld [vmem:[#allocation2 + $0x470] sm:$0xff]
    %v3480 = vld [vmem:[#allocation2 + $0x478] sm:$0xff]
    %v3481 = vld [vmem:[#allocation2 + $0x528] sm:$0xff]
    %v3482 = vld [vmem:[#allocation2 + $0x530] sm:$0xff]
    %v3483 = vld [vmem:[#allocation2 + $0x538] sm:$0xff]
    %v3484 = vld [vmem:[#allocation2 + $0x5e8] sm:$0xff]
    %v3485 = vld [vmem:[#allocation2 + $0x5f0] sm:$0xff]
    %v3486 = vld [vmem:[#allocation2 + $0x5f8] sm:$0xff]
    %v3487 = vpack.c.bf16 %v3448, %v3447
    %v3488 = vpack.c.bf16 %v3450, %v3449
    %v3489 = vpack.c.bf16 %v3452, %v3451
    %v3490 = vpack.c.bf16 %v3454, %v3453
    %3491 = vmatpush.bf16.msra.mxu0 %v1595
    %3492 = vmatpush.bf16.msra.mxu0 %v1592
    %3493 = vmatpush.bf16.msra.mxu0 %v1589
    %3494 = vmatpush.bf16.msra.mxu0 %v1586
    %3495 = vmatpush.bf16.msra.mxu0 %v1583
    %3496 = vmatpush.bf16.msra.mxu0 %v1580
    %3497 = vmatpush.bf16.msra.mxu0 %v1577
    %3498 = vmatpush.bf16.msra.mxu0 %v1574
    %3499 = vmatmul.bf16.gmra.mxu0 %v3487
    %v3500 = vpop.f32.mrf.mxu0
    %v3501 = vadd.f32 0.0, %v3500
    %v3502 = vpop.f32.mrf.mxu0
    %v3503 = vadd.f32 0.0, %v3502
    %3504 = vmatmul.bf16.gmra.mxu0 %v3488
    %v3505 = vpop.f32.mrf.mxu0
    %v3506 = vadd.f32 0.0, %v3505
    %v3507 = vpop.f32.mrf.mxu0
    %v3508 = vadd.f32 0.0, %v3507
    %3509 = vmatmul.bf16.gmra.mxu0 %v3489
    %v3510 = vpop.f32.mrf.mxu0
    %v3511 = vadd.f32 0.0, %v3510
    %v3512 = vpop.f32.mrf.mxu0
    %v3513 = vadd.f32 0.0, %v3512
    %3514 = vmatmul.bf16.gmra.mxu0 %v3490
    %v3515 = vpop.f32.mrf.mxu0
    %v3516 = vadd.f32 0.0, %v3515
    %v3517 = vpop.f32.mrf.mxu0
    %v3518 = vadd.f32 0.0, %v3517
    %3519 = vdwg.mxu0
    %3520 = vmatpush.bf16.msra.mxu0 %v1596
    %3521 = vmatpush.bf16.msra.mxu0 %v1593
    %3522 = vmatpush.bf16.msra.mxu0 %v1590
    %3523 = vmatpush.bf16.msra.mxu0 %v1587
    %3524 = vmatpush.bf16.msra.mxu0 %v1584
    %3525 = vmatpush.bf16.msra.mxu0 %v1581
    %3526 = vmatpush.bf16.msra.mxu0 %v1578
    %3527 = vmatpush.bf16.msra.mxu0 %v1575
    %3528 = vmatmul.bf16.gmra.mxu0 %v3487
    %v3529 = vpop.f32.mrf.mxu0
    %v3530 = vadd.f32 0.0, %v3529
    %v3531 = vpop.f32.mrf.mxu0
    %v3532 = vadd.f32 0.0, %v3531
    %3533 = vmatmul.bf16.gmra.mxu0 %v3488
    %v3534 = vpop.f32.mrf.mxu0
    %v3535 = vadd.f32 0.0, %v3534
    %v3536 = vpop.f32.mrf.mxu0
    %v3537 = vadd.f32 0.0, %v3536
    %3538 = vmatmul.bf16.gmra.mxu0 %v3489
    %v3539 = vpop.f32.mrf.mxu0
    %v3540 = vadd.f32 0.0, %v3539
    %v3541 = vpop.f32.mrf.mxu0
    %v3542 = vadd.f32 0.0, %v3541
    %3543 = vmatmul.bf16.gmra.mxu0 %v3490
    %v3544 = vpop.f32.mrf.mxu0
    %v3545 = vadd.f32 0.0, %v3544
    %v3546 = vpop.f32.mrf.mxu0
    %v3547 = vadd.f32 0.0, %v3546
    %3548 = vdwg.mxu0
    %3549 = vmatpush.bf16.msra.mxu0 %v1597
    %3550 = vmatpush.bf16.msra.mxu0 %v1594
    %3551 = vmatpush.bf16.msra.mxu0 %v1591
    %3552 = vmatpush.bf16.msra.mxu0 %v1588
    %3553 = vmatpush.bf16.msra.mxu0 %v1585
    %3554 = vmatpush.bf16.msra.mxu0 %v1582
    %3555 = vmatpush.bf16.msra.mxu0 %v1579
    %3556 = vmatpush.bf16.msra.mxu0 %v1576
    %3557 = vmatmul.bf16.gmra.mxu0 %v3487
    %v3558 = vpop.f32.mrf.mxu0
    %v3559 = vadd.f32 0.0, %v3558
    %v3560 = vpop.f32.mrf.mxu0
    %v3561 = vadd.f32 0.0, %v3560
    %3562 = vmatmul.bf16.gmra.mxu0 %v3488
    %v3563 = vpop.f32.mrf.mxu0
    %v3564 = vadd.f32 0.0, %v3563
    %v3565 = vpop.f32.mrf.mxu0
    %v3566 = vadd.f32 0.0, %v3565
    %3567 = vmatmul.bf16.gmra.mxu0 %v3489
    %v3568 = vpop.f32.mrf.mxu0
    %v3569 = vadd.f32 0.0, %v3568
    %v3570 = vpop.f32.mrf.mxu0
    %v3571 = vadd.f32 0.0, %v3570
    %3572 = vmatmul.bf16.gmra.mxu0 %v3490
    %v3573 = vpop.f32.mrf.mxu0
    %v3574 = vadd.f32 0.0, %v3573
    %v3575 = vpop.f32.mrf.mxu0
    %v3576 = vadd.f32 0.0, %v3575
    %3577 = vdwg.mxu0
    %v3578 = vadd.f32 %v3463, %v3501
    %v3579 = vadd.f32 %v3466, %v3503
    %v3580 = vadd.f32 %v3469, %v3506
    %v3581 = vadd.f32 %v3472, %v3508
    %v3582 = vadd.f32 %v3475, %v3511
    %v3583 = vadd.f32 %v3478, %v3513
    %v3584 = vadd.f32 %v3481, %v3516
    %v3585 = vadd.f32 %v3484, %v3518
    %v3586 = vmul.f32 %v3578, 0.5
    %v3587 = vmul.f32 %v3579, 0.5
    %v3588 = vmul.f32 %v3580, 0.5
    %v3589 = vmul.f32 %v3581, 0.5
    %v3590 = vmul.f32 %v3582, 0.5
    %v3591 = vmul.f32 %v3583, 0.5
    %v3592 = vmul.f32 %v3584, 0.5
    %v3593 = vmul.f32 %v3585, 0.5
    %v3594 = vtanh.pop %v3586
    %v3595 = vtanh.pop %v3587
    %v3596 = vtanh.pop %v3588
    %v3597 = vtanh.pop %v3589
    %v3598 = vtanh.pop %v3590
    %v3599 = vtanh.pop %v3591
    %v3600 = vtanh.pop %v3592
    %v3601 = vtanh.pop %v3593
    %v3602 = vmul.f32 %v3594, 0.5
    %v3603 = vmul.f32 %v3595, 0.5
    %v3604 = vmul.f32 %v3596, 0.5
    %v3605 = vmul.f32 %v3597, 0.5
    %v3606 = vmul.f32 %v3598, 0.5
    %v3607 = vmul.f32 %v3599, 0.5
    %v3608 = vmul.f32 %v3600, 0.5
    %v3609 = vmul.f32 %v3601, 0.5
    %v3610 = vadd.f32 %v3602, 0.5
    %v3611 = vadd.f32 %v3603, 0.5
    %v3612 = vadd.f32 %v3604, 0.5
    %v3613 = vadd.f32 %v3605, 0.5
    %v3614 = vadd.f32 %v3606, 0.5
    %v3615 = vadd.f32 %v3607, 0.5
    %v3616 = vadd.f32 %v3608, 0.5
    %v3617 = vadd.f32 %v3609, 0.5
    %v3618 = vadd.f32 %v3464, %v3530
    %v3619 = vadd.f32 %v3467, %v3532
    %v3620 = vadd.f32 %v3470, %v3535
    %v3621 = vadd.f32 %v3473, %v3537
    %v3622 = vadd.f32 %v3476, %v3540
    %v3623 = vadd.f32 %v3479, %v3542
    %v3624 = vadd.f32 %v3482, %v3545
    %v3625 = vadd.f32 %v3485, %v3547
    %v3626 = vmul.f32 %v3618, 0.5
    %v3627 = vmul.f32 %v3619, 0.5
    %v3628 = vmul.f32 %v3620, 0.5
    %v3629 = vmul.f32 %v3621, 0.5
    %v3630 = vmul.f32 %v3622, 0.5
    %v3631 = vmul.f32 %v3623, 0.5
    %v3632 = vmul.f32 %v3624, 0.5
    %v3633 = vmul.f32 %v3625, 0.5
    %v3634 = vtanh.pop %v3626
    %v3635 = vtanh.pop %v3627
    %v3636 = vtanh.pop %v3628
    %v3637 = vtanh.pop %v3629
    %v3638 = vtanh.pop %v3630
    %v3639 = vtanh.pop %v3631
    %v3640 = vtanh.pop %v3632
    %v3641 = vtanh.pop %v3633
    %v3642 = vmul.f32 %v3634, 0.5
    %v3643 = vmul.f32 %v3635, 0.5
    %v3644 = vmul.f32 %v3636, 0.5
    %v3645 = vmul.f32 %v3637, 0.5
    %v3646 = vmul.f32 %v3638, 0.5
    %v3647 = vmul.f32 %v3639, 0.5
    %v3648 = vmul.f32 %v3640, 0.5
    %v3649 = vmul.f32 %v3641, 0.5
    %v3650 = vadd.f32 %v3642, 0.5
    %v3651 = vadd.f32 %v3643, 0.5
    %v3652 = vadd.f32 %v3644, 0.5
    %v3653 = vadd.f32 %v3645, 0.5
    %v3654 = vadd.f32 %v3646, 0.5
    %v3655 = vadd.f32 %v3647, 0.5
    %v3656 = vadd.f32 %v3648, 0.5
    %v3657 = vadd.f32 %v3649, 0.5
    %v3658 = vadd.f32 %v3559, %v1468
    %v3659 = vadd.f32 %v3561, %v1468
    %v3660 = vadd.f32 %v3564, %v1468
    %v3661 = vadd.f32 %v3566, %v1468
    %v3662 = vadd.f32 %v3569, %v1468
    %v3663 = vadd.f32 %v3571, %v1468
    %v3664 = vadd.f32 %v3574, %v1468
    %v3665 = vadd.f32 %v3576, %v1468
    %v3666 = vmul.f32 %v3610, %v3658
    %v3667 = vmul.f32 %v3611, %v3659
    %v3668 = vmul.f32 %v3612, %v3660
    %v3669 = vmul.f32 %v3613, %v3661
    %v3670 = vmul.f32 %v3614, %v3662
    %v3671 = vmul.f32 %v3615, %v3663
    %v3672 = vmul.f32 %v3616, %v3664
    %v3673 = vmul.f32 %v3617, %v3665
    %v3674 = vadd.f32 %v3465, %v3666
    %v3675 = vadd.f32 %v3468, %v3667
    %v3676 = vadd.f32 %v3471, %v3668
    %v3677 = vadd.f32 %v3474, %v3669
    %v3678 = vadd.f32 %v3477, %v3670
    %v3679 = vadd.f32 %v3480, %v3671
    %v3680 = vadd.f32 %v3483, %v3672
    %v3681 = vadd.f32 %v3486, %v3673
    %v3682 = vtanh.pop %v3674
    %v3683 = vtanh.pop %v3675
    %v3684 = vtanh.pop %v3676
    %v3685 = vtanh.pop %v3677
    %v3686 = vtanh.pop %v3678
    %v3687 = vtanh.pop %v3679
    %v3688 = vtanh.pop %v3680
    %v3689 = vtanh.pop %v3681
    %v3690 = vsub.f32 1.0, %v3650
    %v3691 = vsub.f32 1.0, %v3651
    %v3692 = vsub.f32 1.0, %v3652
    %v3693 = vsub.f32 1.0, %v3653
    %v3694 = vsub.f32 1.0, %v3654
    %v3695 = vsub.f32 1.0, %v3655
    %v3696 = vsub.f32 1.0, %v3656
    %v3697 = vsub.f32 1.0, %v3657
    %v3698 = vmul.f32 %v3690, %v3682
    %v3699 = vmul.f32 %v3691, %v3683
    %v3700 = vmul.f32 %v3692, %v3684
    %v3701 = vmul.f32 %v3693, %v3685
    %v3702 = vmul.f32 %v3694, %v3686
    %v3703 = vmul.f32 %v3695, %v3687
    %v3704 = vmul.f32 %v3696, %v3688
    %v3705 = vmul.f32 %v3697, %v3689
    %v3706 = vmul.f32 %v3650, %v3447
    %v3707 = vmul.f32 %v3651, %v3448
    %v3708 = vmul.f32 %v3652, %v3449
    %v3709 = vmul.f32 %v3653, %v3450
    %v3710 = vmul.f32 %v3654, %v3451
    %v3711 = vmul.f32 %v3655, %v3452
    %v3712 = vmul.f32 %v3656, %v3453
    %v3713 = vmul.f32 %v3657, %v3454
    %v3714 = vadd.f32 %v3698, %v3706
    %v3715 = vadd.f32 %v3699, %v3707
    %v3716 = vadd.f32 %v3700, %v3708
    %v3717 = vadd.f32 %v3701, %v3709
    %v3718 = vadd.f32 %v3702, %v3710
    %v3719 = vadd.f32 %v3703, %v3711
    %v3720 = vadd.f32 %v3704, %v3712
    %v3721 = vadd.f32 %v3705, %v3713
    %3722 = vst [vmem:[#allocation3 + $0x38] sm:$0xff] %v3714
    %3723 = vst [vmem:[#allocation3 + $0x78] sm:$0xff] %v3715
    %3724 = vst [vmem:[#allocation3 + $0xb8] sm:$0xff] %v3716
    %3725 = vst [vmem:[#allocation3 + $0xf8] sm:$0xff] %v3717
    %3726 = vst [vmem:[#allocation3 + $0x138] sm:$0xff] %v3718
    %3727 = vst [vmem:[#allocation3 + $0x178] sm:$0xff] %v3719
    %3728 = vst [vmem:[#allocation3 + $0x1b8] sm:$0xff] %v3720
    %3729 = vst [vmem:[#allocation3 + $0x1f8] sm:$0xff] %v3721
    %v3730 = vld [vmem:[#allocation3] sm:$0xff]
    %v3731 = vld [vmem:[#allocation3 + $0x8] sm:$0xff]
    %v3732 = vld [vmem:[#allocation3 + $0x10] sm:$0xff]
    %v3733 = vld [vmem:[#allocation3 + $0x18] sm:$0xff]
    %v3734 = vld [vmem:[#allocation3 + $0x20] sm:$0xff]
    %v3735 = vld [vmem:[#allocation3 + $0x28] sm:$0xff]
    %v3736 = vld [vmem:[#allocation3 + $0x30] sm:$0xff]
    %v3737 = vld [vmem:[#allocation3 + $0x38] sm:$0xff]
    %v3738 = vld [vmem:[#allocation3 + $0x40] sm:$0xff]
    %v3739 = vld [vmem:[#allocation3 + $0x48] sm:$0xff]
    %v3740 = vld [vmem:[#allocation3 + $0x50] sm:$0xff]
    %v3741 = vld [vmem:[#allocation3 + $0x58] sm:$0xff]
    %v3742 = vld [vmem:[#allocation3 + $0x60] sm:$0xff]
    %v3743 = vld [vmem:[#allocation3 + $0x68] sm:$0xff]
    %v3744 = vld [vmem:[#allocation3 + $0x70] sm:$0xff]
    %v3745 = vld [vmem:[#allocation3 + $0x78] sm:$0xff]
    %v3746 = vld [vmem:[#allocation3 + $0x80] sm:$0xff]
    %v3747 = vld [vmem:[#allocation3 + $0x88] sm:$0xff]
    %v3748 = vld [vmem:[#allocation3 + $0x90] sm:$0xff]
    %v3749 = vld [vmem:[#allocation3 + $0x98] sm:$0xff]
    %v3750 = vld [vmem:[#allocation3 + $0xa0] sm:$0xff]
    %v3751 = vld [vmem:[#allocation3 + $0xa8] sm:$0xff]
    %v3752 = vld [vmem:[#allocation3 + $0xb0] sm:$0xff]
    %v3753 = vld [vmem:[#allocation3 + $0xb8] sm:$0xff]
    %v3754 = vld [vmem:[#allocation3 + $0xc0] sm:$0xff]
    %v3755 = vld [vmem:[#allocation3 + $0xc8] sm:$0xff]
    %v3756 = vld [vmem:[#allocation3 + $0xd0] sm:$0xff]
    %v3757 = vld [vmem:[#allocation3 + $0xd8] sm:$0xff]
    %v3758 = vld [vmem:[#allocation3 + $0xe0] sm:$0xff]
    %v3759 = vld [vmem:[#allocation3 + $0xe8] sm:$0xff]
    %v3760 = vld [vmem:[#allocation3 + $0xf0] sm:$0xff]
    %v3761 = vld [vmem:[#allocation3 + $0xf8] sm:$0xff]
    %v3762 = vld [vmem:[#allocation3 + $0x100] sm:$0xff]
    %v3763 = vld [vmem:[#allocation3 + $0x108] sm:$0xff]
    %v3764 = vld [vmem:[#allocation3 + $0x110] sm:$0xff]
    %v3765 = vld [vmem:[#allocation3 + $0x118] sm:$0xff]
    %v3766 = vld [vmem:[#allocation3 + $0x120] sm:$0xff]
    %v3767 = vld [vmem:[#allocation3 + $0x128] sm:$0xff]
    %v3768 = vld [vmem:[#allocation3 + $0x130] sm:$0xff]
    %v3769 = vld [vmem:[#allocation3 + $0x138] sm:$0xff]
    %v3770 = vld [vmem:[#allocation3 + $0x140] sm:$0xff]
    %v3771 = vld [vmem:[#allocation3 + $0x148] sm:$0xff]
    %v3772 = vld [vmem:[#allocation3 + $0x150] sm:$0xff]
    %v3773 = vld [vmem:[#allocation3 + $0x158] sm:$0xff]
    %v3774 = vld [vmem:[#allocation3 + $0x160] sm:$0xff]
    %v3775 = vld [vmem:[#allocation3 + $0x168] sm:$0xff]
    %v3776 = vld [vmem:[#allocation3 + $0x170] sm:$0xff]
    %v3777 = vld [vmem:[#allocation3 + $0x178] sm:$0xff]
    %v3778 = vld [vmem:[#allocation3 + $0x180] sm:$0xff]
    %v3779 = vld [vmem:[#allocation3 + $0x188] sm:$0xff]
    %v3780 = vld [vmem:[#allocation3 + $0x190] sm:$0xff]
    %v3781 = vld [vmem:[#allocation3 + $0x198] sm:$0xff]
    %v3782 = vld [vmem:[#allocation3 + $0x1a0] sm:$0xff]
    %v3783 = vld [vmem:[#allocation3 + $0x1a8] sm:$0xff]
    %v3784 = vld [vmem:[#allocation3 + $0x1b0] sm:$0xff]
    %v3785 = vld [vmem:[#allocation3 + $0x1b8] sm:$0xff]
    %v3786 = vld [vmem:[#allocation3 + $0x1c0] sm:$0xff]
    %v3787 = vld [vmem:[#allocation3 + $0x1c8] sm:$0xff]
    %v3788 = vld [vmem:[#allocation3 + $0x1d0] sm:$0xff]
    %v3789 = vld [vmem:[#allocation3 + $0x1d8] sm:$0xff]
    %v3790 = vld [vmem:[#allocation3 + $0x1e0] sm:$0xff]
    %v3791 = vld [vmem:[#allocation3 + $0x1e8] sm:$0xff]
    %v3792 = vld [vmem:[#allocation3 + $0x1f0] sm:$0xff]
    %v3793 = vld [vmem:[#allocation3 + $0x1f8] sm:$0xff]
    %v3794 = vpack.c.bf16 %v3738, %v3730
    %v3795 = vpack.c.bf16 %v3739, %v3731
    %v3796 = vpack.c.bf16 %v3740, %v3732
    %v3797 = vpack.c.bf16 %v3741, %v3733
    %v3798 = vpack.c.bf16 %v3742, %v3734
    %v3799 = vpack.c.bf16 %v3743, %v3735
    %v3800 = vpack.c.bf16 %v3744, %v3736
    %v3801 = vpack.c.bf16 %v3745, %v3737
    %v3802 = vpack.c.bf16 %v3754, %v3746
    %v3803 = vpack.c.bf16 %v3755, %v3747
    %v3804 = vpack.c.bf16 %v3756, %v3748
    %v3805 = vpack.c.bf16 %v3757, %v3749
    %v3806 = vpack.c.bf16 %v3758, %v3750
    %v3807 = vpack.c.bf16 %v3759, %v3751
    %v3808 = vpack.c.bf16 %v3760, %v3752
    %v3809 = vpack.c.bf16 %v3761, %v3753
    %v3810 = vpack.c.bf16 %v3770, %v3762
    %v3811 = vpack.c.bf16 %v3771, %v3763
    %v3812 = vpack.c.bf16 %v3772, %v3764
    %v3813 = vpack.c.bf16 %v3773, %v3765
    %v3814 = vpack.c.bf16 %v3774, %v3766
    %v3815 = vpack.c.bf16 %v3775, %v3767
    %v3816 = vpack.c.bf16 %v3776, %v3768
    %v3817 = vpack.c.bf16 %v3777, %v3769
    %v3818 = vpack.c.bf16 %v3786, %v3778
    %v3819 = vpack.c.bf16 %v3787, %v3779
    %v3820 = vpack.c.bf16 %v3788, %v3780
    %v3821 = vpack.c.bf16 %v3789, %v3781
    %v3822 = vpack.c.bf16 %v3790, %v3782
    %v3823 = vpack.c.bf16 %v3791, %v3783
    %v3824 = vpack.c.bf16 %v3792, %v3784
    %v3825 = vpack.c.bf16 %v3793, %v3785
    %v3826 = vld [vmem:[#allocation9] sm:$0xff]
    %v3827 = vld [vmem:[#allocation9 + $0x8] sm:$0xff]
    %v3828 = vld [vmem:[#allocation9 + $0x10] sm:$0xff]
    %v3829 = vld [vmem:[#allocation9 + $0x18] sm:$0xff]
    %v3830 = vld [vmem:[#allocation9 + $0x20] sm:$0xff]
    %v3831 = vld [vmem:[#allocation9 + $0x28] sm:$0xff]
    %v3832 = vld [vmem:[#allocation9 + $0x30] sm:$0xff]
    %v3833 = vld [vmem:[#allocation9 + $0x38] sm:$0xff]
    %v3834 = vld [vmem:[#allocation9 + $0x40] sm:$0xff]
    %v3835 = vld [vmem:[#allocation9 + $0x48] sm:$0xff]
    %v3836 = vld [vmem:[#allocation9 + $0x50] sm:$0xff]
    %v3837 = vld [vmem:[#allocation9 + $0x58] sm:$0xff]
    %v3838 = vld [vmem:[#allocation9 + $0x60] sm:$0xff]
    %v3839 = vld [vmem:[#allocation9 + $0x68] sm:$0xff]
    %v3840 = vld [vmem:[#allocation9 + $0x70] sm:$0xff]
    %v3841 = vld [vmem:[#allocation9 + $0x78] sm:$0xff]
    %v3842 = vld [vmem:[#allocation9 + $0x80] sm:$0xff]
    %v3843 = vld [vmem:[#allocation9 + $0x88] sm:$0xff]
    %v3844 = vld [vmem:[#allocation9 + $0x90] sm:$0xff]
    %v3845 = vld [vmem:[#allocation9 + $0x98] sm:$0xff]
    %v3846 = vld [vmem:[#allocation9 + $0xa0] sm:$0xff]
    %v3847 = vld [vmem:[#allocation9 + $0xa8] sm:$0xff]
    %v3848 = vld [vmem:[#allocation9 + $0xb0] sm:$0xff]
    %v3849 = vld [vmem:[#allocation9 + $0xb8] sm:$0xff]
    %v3850 = vld [vmem:[#allocation9 + $0xc0] sm:$0xff]
    %v3851 = vld [vmem:[#allocation9 + $0xc8] sm:$0xff]
    %v3852 = vld [vmem:[#allocation9 + $0xd0] sm:$0xff]
    %v3853 = vld [vmem:[#allocation9 + $0xd8] sm:$0xff]
    %v3854 = vld [vmem:[#allocation9 + $0xe0] sm:$0xff]
    %v3855 = vld [vmem:[#allocation9 + $0xe8] sm:$0xff]
    %v3856 = vld [vmem:[#allocation9 + $0xf0] sm:$0xff]
    %v3857 = vld [vmem:[#allocation9 + $0xf8] sm:$0xff]
    %v3858 = vld [vmem:[#allocation9 + $0x100] sm:$0xff]
    %v3859 = vld [vmem:[#allocation9 + $0x108] sm:$0xff]
    %v3860 = vld [vmem:[#allocation9 + $0x110] sm:$0xff]
    %v3861 = vld [vmem:[#allocation9 + $0x118] sm:$0xff]
    %v3862 = vld [vmem:[#allocation9 + $0x120] sm:$0xff]
    %v3863 = vld [vmem:[#allocation9 + $0x128] sm:$0xff]
    %v3864 = vld [vmem:[#allocation9 + $0x130] sm:$0xff]
    %v3865 = vld [vmem:[#allocation9 + $0x138] sm:$0xff]
    %v3866 = vld [vmem:[#allocation9 + $0x140] sm:$0xff]
    %v3867 = vld [vmem:[#allocation9 + $0x148] sm:$0xff]
    %v3868 = vld [vmem:[#allocation9 + $0x150] sm:$0xff]
    %v3869 = vld [vmem:[#allocation9 + $0x158] sm:$0xff]
    %v3870 = vld [vmem:[#allocation9 + $0x160] sm:$0xff]
    %v3871 = vld [vmem:[#allocation9 + $0x168] sm:$0xff]
    %v3872 = vld [vmem:[#allocation9 + $0x170] sm:$0xff]
    %v3873 = vld [vmem:[#allocation9 + $0x178] sm:$0xff]
    %v3874 = vld [vmem:[#allocation9 + $0x180] sm:$0xff]
    %v3875 = vld [vmem:[#allocation9 + $0x188] sm:$0xff]
    %v3876 = vld [vmem:[#allocation9 + $0x190] sm:$0xff]
    %v3877 = vld [vmem:[#allocation9 + $0x198] sm:$0xff]
    %v3878 = vld [vmem:[#allocation9 + $0x1a0] sm:$0xff]
    %v3879 = vld [vmem:[#allocation9 + $0x1a8] sm:$0xff]
    %v3880 = vld [vmem:[#allocation9 + $0x1b0] sm:$0xff]
    %v3881 = vld [vmem:[#allocation9 + $0x1b8] sm:$0xff]
    %v3882 = vld [vmem:[#allocation9 + $0x1c0] sm:$0xff]
    %v3883 = vld [vmem:[#allocation9 + $0x1c8] sm:$0xff]
    %v3884 = vld [vmem:[#allocation9 + $0x1d0] sm:$0xff]
    %v3885 = vld [vmem:[#allocation9 + $0x1d8] sm:$0xff]
    %v3886 = vld [vmem:[#allocation9 + $0x1e0] sm:$0xff]
    %v3887 = vld [vmem:[#allocation9 + $0x1e8] sm:$0xff]
    %v3888 = vld [vmem:[#allocation9 + $0x1f0] sm:$0xff]
    %v3889 = vld [vmem:[#allocation9 + $0x1f8] sm:$0xff]
    %v3890 = vld [vmem:[#allocation9 + $0x200] sm:$0xff]
    %v3891 = vld [vmem:[#allocation9 + $0x208] sm:$0xff]
    %v3892 = vld [vmem:[#allocation9 + $0x210] sm:$0xff]
    %v3893 = vld [vmem:[#allocation9 + $0x218] sm:$0xff]
    %v3894 = vld [vmem:[#allocation9 + $0x220] sm:$0xff]
    %v3895 = vld [vmem:[#allocation9 + $0x228] sm:$0xff]
    %v3896 = vld [vmem:[#allocation9 + $0x230] sm:$0xff]
    %v3897 = vld [vmem:[#allocation9 + $0x238] sm:$0xff]
    %v3898 = vld [vmem:[#allocation9 + $0x240] sm:$0xff]
    %v3899 = vld [vmem:[#allocation9 + $0x248] sm:$0xff]
    %v3900 = vld [vmem:[#allocation9 + $0x250] sm:$0xff]
    %v3901 = vld [vmem:[#allocation9 + $0x258] sm:$0xff]
    %v3902 = vld [vmem:[#allocation9 + $0x260] sm:$0xff]
    %v3903 = vld [vmem:[#allocation9 + $0x268] sm:$0xff]
    %v3904 = vld [vmem:[#allocation9 + $0x270] sm:$0xff]
    %v3905 = vld [vmem:[#allocation9 + $0x278] sm:$0xff]
    %v3906 = vld [vmem:[#allocation9 + $0x280] sm:$0xff]
    %v3907 = vld [vmem:[#allocation9 + $0x288] sm:$0xff]
    %v3908 = vld [vmem:[#allocation9 + $0x290] sm:$0xff]
    %v3909 = vld [vmem:[#allocation9 + $0x298] sm:$0xff]
    %v3910 = vld [vmem:[#allocation9 + $0x2a0] sm:$0xff]
    %v3911 = vld [vmem:[#allocation9 + $0x2a8] sm:$0xff]
    %v3912 = vld [vmem:[#allocation9 + $0x2b0] sm:$0xff]
    %v3913 = vld [vmem:[#allocation9 + $0x2b8] sm:$0xff]
    %v3914 = vld [vmem:[#allocation9 + $0x2c0] sm:$0xff]
    %v3915 = vld [vmem:[#allocation9 + $0x2c8] sm:$0xff]
    %v3916 = vld [vmem:[#allocation9 + $0x2d0] sm:$0xff]
    %v3917 = vld [vmem:[#allocation9 + $0x2d8] sm:$0xff]
    %v3918 = vld [vmem:[#allocation9 + $0x2e0] sm:$0xff]
    %v3919 = vld [vmem:[#allocation9 + $0x2e8] sm:$0xff]
    %v3920 = vld [vmem:[#allocation9 + $0x2f0] sm:$0xff]
    %v3921 = vld [vmem:[#allocation9 + $0x2f8] sm:$0xff]
    %v3922 = vld [vmem:[#allocation9 + $0x300] sm:$0xff]
    %v3923 = vld [vmem:[#allocation9 + $0x308] sm:$0xff]
    %v3924 = vld [vmem:[#allocation9 + $0x310] sm:$0xff]
    %v3925 = vld [vmem:[#allocation9 + $0x318] sm:$0xff]
    %v3926 = vld [vmem:[#allocation9 + $0x320] sm:$0xff]
    %v3927 = vld [vmem:[#allocation9 + $0x328] sm:$0xff]
    %v3928 = vld [vmem:[#allocation9 + $0x330] sm:$0xff]
    %v3929 = vld [vmem:[#allocation9 + $0x338] sm:$0xff]
    %v3930 = vld [vmem:[#allocation9 + $0x340] sm:$0xff]
    %v3931 = vld [vmem:[#allocation9 + $0x348] sm:$0xff]
    %v3932 = vld [vmem:[#allocation9 + $0x350] sm:$0xff]
    %v3933 = vld [vmem:[#allocation9 + $0x358] sm:$0xff]
    %v3934 = vld [vmem:[#allocation9 + $0x360] sm:$0xff]
    %v3935 = vld [vmem:[#allocation9 + $0x368] sm:$0xff]
    %v3936 = vld [vmem:[#allocation9 + $0x370] sm:$0xff]
    %v3937 = vld [vmem:[#allocation9 + $0x378] sm:$0xff]
    %v3938 = vld [vmem:[#allocation9 + $0x380] sm:$0xff]
    %v3939 = vld [vmem:[#allocation9 + $0x388] sm:$0xff]
    %v3940 = vld [vmem:[#allocation9 + $0x390] sm:$0xff]
    %v3941 = vld [vmem:[#allocation9 + $0x398] sm:$0xff]
    %v3942 = vld [vmem:[#allocation9 + $0x3a0] sm:$0xff]
    %v3943 = vld [vmem:[#allocation9 + $0x3a8] sm:$0xff]
    %v3944 = vld [vmem:[#allocation9 + $0x3b0] sm:$0xff]
    %v3945 = vld [vmem:[#allocation9 + $0x3b8] sm:$0xff]
    %v3946 = vld [vmem:[#allocation9 + $0x3c0] sm:$0xff]
    %v3947 = vld [vmem:[#allocation9 + $0x3c8] sm:$0xff]
    %v3948 = vld [vmem:[#allocation9 + $0x3d0] sm:$0xff]
    %v3949 = vld [vmem:[#allocation9 + $0x3d8] sm:$0xff]
    %v3950 = vld [vmem:[#allocation9 + $0x3e0] sm:$0xff]
    %v3951 = vld [vmem:[#allocation9 + $0x3e8] sm:$0xff]
    %v3952 = vld [vmem:[#allocation9 + $0x3f0] sm:$0xff]
    %v3953 = vld [vmem:[#allocation9 + $0x3f8] sm:$0xff]
    %v3954 = vld [vmem:[%s6] sm:$0x3]
    %v3956 = vperm.slane %v3954, 0
    %v3957 = vperm.slane %v3954, 1
    %v4088 = vunpack.c.l.b16 %v3826
    %v4089 = vunpack.c.h.b16 %v3826
    %v4090 = vunpack.c.l.b16 %v3827
    %v4091 = vunpack.c.h.b16 %v3827
    %v4092 = vunpack.c.l.b16 %v3828
    %v4093 = vunpack.c.h.b16 %v3828
    %v4094 = vunpack.c.l.b16 %v3829
    %v4095 = vunpack.c.h.b16 %v3829
    %v4096 = vunpack.c.l.b16 %v3830
    %v4097 = vunpack.c.h.b16 %v3830
    %v4098 = vunpack.c.l.b16 %v3831
    %v4099 = vunpack.c.h.b16 %v3831
    %v4100 = vunpack.c.l.b16 %v3832
    %v4101 = vunpack.c.h.b16 %v3832
    %v4102 = vunpack.c.l.b16 %v3833
    %v4103 = vunpack.c.h.b16 %v3833
    %v4104 = vunpack.c.l.b16 %v3834
    %v4105 = vunpack.c.h.b16 %v3834
    %v4106 = vunpack.c.l.b16 %v3835
    %v4107 = vunpack.c.h.b16 %v3835
    %v4108 = vunpack.c.l.b16 %v3836
    %v4109 = vunpack.c.h.b16 %v3836
    %v4110 = vunpack.c.l.b16 %v3837
    %v4111 = vunpack.c.h.b16 %v3837
    %v4112 = vunpack.c.l.b16 %v3838
    %v4113 = vunpack.c.h.b16 %v3838
    %v4114 = vunpack.c.l.b16 %v3839
    %v4115 = vunpack.c.h.b16 %v3839
    %v4116 = vunpack.c.l.b16 %v3840
    %v4117 = vunpack.c.h.b16 %v3840
    %v4118 = vunpack.c.l.b16 %v3841
    %v4119 = vunpack.c.h.b16 %v3841
    %v4120 = vunpack.c.l.b16 %v3842
    %v4121 = vunpack.c.h.b16 %v3842
    %v4122 = vunpack.c.l.b16 %v3843
    %v4123 = vunpack.c.h.b16 %v3843
    %v4124 = vunpack.c.l.b16 %v3844
    %v4125 = vunpack.c.h.b16 %v3844
    %v4126 = vunpack.c.l.b16 %v3845
    %v4127 = vunpack.c.h.b16 %v3845
    %v4128 = vunpack.c.l.b16 %v3846
    %v4129 = vunpack.c.h.b16 %v3846
    %v4130 = vunpack.c.l.b16 %v3847
    %v4131 = vunpack.c.h.b16 %v3847
    %v4132 = vunpack.c.l.b16 %v3848
    %v4133 = vunpack.c.h.b16 %v3848
    %v4134 = vunpack.c.l.b16 %v3849
    %v4135 = vunpack.c.h.b16 %v3849
    %v4136 = vunpack.c.l.b16 %v3850
    %v4137 = vunpack.c.h.b16 %v3850
    %v4138 = vunpack.c.l.b16 %v3851
    %v4139 = vunpack.c.h.b16 %v3851
    %v4140 = vunpack.c.l.b16 %v3852
    %v4141 = vunpack.c.h.b16 %v3852
    %v4142 = vunpack.c.l.b16 %v3853
    %v4143 = vunpack.c.h.b16 %v3853
    %v4144 = vunpack.c.l.b16 %v3854
    %v4145 = vunpack.c.h.b16 %v3854
    %v4146 = vunpack.c.l.b16 %v3855
    %v4147 = vunpack.c.h.b16 %v3855
    %v4148 = vunpack.c.l.b16 %v3856
    %v4149 = vunpack.c.h.b16 %v3856
    %v4150 = vunpack.c.l.b16 %v3857
    %v4151 = vunpack.c.h.b16 %v3857
    %v4152 = vunpack.c.l.b16 %v3858
    %v4153 = vunpack.c.h.b16 %v3858
    %v4154 = vunpack.c.l.b16 %v3859
    %v4155 = vunpack.c.h.b16 %v3859
    %v4156 = vunpack.c.l.b16 %v3860
    %v4157 = vunpack.c.h.b16 %v3860
    %v4158 = vunpack.c.l.b16 %v3861
    %v4159 = vunpack.c.h.b16 %v3861
    %v4160 = vunpack.c.l.b16 %v3862
    %v4161 = vunpack.c.h.b16 %v3862
    %v4162 = vunpack.c.l.b16 %v3863
    %v4163 = vunpack.c.h.b16 %v3863
    %v4164 = vunpack.c.l.b16 %v3864
    %v4165 = vunpack.c.h.b16 %v3864
    %v4166 = vunpack.c.l.b16 %v3865
    %v4167 = vunpack.c.h.b16 %v3865
    %v4168 = vunpack.c.l.b16 %v3866
    %v4169 = vunpack.c.h.b16 %v3866
    %v4170 = vunpack.c.l.b16 %v3867
    %v4171 = vunpack.c.h.b16 %v3867
    %v4172 = vunpack.c.l.b16 %v3868
    %v4173 = vunpack.c.h.b16 %v3868
    %v4174 = vunpack.c.l.b16 %v3869
    %v4175 = vunpack.c.h.b16 %v3869
    %v4176 = vunpack.c.l.b16 %v3870
    %v4177 = vunpack.c.h.b16 %v3870
    %v4178 = vunpack.c.l.b16 %v3871
    %v4179 = vunpack.c.h.b16 %v3871
    %v4180 = vunpack.c.l.b16 %v3872
    %v4181 = vunpack.c.h.b16 %v3872
    %v4182 = vunpack.c.l.b16 %v3873
    %v4183 = vunpack.c.h.b16 %v3873
    %v4184 = vunpack.c.l.b16 %v3874
    %v4185 = vunpack.c.h.b16 %v3874
    %v4186 = vunpack.c.l.b16 %v3875
    %v4187 = vunpack.c.h.b16 %v3875
    %v4188 = vunpack.c.l.b16 %v3876
    %v4189 = vunpack.c.h.b16 %v3876
    %v4190 = vunpack.c.l.b16 %v3877
    %v4191 = vunpack.c.h.b16 %v3877
    %v4192 = vunpack.c.l.b16 %v3878
    %v4193 = vunpack.c.h.b16 %v3878
    %v4194 = vunpack.c.l.b16 %v3879
    %v4195 = vunpack.c.h.b16 %v3879
    %v4196 = vunpack.c.l.b16 %v3880
    %v4197 = vunpack.c.h.b16 %v3880
    %v4198 = vunpack.c.l.b16 %v3881
    %v4199 = vunpack.c.h.b16 %v3881
    %v4200 = vunpack.c.l.b16 %v3882
    %v4201 = vunpack.c.h.b16 %v3882
    %v4202 = vunpack.c.l.b16 %v3883
    %v4203 = vunpack.c.h.b16 %v3883
    %v4204 = vunpack.c.l.b16 %v3884
    %v4205 = vunpack.c.h.b16 %v3884
    %v4206 = vunpack.c.l.b16 %v3885
    %v4207 = vunpack.c.h.b16 %v3885
    %v4208 = vunpack.c.l.b16 %v3886
    %v4209 = vunpack.c.h.b16 %v3886
    %v4210 = vunpack.c.l.b16 %v3887
    %v4211 = vunpack.c.h.b16 %v3887
    %v4212 = vunpack.c.l.b16 %v3888
    %v4213 = vunpack.c.h.b16 %v3888
    %v4214 = vunpack.c.l.b16 %v3889
    %v4215 = vunpack.c.h.b16 %v3889
    %v4216 = vunpack.c.l.b16 %v3890
    %v4217 = vunpack.c.h.b16 %v3890
    %v4218 = vunpack.c.l.b16 %v3891
    %v4219 = vunpack.c.h.b16 %v3891
    %v4220 = vunpack.c.l.b16 %v3892
    %v4221 = vunpack.c.h.b16 %v3892
    %v4222 = vunpack.c.l.b16 %v3893
    %v4223 = vunpack.c.h.b16 %v3893
    %v4224 = vunpack.c.l.b16 %v3894
    %v4225 = vunpack.c.h.b16 %v3894
    %v4226 = vunpack.c.l.b16 %v3895
    %v4227 = vunpack.c.h.b16 %v3895
    %v4228 = vunpack.c.l.b16 %v3896
    %v4229 = vunpack.c.h.b16 %v3896
    %v4230 = vunpack.c.l.b16 %v3897
    %v4231 = vunpack.c.h.b16 %v3897
    %v4232 = vunpack.c.l.b16 %v3898
    %v4233 = vunpack.c.h.b16 %v3898
    %v4234 = vunpack.c.l.b16 %v3899
    %v4235 = vunpack.c.h.b16 %v3899
    %v4236 = vunpack.c.l.b16 %v3900
    %v4237 = vunpack.c.h.b16 %v3900
    %v4238 = vunpack.c.l.b16 %v3901
    %v4239 = vunpack.c.h.b16 %v3901
    %v4240 = vunpack.c.l.b16 %v3902
    %v4241 = vunpack.c.h.b16 %v3902
    %v4242 = vunpack.c.l.b16 %v3903
    %v4243 = vunpack.c.h.b16 %v3903
    %v4244 = vunpack.c.l.b16 %v3904
    %v4245 = vunpack.c.h.b16 %v3904
    %v4246 = vunpack.c.l.b16 %v3905
    %v4247 = vunpack.c.h.b16 %v3905
    %v4248 = vunpack.c.l.b16 %v3906
    %v4249 = vunpack.c.h.b16 %v3906
    %v4250 = vunpack.c.l.b16 %v3907
    %v4251 = vunpack.c.h.b16 %v3907
    %v4252 = vunpack.c.l.b16 %v3908
    %v4253 = vunpack.c.h.b16 %v3908
    %v4254 = vunpack.c.l.b16 %v3909
    %v4255 = vunpack.c.h.b16 %v3909
    %v4256 = vunpack.c.l.b16 %v3910
    %v4257 = vunpack.c.h.b16 %v3910
    %v4258 = vunpack.c.l.b16 %v3911
    %v4259 = vunpack.c.h.b16 %v3911
    %v4260 = vunpack.c.l.b16 %v3912
    %v4261 = vunpack.c.h.b16 %v3912
    %v4262 = vunpack.c.l.b16 %v3913
    %v4263 = vunpack.c.h.b16 %v3913
    %v4264 = vunpack.c.l.b16 %v3914
    %v4265 = vunpack.c.h.b16 %v3914
    %v4266 = vunpack.c.l.b16 %v3915
    %v4267 = vunpack.c.h.b16 %v3915
    %v4268 = vunpack.c.l.b16 %v3916
    %v4269 = vunpack.c.h.b16 %v3916
    %v4270 = vunpack.c.l.b16 %v3917
    %v4271 = vunpack.c.h.b16 %v3917
    %v4272 = vunpack.c.l.b16 %v3918
    %v4273 = vunpack.c.h.b16 %v3918
    %v4274 = vunpack.c.l.b16 %v3919
    %v4275 = vunpack.c.h.b16 %v3919
    %v4276 = vunpack.c.l.b16 %v3920
    %v4277 = vunpack.c.h.b16 %v3920
    %v4278 = vunpack.c.l.b16 %v3921
    %v4279 = vunpack.c.h.b16 %v3921
    %v4280 = vunpack.c.l.b16 %v3922
    %v4281 = vunpack.c.h.b16 %v3922
    %v4282 = vunpack.c.l.b16 %v3923
    %v4283 = vunpack.c.h.b16 %v3923
    %v4284 = vunpack.c.l.b16 %v3924
    %v4285 = vunpack.c.h.b16 %v3924
    %v4286 = vunpack.c.l.b16 %v3925
    %v4287 = vunpack.c.h.b16 %v3925
    %v4288 = vunpack.c.l.b16 %v3926
    %v4289 = vunpack.c.h.b16 %v3926
    %v4290 = vunpack.c.l.b16 %v3927
    %v4291 = vunpack.c.h.b16 %v3927
    %v4292 = vunpack.c.l.b16 %v3928
    %v4293 = vunpack.c.h.b16 %v3928
    %v4294 = vunpack.c.l.b16 %v3929
    %v4295 = vunpack.c.h.b16 %v3929
    %v4296 = vunpack.c.l.b16 %v3930
    %v4297 = vunpack.c.h.b16 %v3930
    %v4298 = vunpack.c.l.b16 %v3931
    %v4299 = vunpack.c.h.b16 %v3931
    %v4300 = vunpack.c.l.b16 %v3932
    %v4301 = vunpack.c.h.b16 %v3932
    %v4302 = vunpack.c.l.b16 %v3933
    %v4303 = vunpack.c.h.b16 %v3933
    %v4304 = vunpack.c.l.b16 %v3934
    %v4305 = vunpack.c.h.b16 %v3934
    %v4306 = vunpack.c.l.b16 %v3935
    %v4307 = vunpack.c.h.b16 %v3935
    %v4308 = vunpack.c.l.b16 %v3936
    %v4309 = vunpack.c.h.b16 %v3936
    %v4310 = vunpack.c.l.b16 %v3937
    %v4311 = vunpack.c.h.b16 %v3937
    %v4312 = vunpack.c.l.b16 %v3938
    %v4313 = vunpack.c.h.b16 %v3938
    %v4314 = vunpack.c.l.b16 %v3939
    %v4315 = vunpack.c.h.b16 %v3939
    %v4316 = vunpack.c.l.b16 %v3940
    %v4317 = vunpack.c.h.b16 %v3940
    %v4318 = vunpack.c.l.b16 %v3941
    %v4319 = vunpack.c.h.b16 %v3941
    %v4320 = vunpack.c.l.b16 %v3942
    %v4321 = vunpack.c.h.b16 %v3942
    %v4322 = vunpack.c.l.b16 %v3943
    %v4323 = vunpack.c.h.b16 %v3943
    %v4324 = vunpack.c.l.b16 %v3944
    %v4325 = vunpack.c.h.b16 %v3944
    %v4326 = vunpack.c.l.b16 %v3945
    %v4327 = vunpack.c.h.b16 %v3945
    %v4328 = vunpack.c.l.b16 %v3946
    %v4329 = vunpack.c.h.b16 %v3946
    %v4330 = vunpack.c.l.b16 %v3947
    %v4331 = vunpack.c.h.b16 %v3947
    %v4332 = vunpack.c.l.b16 %v3948
    %v4333 = vunpack.c.h.b16 %v3948
    %v4334 = vunpack.c.l.b16 %v3949
    %v4335 = vunpack.c.h.b16 %v3949
    %v4336 = vunpack.c.l.b16 %v3950
    %v4337 = vunpack.c.h.b16 %v3950
    %v4338 = vunpack.c.l.b16 %v3951
    %v4339 = vunpack.c.h.b16 %v3951
    %v4340 = vunpack.c.l.b16 %v3952
    %v4341 = vunpack.c.h.b16 %v3952
    %v4342 = vunpack.c.l.b16 %v3953
    %v4343 = vunpack.c.h.b16 %v3953
    %v4344 = vpack.c.b16 %v4090, %v4088
    %v4345 = vpack.c.b16 %v4091, %v4089
    %v4346 = vpack.c.b16 %v4094, %v4092
    %v4347 = vpack.c.b16 %v4095, %v4093
    %v4348 = vpack.c.b16 %v4098, %v4096
    %v4349 = vpack.c.b16 %v4099, %v4097
    %v4350 = vpack.c.b16 %v4102, %v4100
    %v4351 = vpack.c.b16 %v4103, %v4101
    %v4352 = vpack.c.b16 %v4106, %v4104
    %v4353 = vpack.c.b16 %v4107, %v4105
    %v4354 = vpack.c.b16 %v4110, %v4108
    %v4355 = vpack.c.b16 %v4111, %v4109
    %v4356 = vpack.c.b16 %v4114, %v4112
    %v4357 = vpack.c.b16 %v4115, %v4113
    %v4358 = vpack.c.b16 %v4118, %v4116
    %v4359 = vpack.c.b16 %v4119, %v4117
    %v4360 = vpack.c.b16 %v4122, %v4120
    %v4361 = vpack.c.b16 %v4123, %v4121
    %v4362 = vpack.c.b16 %v4126, %v4124
    %v4363 = vpack.c.b16 %v4127, %v4125
    %v4364 = vpack.c.b16 %v4130, %v4128
    %v4365 = vpack.c.b16 %v4131, %v4129
    %v4366 = vpack.c.b16 %v4134, %v4132
    %v4367 = vpack.c.b16 %v4135, %v4133
    %v4368 = vpack.c.b16 %v4138, %v4136
    %v4369 = vpack.c.b16 %v4139, %v4137
    %v4370 = vpack.c.b16 %v4142, %v4140
    %v4371 = vpack.c.b16 %v4143, %v4141
    %v4372 = vpack.c.b16 %v4146, %v4144
    %v4373 = vpack.c.b16 %v4147, %v4145
    %v4374 = vpack.c.b16 %v4150, %v4148
    %v4375 = vpack.c.b16 %v4151, %v4149
    %v4376 = vpack.c.b16 %v4154, %v4152
    %v4377 = vpack.c.b16 %v4155, %v4153
    %v4378 = vpack.c.b16 %v4158, %v4156
    %v4379 = vpack.c.b16 %v4159, %v4157
    %v4380 = vpack.c.b16 %v4162, %v4160
    %v4381 = vpack.c.b16 %v4163, %v4161
    %v4382 = vpack.c.b16 %v4166, %v4164
    %v4383 = vpack.c.b16 %v4167, %v4165
    %v4384 = vpack.c.b16 %v4170, %v4168
    %v4385 = vpack.c.b16 %v4171, %v4169
    %v4386 = vpack.c.b16 %v4174, %v4172
    %v4387 = vpack.c.b16 %v4175, %v4173
    %v4388 = vpack.c.b16 %v4178, %v4176
    %v4389 = vpack.c.b16 %v4179, %v4177
    %v4390 = vpack.c.b16 %v4182, %v4180
    %v4391 = vpack.c.b16 %v4183, %v4181
    %v4392 = vpack.c.b16 %v4186, %v4184
    %v4393 = vpack.c.b16 %v4187, %v4185
    %v4394 = vpack.c.b16 %v4190, %v4188
    %v4395 = vpack.c.b16 %v4191, %v4189
    %v4396 = vpack.c.b16 %v4194, %v4192
    %v4397 = vpack.c.b16 %v4195, %v4193
    %v4398 = vpack.c.b16 %v4198, %v4196
    %v4399 = vpack.c.b16 %v4199, %v4197
    %v4400 = vpack.c.b16 %v4202, %v4200
    %v4401 = vpack.c.b16 %v4203, %v4201
    %v4402 = vpack.c.b16 %v4206, %v4204
    %v4403 = vpack.c.b16 %v4207, %v4205
    %v4404 = vpack.c.b16 %v4210, %v4208
    %v4405 = vpack.c.b16 %v4211, %v4209
    %v4406 = vpack.c.b16 %v4214, %v4212
    %v4407 = vpack.c.b16 %v4215, %v4213
    %v4408 = vpack.c.b16 %v4218, %v4216
    %v4409 = vpack.c.b16 %v4219, %v4217
    %v4410 = vpack.c.b16 %v4222, %v4220
    %v4411 = vpack.c.b16 %v4223, %v4221
    %v4412 = vpack.c.b16 %v4226, %v4224
    %v4413 = vpack.c.b16 %v4227, %v4225
    %v4414 = vpack.c.b16 %v4230, %v4228
    %v4415 = vpack.c.b16 %v4231, %v4229
    %v4416 = vpack.c.b16 %v4234, %v4232
    %v4417 = vpack.c.b16 %v4235, %v4233
    %v4418 = vpack.c.b16 %v4238, %v4236
    %v4419 = vpack.c.b16 %v4239, %v4237
    %v4420 = vpack.c.b16 %v4242, %v4240
    %v4421 = vpack.c.b16 %v4243, %v4241
    %v4422 = vpack.c.b16 %v4246, %v4244
    %v4423 = vpack.c.b16 %v4247, %v4245
    %v4424 = vpack.c.b16 %v4250, %v4248
    %v4425 = vpack.c.b16 %v4251, %v4249
    %v4426 = vpack.c.b16 %v4254, %v4252
    %v4427 = vpack.c.b16 %v4255, %v4253
    %v4428 = vpack.c.b16 %v4258, %v4256
    %v4429 = vpack.c.b16 %v4259, %v4257
    %v4430 = vpack.c.b16 %v4262, %v4260
    %v4431 = vpack.c.b16 %v4263, %v4261
    %v4432 = vpack.c.b16 %v4266, %v4264
    %v4433 = vpack.c.b16 %v4267, %v4265
    %v4434 = vpack.c.b16 %v4270, %v4268
    %v4435 = vpack.c.b16 %v4271, %v4269
    %v4436 = vpack.c.b16 %v4274, %v4272
    %v4437 = vpack.c.b16 %v4275, %v4273
    %v4438 = vpack.c.b16 %v4278, %v4276
    %v4439 = vpack.c.b16 %v4279, %v4277
    %v4440 = vpack.c.b16 %v4282, %v4280
    %v4441 = vpack.c.b16 %v4283, %v4281
    %v4442 = vpack.c.b16 %v4286, %v4284
    %v4443 = vpack.c.b16 %v4287, %v4285
    %v4444 = vpack.c.b16 %v4290, %v4288
    %v4445 = vpack.c.b16 %v4291, %v4289
    %v4446 = vpack.c.b16 %v4294, %v4292
    %v4447 = vpack.c.b16 %v4295, %v4293
    %v4448 = vpack.c.b16 %v4298, %v4296
    %v4449 = vpack.c.b16 %v4299, %v4297
    %v4450 = vpack.c.b16 %v4302, %v4300
    %v4451 = vpack.c.b16 %v4303, %v4301
    %v4452 = vpack.c.b16 %v4306, %v4304
    %v4453 = vpack.c.b16 %v4307, %v4305
    %v4454 = vpack.c.b16 %v4310, %v4308
    %v4455 = vpack.c.b16 %v4311, %v4309
    %v4456 = vpack.c.b16 %v4314, %v4312
    %v4457 = vpack.c.b16 %v4315, %v4313
    %v4458 = vpack.c.b16 %v4318, %v4316
    %v4459 = vpack.c.b16 %v4319, %v4317
    %v4460 = vpack.c.b16 %v4322, %v4320
    %v4461 = vpack.c.b16 %v4323, %v4321
    %v4462 = vpack.c.b16 %v4326, %v4324
    %v4463 = vpack.c.b16 %v4327, %v4325
    %v4464 = vpack.c.b16 %v4330, %v4328
    %v4465 = vpack.c.b16 %v4331, %v4329
    %v4466 = vpack.c.b16 %v4334, %v4332
    %v4467 = vpack.c.b16 %v4335, %v4333
    %v4468 = vpack.c.b16 %v4338, %v4336
    %v4469 = vpack.c.b16 %v4339, %v4337
    %v4470 = vpack.c.b16 %v4342, %v4340
    %v4471 = vpack.c.b16 %v4343, %v4341
    %4600 = vmatpush.bf16.msra.mxu0 %v4358
    %4601 = vmatpush.bf16.msra.mxu0 %v4356
    %4602 = vmatpush.bf16.msra.mxu0 %v4354
    %4603 = vmatpush.bf16.msra.mxu0 %v4352
    %4604 = vmatpush.bf16.msra.mxu0 %v4350
    %4605 = vmatpush.bf16.msra.mxu0 %v4348
    %4606 = vmatpush.bf16.msra.mxu0 %v4346
    %4607 = vmatpush.bf16.msra.mxu0 %v4344
    %4608 = vmatmul.bf16.gmra.mxu0 %v3794
    %v4609 = vpop.f32.mrf.mxu0
    %v4610 = vadd.f32 %v3956, %v4609
    %v4611 = vpop.f32.mrf.mxu0
    %v4612 = vadd.f32 %v3956, %v4611
    %4613 = vmatmul.bf16.gmra.mxu0 %v3802
    %v4614 = vpop.f32.mrf.mxu0
    %v4615 = vadd.f32 %v3956, %v4614
    %v4616 = vpop.f32.mrf.mxu0
    %v4617 = vadd.f32 %v3956, %v4616
    %4618 = vmatmul.bf16.gmra.mxu0 %v3810
    %v4619 = vpop.f32.mrf.mxu0
    %v4620 = vadd.f32 %v3956, %v4619
    %v4621 = vpop.f32.mrf.mxu0
    %v4622 = vadd.f32 %v3956, %v4621
    %4623 = vmatmul.bf16.gmra.mxu0 %v3818
    %v4624 = vpop.f32.mrf.mxu0
    %v4625 = vadd.f32 %v3956, %v4624
    %v4626 = vpop.f32.mrf.mxu0
    %v4627 = vadd.f32 %v3956, %v4626
    %4628 = vdwg.mxu0
    %4629 = vmatpush.bf16.msra.mxu0 %v4374
    %4630 = vmatpush.bf16.msra.mxu0 %v4372
    %4631 = vmatpush.bf16.msra.mxu0 %v4370
    %4632 = vmatpush.bf16.msra.mxu0 %v4368
    %4633 = vmatpush.bf16.msra.mxu0 %v4366
    %4634 = vmatpush.bf16.msra.mxu0 %v4364
    %4635 = vmatpush.bf16.msra.mxu0 %v4362
    %4636 = vmatpush.bf16.msra.mxu0 %v4360
    %4637 = vmatmul.bf16.gmra.mxu0 %v3795
    %v4638 = vpop.f32.mrf.mxu0
    %v4639 = vadd.f32 %v4610, %v4638
    %v4640 = vpop.f32.mrf.mxu0
    %v4641 = vadd.f32 %v4612, %v4640
    %4642 = vmatmul.bf16.gmra.mxu0 %v3803
    %v4643 = vpop.f32.mrf.mxu0
    %v4644 = vadd.f32 %v4615, %v4643
    %v4645 = vpop.f32.mrf.mxu0
    %v4646 = vadd.f32 %v4617, %v4645
    %4647 = vmatmul.bf16.gmra.mxu0 %v3811
    %v4648 = vpop.f32.mrf.mxu0
    %v4649 = vadd.f32 %v4620, %v4648
    %v4650 = vpop.f32.mrf.mxu0
    %v4651 = vadd.f32 %v4622, %v4650
    %4652 = vmatmul.bf16.gmra.mxu0 %v3819
    %v4653 = vpop.f32.mrf.mxu0
    %v4654 = vadd.f32 %v4625, %v4653
    %v4655 = vpop.f32.mrf.mxu0
    %v4656 = vadd.f32 %v4627, %v4655
    %4657 = vdwg.mxu0
    %4658 = vmatpush.bf16.msra.mxu0 %v4390
    %4659 = vmatpush.bf16.msra.mxu0 %v4388
    %4660 = vmatpush.bf16.msra.mxu0 %v4386
    %4661 = vmatpush.bf16.msra.mxu0 %v4384
    %4662 = vmatpush.bf16.msra.mxu0 %v4382
    %4663 = vmatpush.bf16.msra.mxu0 %v4380
    %4664 = vmatpush.bf16.msra.mxu0 %v4378
    %4665 = vmatpush.bf16.msra.mxu0 %v4376
    %4666 = vmatmul.bf16.gmra.mxu0 %v3796
    %v4667 = vpop.f32.mrf.mxu0
    %v4668 = vadd.f32 %v4639, %v4667
    %v4669 = vpop.f32.mrf.mxu0
    %v4670 = vadd.f32 %v4641, %v4669
    %4671 = vmatmul.bf16.gmra.mxu0 %v3804
    %v4672 = vpop.f32.mrf.mxu0
    %v4673 = vadd.f32 %v4644, %v4672
    %v4674 = vpop.f32.mrf.mxu0
    %v4675 = vadd.f32 %v4646, %v4674
    %4676 = vmatmul.bf16.gmra.mxu0 %v3812
    %v4677 = vpop.f32.mrf.mxu0
    %v4678 = vadd.f32 %v4649, %v4677
    %v4679 = vpop.f32.mrf.mxu0
    %v4680 = vadd.f32 %v4651, %v4679
    %4681 = vmatmul.bf16.gmra.mxu0 %v3820
    %v4682 = vpop.f32.mrf.mxu0
    %v4683 = vadd.f32 %v4654, %v4682
    %v4684 = vpop.f32.mrf.mxu0
    %v4685 = vadd.f32 %v4656, %v4684
    %4686 = vdwg.mxu0
    %4687 = vmatpush.bf16.msra.mxu0 %v4406
    %4688 = vmatpush.bf16.msra.mxu0 %v4404
    %4689 = vmatpush.bf16.msra.mxu0 %v4402
    %4690 = vmatpush.bf16.msra.mxu0 %v4400
    %4691 = vmatpush.bf16.msra.mxu0 %v4398
    %4692 = vmatpush.bf16.msra.mxu0 %v4396
    %4693 = vmatpush.bf16.msra.mxu0 %v4394
    %4694 = vmatpush.bf16.msra.mxu0 %v4392
    %4695 = vmatmul.bf16.gmra.mxu0 %v3797
    %v4696 = vpop.f32.mrf.mxu0
    %v4697 = vadd.f32 %v4668, %v4696
    %v4698 = vpop.f32.mrf.mxu0
    %v4699 = vadd.f32 %v4670, %v4698
    %4700 = vmatmul.bf16.gmra.mxu0 %v3805
    %v4701 = vpop.f32.mrf.mxu0
    %v4702 = vadd.f32 %v4673, %v4701
    %v4703 = vpop.f32.mrf.mxu0
    %v4704 = vadd.f32 %v4675, %v4703
    %4705 = vmatmul.bf16.gmra.mxu0 %v3813
    %v4706 = vpop.f32.mrf.mxu0
    %v4707 = vadd.f32 %v4678, %v4706
    %v4708 = vpop.f32.mrf.mxu0
    %v4709 = vadd.f32 %v4680, %v4708
    %4710 = vmatmul.bf16.gmra.mxu0 %v3821
    %v4711 = vpop.f32.mrf.mxu0
    %v4712 = vadd.f32 %v4683, %v4711
    %v4713 = vpop.f32.mrf.mxu0
    %v4714 = vadd.f32 %v4685, %v4713
    %4715 = vdwg.mxu0
    %4716 = vmatpush.bf16.msra.mxu0 %v4422
    %4717 = vmatpush.bf16.msra.mxu0 %v4420
    %4718 = vmatpush.bf16.msra.mxu0 %v4418
    %4719 = vmatpush.bf16.msra.mxu0 %v4416
    %4720 = vmatpush.bf16.msra.mxu0 %v4414
    %4721 = vmatpush.bf16.msra.mxu0 %v4412
    %4722 = vmatpush.bf16.msra.mxu0 %v4410
    %4723 = vmatpush.bf16.msra.mxu0 %v4408
    %4724 = vmatmul.bf16.gmra.mxu0 %v3798
    %v4725 = vpop.f32.mrf.mxu0
    %v4726 = vadd.f32 %v4697, %v4725
    %v4727 = vpop.f32.mrf.mxu0
    %v4728 = vadd.f32 %v4699, %v4727
    %4729 = vmatmul.bf16.gmra.mxu0 %v3806
    %v4730 = vpop.f32.mrf.mxu0
    %v4731 = vadd.f32 %v4702, %v4730
    %v4732 = vpop.f32.mrf.mxu0
    %v4733 = vadd.f32 %v4704, %v4732
    %4734 = vmatmul.bf16.gmra.mxu0 %v3814
    %v4735 = vpop.f32.mrf.mxu0
    %v4736 = vadd.f32 %v4707, %v4735
    %v4737 = vpop.f32.mrf.mxu0
    %v4738 = vadd.f32 %v4709, %v4737
    %4739 = vmatmul.bf16.gmra.mxu0 %v3822
    %v4740 = vpop.f32.mrf.mxu0
    %v4741 = vadd.f32 %v4712, %v4740
    %v4742 = vpop.f32.mrf.mxu0
    %v4743 = vadd.f32 %v4714, %v4742
    %4744 = vdwg.mxu0
    %4745 = vmatpush.bf16.msra.mxu0 %v4438
    %4746 = vmatpush.bf16.msra.mxu0 %v4436
    %4747 = vmatpush.bf16.msra.mxu0 %v4434
    %4748 = vmatpush.bf16.msra.mxu0 %v4432
    %4749 = vmatpush.bf16.msra.mxu0 %v4430
    %4750 = vmatpush.bf16.msra.mxu0 %v4428
    %4751 = vmatpush.bf16.msra.mxu0 %v4426
    %4752 = vmatpush.bf16.msra.mxu0 %v4424
    %4753 = vmatmul.bf16.gmra.mxu0 %v3799
    %v4754 = vpop.f32.mrf.mxu0
    %v4755 = vadd.f32 %v4726, %v4754
    %v4756 = vpop.f32.mrf.mxu0
    %v4757 = vadd.f32 %v4728, %v4756
    %4758 = vmatmul.bf16.gmra.mxu0 %v3807
    %v4759 = vpop.f32.mrf.mxu0
    %v4760 = vadd.f32 %v4731, %v4759
    %v4761 = vpop.f32.mrf.mxu0
    %v4762 = vadd.f32 %v4733, %v4761
    %4763 = vmatmul.bf16.gmra.mxu0 %v3815
    %v4764 = vpop.f32.mrf.mxu0
    %v4765 = vadd.f32 %v4736, %v4764
    %v4766 = vpop.f32.mrf.mxu0
    %v4767 = vadd.f32 %v4738, %v4766
    %4768 = vmatmul.bf16.gmra.mxu0 %v3823
    %v4769 = vpop.f32.mrf.mxu0
    %v4770 = vadd.f32 %v4741, %v4769
    %v4771 = vpop.f32.mrf.mxu0
    %v4772 = vadd.f32 %v4743, %v4771
    %4773 = vdwg.mxu0
    %4774 = vmatpush.bf16.msra.mxu0 %v4454
    %4775 = vmatpush.bf16.msra.mxu0 %v4452
    %4776 = vmatpush.bf16.msra.mxu0 %v4450
    %4777 = vmatpush.bf16.msra.mxu0 %v4448
    %4778 = vmatpush.bf16.msra.mxu0 %v4446
    %4779 = vmatpush.bf16.msra.mxu0 %v4444
    %4780 = vmatpush.bf16.msra.mxu0 %v4442
    %4781 = vmatpush.bf16.msra.mxu0 %v4440
    %4782 = vmatmul.bf16.gmra.mxu0 %v3800
    %v4783 = vpop.f32.mrf.mxu0
    %v4784 = vadd.f32 %v4755, %v4783
    %v4785 = vpop.f32.mrf.mxu0
    %v4786 = vadd.f32 %v4757, %v4785
    %4787 = vmatmul.bf16.gmra.mxu0 %v3808
    %v4788 = vpop.f32.mrf.mxu0
    %v4789 = vadd.f32 %v4760, %v4788
    %v4790 = vpop.f32.mrf.mxu0
    %v4791 = vadd.f32 %v4762, %v4790
    %4792 = vmatmul.bf16.gmra.mxu0 %v3816
    %v4793 = vpop.f32.mrf.mxu0
    %v4794 = vadd.f32 %v4765, %v4793
    %v4795 = vpop.f32.mrf.mxu0
    %v4796 = vadd.f32 %v4767, %v4795
    %4797 = vmatmul.bf16.gmra.mxu0 %v3824
    %v4798 = vpop.f32.mrf.mxu0
    %v4799 = vadd.f32 %v4770, %v4798
    %v4800 = vpop.f32.mrf.mxu0
    %v4801 = vadd.f32 %v4772, %v4800
    %4802 = vdwg.mxu0
    %4803 = vmatpush.bf16.msra.mxu0 %v4470
    %4804 = vmatpush.bf16.msra.mxu0 %v4468
    %4805 = vmatpush.bf16.msra.mxu0 %v4466
    %4806 = vmatpush.bf16.msra.mxu0 %v4464
    %4807 = vmatpush.bf16.msra.mxu0 %v4462
    %4808 = vmatpush.bf16.msra.mxu0 %v4460
    %4809 = vmatpush.bf16.msra.mxu0 %v4458
    %4810 = vmatpush.bf16.msra.mxu0 %v4456
    %4811 = vmatmul.bf16.gmra.mxu0 %v3801
    %v4812 = vpop.f32.mrf.mxu0
    %v4813 = vadd.f32 %v4784, %v4812
    %v4814 = vpop.f32.mrf.mxu0
    %v4815 = vadd.f32 %v4786, %v4814
    %4816 = vmatmul.bf16.gmra.mxu0 %v3809
    %v4817 = vpop.f32.mrf.mxu0
    %v4818 = vadd.f32 %v4789, %v4817
    %v4819 = vpop.f32.mrf.mxu0
    %v4820 = vadd.f32 %v4791, %v4819
    %4821 = vmatmul.bf16.gmra.mxu0 %v3817
    %v4822 = vpop.f32.mrf.mxu0
    %v4823 = vadd.f32 %v4794, %v4822
    %v4824 = vpop.f32.mrf.mxu0
    %v4825 = vadd.f32 %v4796, %v4824
    %4826 = vmatmul.bf16.gmra.mxu0 %v3825
    %v4827 = vpop.f32.mrf.mxu0
    %v4828 = vadd.f32 %v4799, %v4827
    %v4829 = vpop.f32.mrf.mxu0
    %v4830 = vadd.f32 %v4801, %v4829
    %4831 = vdwg.mxu0
    %4832 = vmatpush.bf16.msra.mxu0 %v4359
    %4833 = vmatpush.bf16.msra.mxu0 %v4357
    %4834 = vmatpush.bf16.msra.mxu0 %v4355
    %4835 = vmatpush.bf16.msra.mxu0 %v4353
    %4836 = vmatpush.bf16.msra.mxu0 %v4351
    %4837 = vmatpush.bf16.msra.mxu0 %v4349
    %4838 = vmatpush.bf16.msra.mxu0 %v4347
    %4839 = vmatpush.bf16.msra.mxu0 %v4345
    %4840 = vmatmul.bf16.gmra.mxu0 %v3794
    %v4841 = vpop.f32.mrf.mxu0
    %v4842 = vadd.f32 %v3957, %v4841
    %v4843 = vpop.f32.mrf.mxu0
    %v4844 = vadd.f32 %v3957, %v4843
    %4845 = vmatmul.bf16.gmra.mxu0 %v3802
    %v4846 = vpop.f32.mrf.mxu0
    %v4847 = vadd.f32 %v3957, %v4846
    %v4848 = vpop.f32.mrf.mxu0
    %v4849 = vadd.f32 %v3957, %v4848
    %4850 = vmatmul.bf16.gmra.mxu0 %v3810
    %v4851 = vpop.f32.mrf.mxu0
    %v4852 = vadd.f32 %v3957, %v4851
    %v4853 = vpop.f32.mrf.mxu0
    %v4854 = vadd.f32 %v3957, %v4853
    %4855 = vmatmul.bf16.gmra.mxu0 %v3818
    %v4856 = vpop.f32.mrf.mxu0
    %v4857 = vadd.f32 %v3957, %v4856
    %v4858 = vpop.f32.mrf.mxu0
    %v4859 = vadd.f32 %v3957, %v4858
    %4860 = vdwg.mxu0
    %4861 = vmatpush.bf16.msra.mxu0 %v4375
    %4862 = vmatpush.bf16.msra.mxu0 %v4373
    %4863 = vmatpush.bf16.msra.mxu0 %v4371
    %4864 = vmatpush.bf16.msra.mxu0 %v4369
    %4865 = vmatpush.bf16.msra.mxu0 %v4367
    %4866 = vmatpush.bf16.msra.mxu0 %v4365
    %4867 = vmatpush.bf16.msra.mxu0 %v4363
    %4868 = vmatpush.bf16.msra.mxu0 %v4361
    %4869 = vmatmul.bf16.gmra.mxu0 %v3795
    %v4870 = vpop.f32.mrf.mxu0
    %v4871 = vadd.f32 %v4842, %v4870
    %v4872 = vpop.f32.mrf.mxu0
    %v4873 = vadd.f32 %v4844, %v4872
    %4874 = vmatmul.bf16.gmra.mxu0 %v3803
    %v4875 = vpop.f32.mrf.mxu0
    %v4876 = vadd.f32 %v4847, %v4875
    %v4877 = vpop.f32.mrf.mxu0
    %v4878 = vadd.f32 %v4849, %v4877
    %4879 = vmatmul.bf16.gmra.mxu0 %v3811
    %v4880 = vpop.f32.mrf.mxu0
    %v4881 = vadd.f32 %v4852, %v4880
    %v4882 = vpop.f32.mrf.mxu0
    %v4883 = vadd.f32 %v4854, %v4882
    %4884 = vmatmul.bf16.gmra.mxu0 %v3819
    %v4885 = vpop.f32.mrf.mxu0
    %v4886 = vadd.f32 %v4857, %v4885
    %v4887 = vpop.f32.mrf.mxu0
    %v4888 = vadd.f32 %v4859, %v4887
    %4889 = vdwg.mxu0
    %4890 = vmatpush.bf16.msra.mxu0 %v4391
    %4891 = vmatpush.bf16.msra.mxu0 %v4389
    %4892 = vmatpush.bf16.msra.mxu0 %v4387
    %4893 = vmatpush.bf16.msra.mxu0 %v4385
    %4894 = vmatpush.bf16.msra.mxu0 %v4383
    %4895 = vmatpush.bf16.msra.mxu0 %v4381
    %4896 = vmatpush.bf16.msra.mxu0 %v4379
    %4897 = vmatpush.bf16.msra.mxu0 %v4377
    %4898 = vmatmul.bf16.gmra.mxu0 %v3796
    %v4899 = vpop.f32.mrf.mxu0
    %v4900 = vadd.f32 %v4871, %v4899
    %v4901 = vpop.f32.mrf.mxu0
    %v4902 = vadd.f32 %v4873, %v4901
    %4903 = vmatmul.bf16.gmra.mxu0 %v3804
    %v4904 = vpop.f32.mrf.mxu0
    %v4905 = vadd.f32 %v4876, %v4904
    %v4906 = vpop.f32.mrf.mxu0
    %v4907 = vadd.f32 %v4878, %v4906
    %4908 = vmatmul.bf16.gmra.mxu0 %v3812
    %v4909 = vpop.f32.mrf.mxu0
    %v4910 = vadd.f32 %v4881, %v4909
    %v4911 = vpop.f32.mrf.mxu0
    %v4912 = vadd.f32 %v4883, %v4911
    %4913 = vmatmul.bf16.gmra.mxu0 %v3820
    %v4914 = vpop.f32.mrf.mxu0
    %v4915 = vadd.f32 %v4886, %v4914
    %v4916 = vpop.f32.mrf.mxu0
    %v4917 = vadd.f32 %v4888, %v4916
    %4918 = vdwg.mxu0
    %4919 = vmatpush.bf16.msra.mxu0 %v4407
    %4920 = vmatpush.bf16.msra.mxu0 %v4405
    %4921 = vmatpush.bf16.msra.mxu0 %v4403
    %4922 = vmatpush.bf16.msra.mxu0 %v4401
    %4923 = vmatpush.bf16.msra.mxu0 %v4399
    %4924 = vmatpush.bf16.msra.mxu0 %v4397
    %4925 = vmatpush.bf16.msra.mxu0 %v4395
    %4926 = vmatpush.bf16.msra.mxu0 %v4393
    %4927 = vmatmul.bf16.gmra.mxu0 %v3797
    %v4928 = vpop.f32.mrf.mxu0
    %v4929 = vadd.f32 %v4900, %v4928
    %v4930 = vpop.f32.mrf.mxu0
    %v4931 = vadd.f32 %v4902, %v4930
    %4932 = vmatmul.bf16.gmra.mxu0 %v3805
    %v4933 = vpop.f32.mrf.mxu0
    %v4934 = vadd.f32 %v4905, %v4933
    %v4935 = vpop.f32.mrf.mxu0
    %v4936 = vadd.f32 %v4907, %v4935
    %4937 = vmatmul.bf16.gmra.mxu0 %v3813
    %v4938 = vpop.f32.mrf.mxu0
    %v4939 = vadd.f32 %v4910, %v4938
    %v4940 = vpop.f32.mrf.mxu0
    %v4941 = vadd.f32 %v4912, %v4940
    %4942 = vmatmul.bf16.gmra.mxu0 %v3821
    %v4943 = vpop.f32.mrf.mxu0
    %v4944 = vadd.f32 %v4915, %v4943
    %v4945 = vpop.f32.mrf.mxu0
    %v4946 = vadd.f32 %v4917, %v4945
    %4947 = vdwg.mxu0
    %4948 = vmatpush.bf16.msra.mxu0 %v4423
    %4949 = vmatpush.bf16.msra.mxu0 %v4421
    %4950 = vmatpush.bf16.msra.mxu0 %v4419
    %4951 = vmatpush.bf16.msra.mxu0 %v4417
    %4952 = vmatpush.bf16.msra.mxu0 %v4415
    %4953 = vmatpush.bf16.msra.mxu0 %v4413
    %4954 = vmatpush.bf16.msra.mxu0 %v4411
    %4955 = vmatpush.bf16.msra.mxu0 %v4409
    %4956 = vmatmul.bf16.gmra.mxu0 %v3798
    %v4957 = vpop.f32.mrf.mxu0
    %v4958 = vadd.f32 %v4929, %v4957
    %v4959 = vpop.f32.mrf.mxu0
    %v4960 = vadd.f32 %v4931, %v4959
    %4961 = vmatmul.bf16.gmra.mxu0 %v3806
    %v4962 = vpop.f32.mrf.mxu0
    %v4963 = vadd.f32 %v4934, %v4962
    %v4964 = vpop.f32.mrf.mxu0
    %v4965 = vadd.f32 %v4936, %v4964
    %4966 = vmatmul.bf16.gmra.mxu0 %v3814
    %v4967 = vpop.f32.mrf.mxu0
    %v4968 = vadd.f32 %v4939, %v4967
    %v4969 = vpop.f32.mrf.mxu0
    %v4970 = vadd.f32 %v4941, %v4969
    %4971 = vmatmul.bf16.gmra.mxu0 %v3822
    %v4972 = vpop.f32.mrf.mxu0
    %v4973 = vadd.f32 %v4944, %v4972
    %v4974 = vpop.f32.mrf.mxu0
    %v4975 = vadd.f32 %v4946, %v4974
    %4976 = vdwg.mxu0
    %4977 = vmatpush.bf16.msra.mxu0 %v4439
    %4978 = vmatpush.bf16.msra.mxu0 %v4437
    %4979 = vmatpush.bf16.msra.mxu0 %v4435
    %4980 = vmatpush.bf16.msra.mxu0 %v4433
    %4981 = vmatpush.bf16.msra.mxu0 %v4431
    %4982 = vmatpush.bf16.msra.mxu0 %v4429
    %4983 = vmatpush.bf16.msra.mxu0 %v4427
    %4984 = vmatpush.bf16.msra.mxu0 %v4425
    %4985 = vmatmul.bf16.gmra.mxu0 %v3799
    %v4986 = vpop.f32.mrf.mxu0
    %v4987 = vadd.f32 %v4958, %v4986
    %v4988 = vpop.f32.mrf.mxu0
    %v4989 = vadd.f32 %v4960, %v4988
    %4990 = vmatmul.bf16.gmra.mxu0 %v3807
    %v4991 = vpop.f32.mrf.mxu0
    %v4992 = vadd.f32 %v4963, %v4991
    %v4993 = vpop.f32.mrf.mxu0
    %v4994 = vadd.f32 %v4965, %v4993
    %4995 = vmatmul.bf16.gmra.mxu0 %v3815
    %v4996 = vpop.f32.mrf.mxu0
    %v4997 = vadd.f32 %v4968, %v4996
    %v4998 = vpop.f32.mrf.mxu0
    %v4999 = vadd.f32 %v4970, %v4998
    %5000 = vmatmul.bf16.gmra.mxu0 %v3823
    %v5001 = vpop.f32.mrf.mxu0
    %v5002 = vadd.f32 %v4973, %v5001
    %v5003 = vpop.f32.mrf.mxu0
    %v5004 = vadd.f32 %v4975, %v5003
    %5005 = vdwg.mxu0
    %5006 = vmatpush.bf16.msra.mxu0 %v4455
    %5007 = vmatpush.bf16.msra.mxu0 %v4453
    %5008 = vmatpush.bf16.msra.mxu0 %v4451
    %5009 = vmatpush.bf16.msra.mxu0 %v4449
    %5010 = vmatpush.bf16.msra.mxu0 %v4447
    %5011 = vmatpush.bf16.msra.mxu0 %v4445
    %5012 = vmatpush.bf16.msra.mxu0 %v4443
    %5013 = vmatpush.bf16.msra.mxu0 %v4441
    %5014 = vmatmul.bf16.gmra.mxu0 %v3800
    %v5015 = vpop.f32.mrf.mxu0
    %v5016 = vadd.f32 %v4987, %v5015
    %v5017 = vpop.f32.mrf.mxu0
    %v5018 = vadd.f32 %v4989, %v5017
    %5019 = vmatmul.bf16.gmra.mxu0 %v3808
    %v5020 = vpop.f32.mrf.mxu0
    %v5021 = vadd.f32 %v4992, %v5020
    %v5022 = vpop.f32.mrf.mxu0
    %v5023 = vadd.f32 %v4994, %v5022
    %5024 = vmatmul.bf16.gmra.mxu0 %v3816
    %v5025 = vpop.f32.mrf.mxu0
    %v5026 = vadd.f32 %v4997, %v5025
    %v5027 = vpop.f32.mrf.mxu0
    %v5028 = vadd.f32 %v4999, %v5027
    %5029 = vmatmul.bf16.gmra.mxu0 %v3824
    %v5030 = vpop.f32.mrf.mxu0
    %v5031 = vadd.f32 %v5002, %v5030
    %v5032 = vpop.f32.mrf.mxu0
    %v5033 = vadd.f32 %v5004, %v5032
    %5034 = vdwg.mxu0
    %5035 = vmatpush.bf16.msra.mxu0 %v4471
    %5036 = vmatpush.bf16.msra.mxu0 %v4469
    %5037 = vmatpush.bf16.msra.mxu0 %v4467
    %5038 = vmatpush.bf16.msra.mxu0 %v4465
    %5039 = vmatpush.bf16.msra.mxu0 %v4463
    %5040 = vmatpush.bf16.msra.mxu0 %v4461
    %5041 = vmatpush.bf16.msra.mxu0 %v4459
    %5042 = vmatpush.bf16.msra.mxu0 %v4457
    %5043 = vmatmul.bf16.gmra.mxu0 %v3801
    %v5044 = vpop.f32.mrf.mxu0
    %v5045 = vadd.f32 %v5016, %v5044
    %v5046 = vpop.f32.mrf.mxu0
    %v5047 = vadd.f32 %v5018, %v5046
    %5048 = vmatmul.bf16.gmra.mxu0 %v3809
    %v5049 = vpop.f32.mrf.mxu0
    %v5050 = vadd.f32 %v5021, %v5049
    %v5051 = vpop.f32.mrf.mxu0
    %v5052 = vadd.f32 %v5023, %v5051
    %5053 = vmatmul.bf16.gmra.mxu0 %v3817
    %v5054 = vpop.f32.mrf.mxu0
    %v5055 = vadd.f32 %v5026, %v5054
    %v5056 = vpop.f32.mrf.mxu0
    %v5057 = vadd.f32 %v5028, %v5056
    %5058 = vmatmul.bf16.gmra.mxu0 %v3825
    %v5059 = vpop.f32.mrf.mxu0
    %v5060 = vadd.f32 %v5031, %v5059
    %v5061 = vpop.f32.mrf.mxu0
    %v5062 = vadd.f32 %v5033, %v5061
    %5063 = vdwg.mxu0
    %5064 = vst [vmem:[#allocation10] sm:$0xff] %v4813
    %5065 = vst [vmem:[#allocation10 + $0x8] sm:$0xff] %v5045
    %5066 = vst [vmem:[#allocation10 + $0x10] sm:$0xff] %v4815
    %5067 = vst [vmem:[#allocation10 + $0x18] sm:$0xff] %v5047
    %5068 = vst [vmem:[#allocation10 + $0x20] sm:$0xff] %v4818
    %5069 = vst [vmem:[#allocation10 + $0x28] sm:$0xff] %v5050
    %5070 = vst [vmem:[#allocation10 + $0x30] sm:$0xff] %v4820
    %5071 = vst [vmem:[#allocation10 + $0x38] sm:$0xff] %v5052
    %5072 = vst [vmem:[#allocation10 + $0x40] sm:$0xff] %v4823
    %5073 = vst [vmem:[#allocation10 + $0x48] sm:$0xff] %v5055
    %5074 = vst [vmem:[#allocation10 + $0x50] sm:$0xff] %v4825
    %5075 = vst [vmem:[#allocation10 + $0x58] sm:$0xff] %v5057
    %5076 = vst [vmem:[#allocation10 + $0x60] sm:$0xff] %v4828
    %5077 = vst [vmem:[#allocation10 + $0x68] sm:$0xff] %v5060
    %5078 = vst [vmem:[#allocation10 + $0x70] sm:$0xff] %v4830
    %5079 = vst [vmem:[#allocation10 + $0x78] sm:$0xff] %v5062
    // Predicated region
    $region42: #{tpu_custom_call.1} parent=1 // pred_check
      _
    $region43: #{tpu_custom_call.1} parent=1 // pred_check_branch
      %5081 = sbr.rel (0) target = $region45
    $region44: #{tpu_custom_call.1} parent=1 // pred_region
      %5083 = vsyncadd [#allocation6], 0
      %s5084 = sshll.u32 [#allocation10], 4
      %s5085 = int_to_ptr.vmem [resolvable:$true] %s5084
      %s5086 = sshll.u32 %s7, 4
      %s5087 = int_to_ptr.hbm [resolvable:$true] %s5086
      %5092 = dma.vmem_to_hbm [thread:$0]  %s5085, 2048, %s5087, [#allocation6], 256, 256, 16
    $region45: #{tpu_custom_call.1} parent=1 // pred_fallthru
      _
    // Predicated region
    $region46: #{tpu_custom_call.1} parent=1 // pred_check
      _
    $region47: #{tpu_custom_call.1} parent=1 // pred_check_branch
      %5094 = sbr.rel (0) target = $region49
    $region48: #{tpu_custom_call.1} parent=1 // pred_region
      %5096 = dma.done [#allocation6], 2048
    $region49: #{tpu_custom_call.1} parent=1 // pred_fallthru
      _
    %5097 = vsyncpa [#allocation5], 1
    %5098 = vsyncpa [#allocation8], 1
    %5099 = vsyncpa [#allocation6], 1

</llo_original>
